<compile_context>
chip_gen: v7x
topology: tpu7x:2x2x1
jax: 0.10.0
libtpu: 0.0.40
codegen_flags: <defaults>
</compile_context>

<pallas_src>
import jax
import jax.numpy as jnp
from jax.experimental import pallas as pl
from jax.experimental.pallas import tpu as pltpu

EPS = 1e-6


def prepare_params(weights, biases):
    """One-time (init-time) packing of the 7 Conv1d(C, C, 1) layers.

    PyTorch Conv1d weight is (C_out, C_in, 1).  It is kept in (C_out, C_in)
    orientation (bf16) because the kernel computes W @ a on NCW-oriented
    (C, TN) activations -- no transpose anywhere.  Bias is stored (C, 1) f32 so
    the in-kernel bias add is a lane broadcast.
    """
    w_stack = jnp.stack([w[:, :, 0] for w in weights]).astype(jnp.bfloat16)   # (7, C, C)
    b_stack = jnp.stack(biases).astype(jnp.float32)[:, :, None]               # (7, C, 1)
    return w_stack, b_stack


def feature_masking(x_ncw, w_stack, b_stack, *, tn=1024, point_splits=2):
    """x_ncw: (B, C, N) float32 (PyTorch NCW layout). Returns (B, C) float32."""
    B, C, N = x_ncw.shape

    # Tile-size hygiene: multiple of 128 lanes, no larger than padded N.
    tn = max(128, (int(tn) // 128) * 128)
    n_pad = ((N + 127) // 128) * 128
    tn = min(tn, n_pad)

    nt = -(-N // tn)                         # number of point tiles
    S = max(1, min(int(point_splits), nt))   # point-axis split (v7x megacore)
    T = -(-nt // S)                          # tiles handled per split
    needs_clamp = (T * S != nt)              # split overflow tiles exist
    needs_mask = needs_clamp or (N % tn != 0)

    if needs_clamp:
        # Overflow tiles of the split re-read the last real block; their
        # contribution is fully masked out inside the kernel.
        x_map = lambda b, s, t: (b, 0, jnp.minimum(s * T + t, nt - 1))
    else:
        x_map = lambda b, s, t: (b, 0, s * T + t)

    def kernel(x_ref, w_ref, b_ref, num_ref, den_ref):
        # x_ref  : (1, C, TN)  one batch element, one tile of points (NCW slice)
        # w_ref  : (7, C, C)   bf16, (C_out, C_in)
        # b_ref  : (7, C, 1)   f32
        # num_ref/den_ref : (1, 1, C, 1) f32 output blocks, resident across the
        #                   innermost (point-tile) axis -> used as accumulators.
        s = pl.program_id(1)
        t = pl.program_id(2)

        @pl.when(t == 0)
        def _():
            num_ref[...] = jnp.zeros_like(num_ref)
            den_ref[...] = jnp.zeros_like(den_ref)

        # NCW orientation: channels on sublanes, points on lanes.  Every 1x1
        # conv is (C, C) @ (C, TN) on the MXU; bias add is a lane broadcast.
        a = x_ref[0]                                   # (C, TN) f32

        # features_preprocess: 3 x (conv1x1 + ReLU) -- bf16 MXU, f32 accumulate.
        for i in range(3):
            a = jnp.dot(w_ref[i], a.astype(jnp.bfloat16),
                        preferred_element_type=jnp.float32) + b_ref[i]
            a = jnp.maximum(a, 0.0)
        h = a

        # features_masking: 3 x (conv1x1 + ReLU) then a final conv1x1.
        m = h
        for i in range(3, 6):
            m = jnp.dot(w_ref[i], m.astype(jnp.bfloat16),
                        preferred_element_type=jnp.float32) + b_ref[i]
            m = jnp.maximum(m, 0.0)
        m = jnp.dot(w_ref[6], m.astype(jnp.bfloat16),
                    preferred_element_type=jnp.float32) + b_ref[6]
        mask = jax.nn.sigmoid(m)                        # (C, TN) f32

        masked_h = mask * h
        if needs_mask:
            # Zero the pad tail's contribution to BOTH sums (pad columns never
            # mix with valid ones: the contraction is over channels only).
            start = (s * T + t) * tn
            idx = start + jax.lax.broadcasted_iota(jnp.int32, (1, tn), 1)
            valid = idx < N
            masked_h = jnp.where(valid, masked_h, 0.0)
            mask = jnp.where(valid, mask, 0.0)

        # Lane-axis (point) reductions into the (C, 1) accumulators.
        num_ref[0, 0] += jnp.sum(masked_h, axis=1, keepdims=True)
        den_ref[0, 0] += jnp.sum(mask, axis=1, keepdims=True)

    # Explicit VMEM budget: x block (double-buffered) + f32/bf16 activation
    # intermediates + weights; clamped so it is portable across v5e/v6e/v7x.
    act_bytes = C * tn * 4
    est = (2 * act_bytes + 8 * act_bytes
           + 2 * (w_stack.size * 2 + b_stack.size * 4) + (2 << 20))
    vmem_limit = int(min(max(est, 32 << 20), 56 << 20))

    cost = pl.CostEstimate(
        flops=int(2 * 7 * B * N * C * C),
        transcendentals=int(B * N * C),                       # sigmoid
        bytes_accessed=int(x_ncw.size * 4 + w_stack.size * 2
                           + b_stack.size * 4 + 2 * B * S * C * 4),
    )

    num, den = pl.pallas_call(
        kernel,
        out_shape=(jax.ShapeDtypeStruct((B, S, C, 1), jnp.float32),
                   jax.ShapeDtypeStruct((B, S, C, 1), jnp.float32)),
        grid_spec=pltpu.PrefetchScalarGridSpec(
            num_scalar_prefetch=0,
            grid=(B, S, T),
            in_specs=[
                pl.BlockSpec((1, C, tn), x_map),
                # Constant index maps -> fetched once, never re-DMA'd.
                pl.BlockSpec((7, C, C), lambda b, s, t: (0, 0, 0)),
                pl.BlockSpec((7, C, 1), lambda b, s, t: (0, 0, 0)),
            ],
            out_specs=[
                pl.BlockSpec((1, 1, C, 1), lambda b, s, t: (b, s, 0, 0)),
                pl.BlockSpec((1, 1, C, 1), lambda b, s, t: (b, s, 0, 0)),
            ],
        ),
        compiler_params=pltpu.CompilerParams(
            dimension_semantics=("parallel", "parallel", "arbitrary"),
            vmem_limit_bytes=vmem_limit),
        cost_estimate=cost,
    )(x_ncw, w_stack, b_stack)

    # Tiny JAX epilogue: combine per-split partials and normalize.
    num_tot = jnp.sum(num[..., 0], axis=1)   # (B, C)
    den_tot = jnp.sum(den[..., 0], axis=1)   # (B, C)
    return num_tot / (den_tot + EPS)


def feature_masking_reference_f32(x_ncw, weights, biases):
    """Pure-JAX, full-f32 reference faithful to the PyTorch forward (NCW)."""
    def conv1x1(x, w, b):  # x: (B, C_in, N), w: (C_out, C_in, 1)
        return jnp.einsum('oc,bcn->bon', w[:, :, 0], x) + b[None, :, None]

    h = x_ncw
    for i in range(3):
        h = jax.nn.relu(conv1x1(h, weights[i], biases[i]))
    m = h
    for i in range(3, 6):
        m = jax.nn.relu(conv1x1(m, weights[i], biases[i]))
    m = conv1x1(m, weights[6], biases[6])
    mask = jax.nn.sigmoid(m)
    return (mask * h).sum(2) / (mask.sum(2) + EPS)


def feature_masking_reference_bf16(x_ncw, w_stack, b_stack):
    """Pure-JAX reference matching the kernel's bf16-MXU / f32-accumulate path."""
    def layer(a, i):  # a: (B, C, N)
        y = jnp.einsum('oc,bcn->bon', w_stack[i], a.astype(jnp.bfloat16),
                       preferred_element_type=jnp.float32)
        return y + b_stack[i][None]          # (1, C, 1) broadcast

    h = x_ncw
    for i in range(3):
        h = jax.nn.relu(layer(h, i))
    m = h
    for i in range(3, 6):
        m = jax.nn.relu(layer(m, i))
    m = layer(m, 6)
    mask = jax.nn.sigmoid(m)
    return (mask * h).sum(2) / (mask.sum(2) + EPS)


if __name__ == "__main__":
    B, C, N = 2, 128, 896  # batch, features_size, num points (ragged vs. tile)

    key = jax.random.PRNGKey(0)
    k_x, k_w = jax.random.split(key)

    # Input in PyTorch NCW layout.
    x = jax.random.normal(k_x, (B, C, N), dtype=jnp.float32)

    # 7 Conv1d(C, C, 1) layers: 3 preprocess + 3 masking + 1 final masking conv.
    weights, biases = [], []
    wkeys = jax.random.split(k_w, 14)
    bound = 1.0 / (C ** 0.5)  # PyTorch Conv1d default init range
    for i in range(7):
        w = jax.random.uniform(wkeys[2 * i], (C, C, 1), jnp.float32, -bound, bound)
        b = jax.random.uniform(wkeys[2 * i + 1], (C,), jnp.float32, -bound, bound)
        weights.append(w)
        biases.append(b)

    # Done once at model init (hoisted out of the per-call path).
    w_stack, b_stack = prepare_params(weights, biases)

    # Multi-tile path: ragged last tile (896 = 3*256 + 128) + 2-way point split.
    out = feature_masking(x, w_stack, b_stack, tn=256, point_splits=2)
    out = jax.block_until_ready(out)
    assert out.shape == (B, C)

    # Default large-tile path: whole point range in one tile, no masking needed.
    out_big = feature_masking(x, w_stack, b_stack)
    out_big = jax.block_until_ready(out_big)
    assert out_big.shape == (B, C)

    # Tight check vs. a reference that mirrors the kernel's bf16-MXU precision.
    ref_bf16 = feature_masking_reference_bf16(x, w_stack, b_stack)
    assert jnp.allclose(out, ref_bf16, atol=1e-2, rtol=1e-2), "mismatch vs bf16 reference (tiled)"
    assert jnp.allclose(out_big, ref_bf16, atol=1e-2, rtol=1e-2), "mismatch vs bf16 reference (big tile)"

    # Loose check vs. the full-f32 PyTorch-faithful math (bf16-level drift only).
    ref_f32 = feature_masking_reference_f32(x, weights, biases)
    assert jnp.allclose(out, ref_f32, atol=5e-2, rtol=5e-2), "mismatch vs f32 reference"

    print("KERNEL_OK")
</pallas_src>

<mosaic_0001>
module attributes {stable_mosaic.version = 11 : i64} {
  func.func @kernel(%arg0: i32, %arg1: i32, %arg2: i32, %arg3: memref<1x128x256xf32, #tpu.memory_space<vmem>>, %arg4: memref<7x128x128xbf16, #tpu.memory_space<vmem>>, %arg5: memref<7x128x1xf32, #tpu.memory_space<vmem>>, %arg6: memref<1x1x128x1xf32, #tpu.memory_space<vmem>>, %arg7: memref<1x1x128x1xf32, #tpu.memory_space<vmem>>) attributes {dimension_semantics = [#tpu.dimension_semantics<parallel>, #tpu.dimension_semantics<parallel>, #tpu.dimension_semantics<arbitrary>], iteration_bounds = array<i64: 2, 2, 2>, scalar_prefetch = 0 : i64, scratch_operands = 0 : i64, tpu.core_type = #tpu.core_type<tc>, window_params = [{transform_indices = @transform_0, window_bounds = array<i64: 1, 128, 256>}, {pipeline_mode = #tpu.pipeline_mode<synchronous>, transform_indices = @transform_1, window_bounds = array<i64: 7, 128, 128>}, {pipeline_mode = #tpu.pipeline_mode<synchronous>, transform_indices = @transform_2, window_bounds = array<i64: 7, 128, 1>}, {transform_indices = @transform_3, window_bounds = array<i64: 1, 1, 128, 1>}, {transform_indices = @transform_4, window_bounds = array<i64: 1, 1, 128, 1>}]} {
    %c0_i32 = arith.constant 0 : i32
    %0 = arith.cmpi eq, %arg2, %c0_i32 : i32
    %1 = arith.extui %0 : i1 to i32
    %c0_i32_0 = arith.constant 0 : i32
    %2 = arith.cmpi ne, %1, %c0_i32_0 : i32
    scf.if %2 {
      %cst_72 = arith.constant 0.000000e+00 : f32
      %111 = vector.broadcast %cst_72 : f32 to vector<1x1x128x1xf32>
      %c0_73 = arith.constant 0 : index
      %c0_74 = arith.constant 0 : index
      %c0_75 = arith.constant 0 : index
      %c0_76 = arith.constant 0 : index
      %112 = vector.load %arg6[%c0_73, %c0_74, %c0_75, %c0_76] : memref<1x1x128x1xf32, #tpu.memory_space<vmem>>, vector<1x1x128x1xf32>
      tpu.vector_store %arg6[%c0_73, %c0_74, %c0_75, %c0_76], %111 {strides = array<i32>} : memref<1x1x128x1xf32, #tpu.memory_space<vmem>>, vector<1x1x128x1xf32>,
      %cst_77 = arith.constant 0.000000e+00 : f32
      %113 = vector.broadcast %cst_77 : f32 to vector<1x1x128x1xf32>
      %c0_78 = arith.constant 0 : index
      %c0_79 = arith.constant 0 : index
      %c0_80 = arith.constant 0 : index
      %c0_81 = arith.constant 0 : index
      %114 = vector.load %arg7[%c0_78, %c0_79, %c0_80, %c0_81] : memref<1x1x128x1xf32, #tpu.memory_space<vmem>>, vector<1x1x128x1xf32>
      tpu.vector_store %arg7[%c0_78, %c0_79, %c0_80, %c0_81], %113 {strides = array<i32>} : memref<1x1x128x1xf32, #tpu.memory_space<vmem>>, vector<1x1x128x1xf32>,
    } else {
    }
    %c0 = arith.constant 0 : index
    %c0_1 = arith.constant 0 : index
    %c0_2 = arith.constant 0 : index
    %3 = vector.load %arg3[%c0, %c0_1, %c0_2] : memref<1x128x256xf32, #tpu.memory_space<vmem>>, vector<1x128x256xf32>
    %4 = vector.shape_cast %3 : vector<1x128x256xf32> to vector<128x256xf32>
    %c0_3 = arith.constant 0 : index
    %c0_4 = arith.constant 0 : index
    %c0_5 = arith.constant 0 : index
    %5 = vector.load %arg4[%c0_3, %c0_4, %c0_5] : memref<7x128x128xbf16, #tpu.memory_space<vmem>>, vector<1x128x128xbf16>
    %6 = vector.shape_cast %5 : vector<1x128x128xbf16> to vector<128x128xbf16>
    %7 = arith.truncf %4 : vector<128x256xf32> to vector<128x256xbf16>
    %cst = arith.constant dense<0.000000e+00> : vector<128x256xf32>
    %8 = tpu.matmul %6, %7, %cst {dimension_numbers = #tpu.dot_dimension_numbers<[1], [0], [0], [1], [0, 0, 1, 1], [], []>} : vector<128x128xbf16>, vector<128x256xbf16>, vector<128x256xf32> -> vector<128x256xf32>
    %c0_6 = arith.constant 0 : index
    %c0_7 = arith.constant 0 : index
    %c0_8 = arith.constant 0 : index
    %9 = vector.load %arg5[%c0_6, %c0_7, %c0_8] : memref<7x128x1xf32, #tpu.memory_space<vmem>>, vector<1x128x1xf32>
    %10 = vector.shape_cast %9 : vector<1x128x1xf32> to vector<128x1xf32>
    %11 = vector.broadcast %10 : vector<128x1xf32> to vector<128x256xf32>
    %12 = arith.addf %8, %11 : vector<128x256xf32>
    %cst_9 = arith.constant 0.000000e+00 : f32
    %13 = vector.broadcast %cst_9 : f32 to vector<128x256xf32>
    %14 = arith.maximumf %12, %13 : vector<128x256xf32>
    %c1 = arith.constant 1 : index
    %c0_10 = arith.constant 0 : index
    %c0_11 = arith.constant 0 : index
    %15 = vector.load %arg4[%c1, %c0_10, %c0_11] : memref<7x128x128xbf16, #tpu.memory_space<vmem>>, vector<1x128x128xbf16>
    %16 = vector.shape_cast %15 : vector<1x128x128xbf16> to vector<128x128xbf16>
    %17 = arith.truncf %14 : vector<128x256xf32> to vector<128x256xbf16>
    %cst_12 = arith.constant dense<0.000000e+00> : vector<128x256xf32>
    %18 = tpu.matmul %16, %17, %cst_12 {dimension_numbers = #tpu.dot_dimension_numbers<[1], [0], [0], [1], [0, 0, 1, 1], [], []>} : vector<128x128xbf16>, vector<128x256xbf16>, vector<128x256xf32> -> vector<128x256xf32>
    %c1_13 = arith.constant 1 : index
    %c0_14 = arith.constant 0 : index
    %c0_15 = arith.constant 0 : index
    %19 = vector.load %arg5[%c1_13, %c0_14, %c0_15] : memref<7x128x1xf32, #tpu.memory_space<vmem>>, vector<1x128x1xf32>
    %20 = vector.shape_cast %19 : vector<1x128x1xf32> to vector<128x1xf32>
    %21 = vector.broadcast %20 : vector<128x1xf32> to vector<128x256xf32>
    %22 = arith.addf %18, %21 : vector<128x256xf32>
    %cst_16 = arith.constant 0.000000e+00 : f32
    %23 = vector.broadcast %cst_16 : f32 to vector<128x256xf32>
    %24 = arith.maximumf %22, %23 : vector<128x256xf32>
    %c2 = arith.constant 2 : index
    %c0_17 = arith.constant 0 : index
    %c0_18 = arith.constant 0 : index
    %25 = vector.load %arg4[%c2, %c0_17, %c0_18] : memref<7x128x128xbf16, #tpu.memory_space<vmem>>, vector<1x128x128xbf16>
    %26 = vector.shape_cast %25 : vector<1x128x128xbf16> to vector<128x128xbf16>
    %27 = arith.truncf %24 : vector<128x256xf32> to vector<128x256xbf16>
    %cst_19 = arith.constant dense<0.000000e+00> : vector<128x256xf32>
    %28 = tpu.matmul %26, %27, %cst_19 {dimension_numbers = #tpu.dot_dimension_numbers<[1], [0], [0], [1], [0, 0, 1, 1], [], []>} : vector<128x128xbf16>, vector<128x256xbf16>, vector<128x256xf32> -> vector<128x256xf32>
    %c2_20 = arith.constant 2 : index
    %c0_21 = arith.constant 0 : index
    %c0_22 = arith.constant 0 : index
    %29 = vector.load %arg5[%c2_20, %c0_21, %c0_22] : memref<7x128x1xf32, #tpu.memory_space<vmem>>, vector<1x128x1xf32>
    %30 = vector.shape_cast %29 : vector<1x128x1xf32> to vector<128x1xf32>
    %31 = vector.broadcast %30 : vector<128x1xf32> to vector<128x256xf32>
    %32 = arith.addf %28, %31 : vector<128x256xf32>
    %cst_23 = arith.constant 0.000000e+00 : f32
    %33 = vector.broadcast %cst_23 : f32 to vector<128x256xf32>
    %34 = arith.maximumf %32, %33 : vector<128x256xf32>
    %c3 = arith.constant 3 : index
    %c0_24 = arith.constant 0 : index
    %c0_25 = arith.constant 0 : index
    %35 = vector.load %arg4[%c3, %c0_24, %c0_25] : memref<7x128x128xbf16, #tpu.memory_space<vmem>>, vector<1x128x128xbf16>
    %36 = vector.shape_cast %35 : vector<1x128x128xbf16> to vector<128x128xbf16>
    %37 = arith.truncf %34 : vector<128x256xf32> to vector<128x256xbf16>
    %cst_26 = arith.constant dense<0.000000e+00> : vector<128x256xf32>
    %38 = tpu.matmul %36, %37, %cst_26 {dimension_numbers = #tpu.dot_dimension_numbers<[1], [0], [0], [1], [0, 0, 1, 1], [], []>} : vector<128x128xbf16>, vector<128x256xbf16>, vector<128x256xf32> -> vector<128x256xf32>
    %c3_27 = arith.constant 3 : index
    %c0_28 = arith.constant 0 : index
    %c0_29 = arith.constant 0 : index
    %39 = vector.load %arg5[%c3_27, %c0_28, %c0_29] : memref<7x128x1xf32, #tpu.memory_space<vmem>>, vector<1x128x1xf32>
    %40 = vector.shape_cast %39 : vector<1x128x1xf32> to vector<128x1xf32>
    %41 = vector.broadcast %40 : vector<128x1xf32> to vector<128x256xf32>
    %42 = arith.addf %38, %41 : vector<128x256xf32>
    %cst_30 = arith.constant 0.000000e+00 : f32
    %43 = vector.broadcast %cst_30 : f32 to vector<128x256xf32>
    %44 = arith.maximumf %42, %43 : vector<128x256xf32>
    %c4 = arith.constant 4 : index
    %c0_31 = arith.constant 0 : index
    %c0_32 = arith.constant 0 : index
    %45 = vector.load %arg4[%c4, %c0_31, %c0_32] : memref<7x128x128xbf16, #tpu.memory_space<vmem>>, vector<1x128x128xbf16>
    %46 = vector.shape_cast %45 : vector<1x128x128xbf16> to vector<128x128xbf16>
    %47 = arith.truncf %44 : vector<128x256xf32> to vector<128x256xbf16>
    %cst_33 = arith.constant dense<0.000000e+00> : vector<128x256xf32>
    %48 = tpu.matmul %46, %47, %cst_33 {dimension_numbers = #tpu.dot_dimension_numbers<[1], [0], [0], [1], [0, 0, 1, 1], [], []>} : vector<128x128xbf16>, vector<128x256xbf16>, vector<128x256xf32> -> vector<128x256xf32>
    %c4_34 = arith.constant 4 : index
    %c0_35 = arith.constant 0 : index
    %c0_36 = arith.constant 0 : index
    %49 = vector.load %arg5[%c4_34, %c0_35, %c0_36] : memref<7x128x1xf32, #tpu.memory_space<vmem>>, vector<1x128x1xf32>
    %50 = vector.shape_cast %49 : vector<1x128x1xf32> to vector<128x1xf32>
    %51 = vector.broadcast %50 : vector<128x1xf32> to vector<128x256xf32>
    %52 = arith.addf %48, %51 : vector<128x256xf32>
    %cst_37 = arith.constant 0.000000e+00 : f32
    %53 = vector.broadcast %cst_37 : f32 to vector<128x256xf32>
    %54 = arith.maximumf %52, %53 : vector<128x256xf32>
    %c5 = arith.constant 5 : index
    %c0_38 = arith.constant 0 : index
    %c0_39 = arith.constant 0 : index
    %55 = vector.load %arg4[%c5, %c0_38, %c0_39] : memref<7x128x128xbf16, #tpu.memory_space<vmem>>, vector<1x128x128xbf16>
    %56 = vector.shape_cast %55 : vector<1x128x128xbf16> to vector<128x128xbf16>
    %57 = arith.truncf %54 : vector<128x256xf32> to vector<128x256xbf16>
    %cst_40 = arith.constant dense<0.000000e+00> : vector<128x256xf32>
    %58 = tpu.matmul %56, %57, %cst_40 {dimension_numbers = #tpu.dot_dimension_numbers<[1], [0], [0], [1], [0, 0, 1, 1], [], []>} : vector<128x128xbf16>, vector<128x256xbf16>, vector<128x256xf32> -> vector<128x256xf32>
    %c5_41 = arith.constant 5 : index
    %c0_42 = arith.constant 0 : index
    %c0_43 = arith.constant 0 : index
    %59 = vector.load %arg5[%c5_41, %c0_42, %c0_43] : memref<7x128x1xf32, #tpu.memory_space<vmem>>, vector<1x128x1xf32>
    %60 = vector.shape_cast %59 : vector<1x128x1xf32> to vector<128x1xf32>
    %61 = vector.broadcast %60 : vector<128x1xf32> to vector<128x256xf32>
    %62 = arith.addf %58, %61 : vector<128x256xf32>
    %cst_44 = arith.constant 0.000000e+00 : f32
    %63 = vector.broadcast %cst_44 : f32 to vector<128x256xf32>
    %64 = arith.maximumf %62, %63 : vector<128x256xf32>
    %c6 = arith.constant 6 : index
    %c0_45 = arith.constant 0 : index
    %c0_46 = arith.constant 0 : index
    %65 = vector.load %arg4[%c6, %c0_45, %c0_46] : memref<7x128x128xbf16, #tpu.memory_space<vmem>>, vector<1x128x128xbf16>
    %66 = vector.shape_cast %65 : vector<1x128x128xbf16> to vector<128x128xbf16>
    %67 = arith.truncf %64 : vector<128x256xf32> to vector<128x256xbf16>
    %cst_47 = arith.constant dense<0.000000e+00> : vector<128x256xf32>
    %68 = tpu.matmul %66, %67, %cst_47 {dimension_numbers = #tpu.dot_dimension_numbers<[1], [0], [0], [1], [0, 0, 1, 1], [], []>} : vector<128x128xbf16>, vector<128x256xbf16>, vector<128x256xf32> -> vector<128x256xf32>
    %c6_48 = arith.constant 6 : index
    %c0_49 = arith.constant 0 : index
    %c0_50 = arith.constant 0 : index
    %69 = vector.load %arg5[%c6_48, %c0_49, %c0_50] : memref<7x128x1xf32, #tpu.memory_space<vmem>>, vector<1x128x1xf32>
    %70 = vector.shape_cast %69 : vector<1x128x1xf32> to vector<128x1xf32>
    %71 = vector.broadcast %70 : vector<128x1xf32> to vector<128x256xf32>
    %72 = arith.addf %68, %71 : vector<128x256xf32>
    %73 = arith.negf %72 : vector<128x256xf32>
    %74 = math.exp %73 : vector<128x256xf32>
    %cst_51 = arith.constant 1.000000e+00 : f32
    %75 = vector.broadcast %cst_51 : f32 to vector<128x256xf32>
    %76 = arith.addf %75, %74 : vector<128x256xf32>
    %77 = arith.divf %75, %76 : vector<128x256xf32>
    %78 = arith.mulf %77, %34 : vector<128x256xf32>
    %c2_i32 = arith.constant 2 : i32
    %79 = arith.muli %arg1, %c2_i32 : i32
    %80 = arith.addi %79, %arg2 : i32
    %c256_i32 = arith.constant 256 : i32
    %81 = arith.muli %80, %c256_i32 : i32
    %82 = tpu.iota {dimensions = array<i32: 1>} : vector<1x256xi32>
    %83 = vector.broadcast %81 : i32 to vector<1x256xi32>
    %84 = arith.addi %83, %82 : vector<1x256xi32>
    %c896_i32 = arith.constant 896 : i32
    %85 = vector.broadcast %c896_i32 : i32 to vector<1x256xi32>
    %86 = arith.cmpi slt, %84, %85 : vector<1x256xi32>
    %cst_52 = arith.constant 0.000000e+00 : f32
    %87 = vector.shape_cast %86 : vector<1x256xi1> to vector<1x256xi1>
    %88 = vector.broadcast %87 : vector<1x256xi1> to vector<128x256xi1>
    %89 = vector.broadcast %cst_52 : f32 to vector<128x256xf32>
    %90 = arith.select %88, %78, %89 : vector<128x256xi1>, vector<128x256xf32>
    %cst_53 = arith.constant 0.000000e+00 : f32
    %91 = vector.shape_cast %86 : vector<1x256xi1> to vector<1x256xi1>
    %92 = vector.broadcast %91 : vector<1x256xi1> to vector<128x256xi1>
    %93 = vector.broadcast %cst_53 : f32 to vector<128x256xf32>
    %94 = arith.select %92, %77, %93 : vector<128x256xi1>, vector<128x256xf32>
    %c0_54 = arith.constant 0 : index
    %c0_55 = arith.constant 0 : index
    %c0_56 = arith.constant 0 : index
    %c0_57 = arith.constant 0 : index
    %95 = vector.load %arg6[%c0_54, %c0_55, %c0_56, %c0_57] : memref<1x1x128x1xf32, #tpu.memory_space<vmem>>, vector<1x1x128x1xf32>
    %96 = vector.shape_cast %95 : vector<1x1x128x1xf32> to vector<128x1xf32>
    %cst_58 = arith.constant dense<0.000000e+00> : vector<128xf32>
    %97 = vector.multi_reduction <add>, %90, %cst_58 [1] : vector<128x256xf32> to vector<128xf32>
    %98 = vector.shape_cast %97 : vector<128xf32> to vector<128x1xf32>
    %99 = arith.addf %96, %98 : vector<128x1xf32>
    %c0_59 = arith.constant 0 : index
    %c0_60 = arith.constant 0 : index
    %c0_61 = arith.constant 0 : index
    %c0_62 = arith.constant 0 : index
    %100 = vector.load %arg6[%c0_59, %c0_60, %c0_61, %c0_62] : memref<1x1x128x1xf32, #tpu.memory_space<vmem>>, vector<1x1x128x1xf32>
    %101 = vector.shape_cast %100 : vector<1x1x128x1xf32> to vector<128x1xf32>
    %102 = vector.shape_cast %99 : vector<128x1xf32> to vector<1x1x128x1xf32>
    tpu.vector_store %arg6[%c0_59, %c0_60, %c0_61, %c0_62], %102 {strides = array<i32>} : memref<1x1x128x1xf32, #tpu.memory_space<vmem>>, vector<1x1x128x1xf32>,
    %c0_63 = arith.constant 0 : index
    %c0_64 = arith.constant 0 : index
    %c0_65 = arith.constant 0 : index
    %c0_66 = arith.constant 0 : index
    %103 = vector.load %arg7[%c0_63, %c0_64, %c0_65, %c0_66] : memref<1x1x128x1xf32, #tpu.memory_space<vmem>>, vector<1x1x128x1xf32>
    %104 = vector.shape_cast %103 : vector<1x1x128x1xf32> to vector<128x1xf32>
    %cst_67 = arith.constant dense<0.000000e+00> : vector<128xf32>
    %105 = vector.multi_reduction <add>, %94, %cst_67 [1] : vector<128x256xf32> to vector<128xf32>
    %106 = vector.shape_cast %105 : vector<128xf32> to vector<128x1xf32>
    %107 = arith.addf %104, %106 : vector<128x1xf32>
    %c0_68 = arith.constant 0 : index
    %c0_69 = arith.constant 0 : index
    %c0_70 = arith.constant 0 : index
    %c0_71 = arith.constant 0 : index
    %108 = vector.load %arg7[%c0_68, %c0_69, %c0_70, %c0_71] : memref<1x1x128x1xf32, #tpu.memory_space<vmem>>, vector<1x1x128x1xf32>
    %109 = vector.shape_cast %108 : vector<1x1x128x1xf32> to vector<128x1xf32>
    %110 = vector.shape_cast %107 : vector<128x1xf32> to vector<1x1x128x1xf32>
    tpu.vector_store %arg7[%c0_68, %c0_69, %c0_70, %c0_71], %110 {strides = array<i32>} : memref<1x1x128x1xf32, #tpu.memory_space<vmem>>, vector<1x1x128x1xf32>,
    return
  }
  func.func @transform_0(%arg0: i32, %arg1: i32, %arg2: i32) -> (i32, i32, i32) {
    %c2_i32 = arith.constant 2 : i32
    %0 = arith.muli %arg1, %c2_i32 : i32
    %1 = arith.addi %0, %arg2 : i32
    %c0_i32 = arith.constant 0 : i32
    %c0_i32_0 = arith.constant 0 : i32
    return %arg0, %c0_i32, %1 : i32, i32, i32
  }
  func.func @transform_1(%arg0: i32, %arg1: i32, %arg2: i32) -> (i32, i32, i32) {
    %c0_i32 = arith.constant 0 : i32
    %c0_i32_0 = arith.constant 0 : i32
    %c0_i32_1 = arith.constant 0 : i32
    %c0_i32_2 = arith.constant 0 : i32
    return %c0_i32, %c0_i32_0, %c0_i32_1 : i32, i32, i32
  }
  func.func @transform_2(%arg0: i32, %arg1: i32, %arg2: i32) -> (i32, i32, i32) {
    %c0_i32 = arith.constant 0 : i32
    %c0_i32_0 = arith.constant 0 : i32
    %c0_i32_1 = arith.constant 0 : i32
    %c0_i32_2 = arith.constant 0 : i32
    return %c0_i32, %c0_i32_0, %c0_i32_1 : i32, i32, i32
  }
  func.func @transform_3(%arg0: i32, %arg1: i32, %arg2: i32) -> (i32, i32, i32, i32) {
    %c0_i32 = arith.constant 0 : i32
    %c0_i32_0 = arith.constant 0 : i32
    %c0_i32_1 = arith.constant 0 : i32
    return %arg0, %arg1, %c0_i32, %c0_i32_0 : i32, i32, i32, i32
  }
  func.func @transform_4(%arg0: i32, %arg1: i32, %arg2: i32) -> (i32, i32, i32, i32) {
    %c0_i32 = arith.constant 0 : i32
    %c0_i32_0 = arith.constant 0 : i32
    %c0_i32_1 = arith.constant 0 : i32
    return %arg0, %arg1, %c0_i32, %c0_i32_0 : i32, i32, i32, i32
  }
}

</mosaic_0001>

<llo_original>
// kernel: tpu_custom_call.1
$region0: #{tpu_custom_call.1}
  #allocation0 [shape = 'u32[]', space=smem, size = 0x4, offset = 0x4, fixed_abs, tag = 'smem constant byte address 0x4 - core index']
  #allocation1 [shape = 'u32[144,128]{1,0:T(1,128)}', space=vmem, size = 0x12000, scoped, tag = 'internal scratch']
  %s0 = inlined_call_operand.hbm [shape: f32[2,128,896], index: 0, kind: input, shape index: {}]
  %s1 = inlined_call_operand.vmem [shape: bf16[7,128,128], index: 1, kind: input, shape index: {}]
  %s2 = inlined_call_operand.vmem [shape: f32[7,128,1], index: 2, kind: input, shape index: {}]
  %s3 = inlined_call_operand.vmem [shape: f32[2,2,128,1], index: 3, kind: output, shape index: {0}]
  %s4 = inlined_call_operand.vmem [shape: f32[2,2,128,1], index: 4, kind: output, shape index: {1}]
  %5 = xla_tuple %s3, %s4
  %s6 = sld [smem:[#allocation0]]
  $region61: #{tpu_custom_call.1} parent=0
    _
  %s8 = ssub.s32 1, %s6
  %s9 = scalar_select 0, %s8, %s6
  $region1: #{tpu_custom_call.1} parent=0
    #allocation2 [shape = 'u8[262144]{0}', space=vmem, size = 0x40000, scoped, tag = 'input window, operand 0']
    #allocation3 [shape = 's32[2]{0}', space=sflag, size = 0x8, scoped, tag = 'scoped memory for tpu_custom_call.1']
    %10 = vsyncpa [#allocation3], 0
    %s11 = scalar_lea.sflag [#allocation3], 1
    %12 = vsyncpa %s11, 0
    loop: start=0, step=1, limit=10
    $region2: #{tpu_custom_call.1} parent=1 // loop_pre_header
      _
    $region3: #{tpu_custom_call.1} parent=1 // loop_header
      %s14 = sphi 0, %s18
      %p15 = scmp.ge.s32.totalorder %s14, 10
      %s21 = sphi 0, %s40
      %s22 = sphi 0, %s36
      %s23 = sphi 0, %s32
      %s24 = sphi 0, %s21
      %s25 = sphi 0, %s22
      %s26 = sphi 0, %s23
      %s27 = sphi 0, %s24
      %s28 = sphi 0, %s25
      %s29 = sphi 0, %s26
      %s49 = sphi 0, %s51
      %s52 = sphi 0, %s49
      %s53 = sphi 0, %s52
      %s69 = sphi 0, %s53
      %s73 = sphi 0, %s73
      %s75 = sphi 0, %s73
      %s76 = sphi 0, %s75
      %s90 = sphi 0, %s76
      %s94 = sphi 0, %s94
      %s96 = sphi 0, %s94
      %s97 = sphi 0, %s96
      %s111 = sphi 0, %s97
      %s119 = sphi 0, %s121
      %s122 = sphi 0, %s119
      %s123 = sphi 0, %s122
      %s139 = sphi 0, %s123
      %s147 = sphi 0, %s149
      %s150 = sphi 0, %s147
      %s151 = sphi 0, %s150
      %s167 = sphi 0, %s151
    $region4: #{tpu_custom_call.1} parent=1 // loop_header_branch
      %17 = sbr.rel (%p15) target = $region8
    $region5: #{tpu_custom_call.1} parent=1 // loop_body
      %s19 = ssub.s32 %s14, 1
      %s20 = ssub.s32 %s14, 2
      %s30 = sadd.s32 1, %s23
      %p31 = scmp.ge.s32.totalorder %s30, 2
      %s32 = scalar_select %p31, 0, %s30
      %s33 = sadd.s32 1, %s22
      %s34 = scalar_select %p31, %s33, %s22
      %p35 = scmp.ge.s32.totalorder %s34, 2
      %s36 = scalar_select %p35, 0, %s34
      %s37 = sadd.s32 1, %s21
      %s38 = scalar_select %p35, %s37, %s21
      %p39 = scmp.ge.s32.totalorder %s38, 2
      %s40 = scalar_select %p39, 0, %s38
      %s41 = smul.u32 %s22, 2
      %s42 = sadd.s32 %s41, %s23
      %s43 = smul.u32 %s36, 2
      %s44 = sadd.s32 %s43, %s32
      %s45 = ssub.s32 %s21, %s40
      %s46 = ssub.s32 %s42, %s44
      %s47 = sor.u32 %s45, %s46
      %p48 = scmp.eq.s32.totalorder %s47, 0
      %s50 = sadd.s32 %s49, 1
      %s51 = scalar_select %p48, %s49, %s50
      %p54 = pneg %p48
      %p55 = scmp.eq.s32.totalorder %s14, 7
      %p56 = por %p54, %p55
      %p57 = scmp.ne.s32.totalorder %s49, %s52
      %p58 = scmp.eq.s32.totalorder %s14, 0
      %p59 = por %p57, %p58
      %p60 = scmp.ne.s32.totalorder %s49, %s52
      %p61 = scmp.eq.s32.totalorder %s19, 7
      %p62 = por %p60, %p61
      %p63 = scmp.ne.s32.totalorder %s52, %s53
      %p64 = scmp.eq.s32.totalorder %s19, 0
      %p65 = por %p63, %p64
      %p66 = scmp.ne.s32.totalorder %s52, %s53
      %p67 = scmp.eq.s32.totalorder %s20, 7
      %p68 = por %p66, %p67
      %p70 = scmp.ne.s32.totalorder %s53, %s69
      %p71 = scmp.eq.s32.totalorder %s20, 0
      %p72 = por %p70, %p71
      %s74 = sadd.s32 %s73, 1
      %p77 = scmp.eq.s32.totalorder %s14, 7
      %p78 = scmp.ne.s32.totalorder %s73, %s75
      %p79 = scmp.eq.s32.totalorder %s14, 0
      %p80 = por %p78, %p79
      %p81 = scmp.ne.s32.totalorder %s73, %s75
      %p82 = scmp.eq.s32.totalorder %s19, 7
      %p83 = por %p81, %p82
      %p84 = scmp.ne.s32.totalorder %s75, %s76
      %p85 = scmp.eq.s32.totalorder %s19, 0
      %p86 = por %p84, %p85
      %p87 = scmp.ne.s32.totalorder %s75, %s76
      %p88 = scmp.eq.s32.totalorder %s20, 7
      %p89 = por %p87, %p88
      %p91 = scmp.ne.s32.totalorder %s76, %s90
      %p92 = scmp.eq.s32.totalorder %s20, 0
      %p93 = por %p91, %p92
      %s95 = sadd.s32 %s94, 1
      %p98 = scmp.eq.s32.totalorder %s14, 7
      %p99 = scmp.ne.s32.totalorder %s94, %s96
      %p100 = scmp.eq.s32.totalorder %s14, 0
      %p101 = por %p99, %p100
      %p102 = scmp.ne.s32.totalorder %s94, %s96
      %p103 = scmp.eq.s32.totalorder %s19, 7
      %p104 = por %p102, %p103
      %p105 = scmp.ne.s32.totalorder %s96, %s97
      %p106 = scmp.eq.s32.totalorder %s19, 0
      %p107 = por %p105, %p106
      %p108 = scmp.ne.s32.totalorder %s96, %s97
      %p109 = scmp.eq.s32.totalorder %s20, 7
      %p110 = por %p108, %p109
      %p112 = scmp.ne.s32.totalorder %s97, %s111
      %p113 = scmp.eq.s32.totalorder %s20, 0
      %p114 = por %p112, %p113
      %s115 = ssub.s32 %s21, %s40
      %s116 = ssub.s32 %s22, %s36
      %s117 = sor.u32 %s115, %s116
      %p118 = scmp.eq.s32.totalorder %s117, 0
      %s120 = sadd.s32 %s119, 1
      %s121 = scalar_select %p118, %s119, %s120
      %p124 = pneg %p118
      %p125 = scmp.eq.s32.totalorder %s14, 7
      %p126 = por %p124, %p125
      %p127 = scmp.ne.s32.totalorder %s119, %s122
      %p128 = scmp.eq.s32.totalorder %s14, 0
      %p129 = por %p127, %p128
      %p130 = scmp.ne.s32.totalorder %s119, %s122
      %p131 = scmp.eq.s32.totalorder %s19, 7
      %p132 = por %p130, %p131
      %p133 = scmp.ne.s32.totalorder %s122, %s123
      %p134 = scmp.eq.s32.totalorder %s19, 0
      %p135 = por %p133, %p134
      %p136 = scmp.ne.s32.totalorder %s122, %s123
      %p137 = scmp.eq.s32.totalorder %s20, 7
      %p138 = por %p136, %p137
      %p140 = scmp.ne.s32.totalorder %s123, %s139
      %p141 = scmp.eq.s32.totalorder %s20, 0
      %p142 = por %p140, %p141
      %s143 = ssub.s32 %s21, %s40
      %s144 = ssub.s32 %s22, %s36
      %s145 = sor.u32 %s143, %s144
      %p146 = scmp.eq.s32.totalorder %s145, 0
      %s148 = sadd.s32 %s147, 1
      %s149 = scalar_select %p146, %s147, %s148
      %p152 = pneg %p146
      %p153 = scmp.eq.s32.totalorder %s14, 7
      %p154 = por %p152, %p153
      %p155 = scmp.ne.s32.totalorder %s147, %s150
      %p156 = scmp.eq.s32.totalorder %s14, 0
      %p157 = por %p155, %p156
      %p158 = scmp.ne.s32.totalorder %s147, %s150
      %p159 = scmp.eq.s32.totalorder %s19, 7
      %p160 = por %p158, %p159
      %p161 = scmp.ne.s32.totalorder %s150, %s151
      %p162 = scmp.eq.s32.totalorder %s19, 0
      %p163 = por %p161, %p162
      %p164 = scmp.ne.s32.totalorder %s150, %s151
      %p165 = scmp.eq.s32.totalorder %s20, 7
      %p166 = por %p164, %p165
      %p168 = scmp.ne.s32.totalorder %s151, %s167
      %p169 = scmp.eq.s32.totalorder %s20, 0
      %p170 = por %p168, %p169
      %p171 = scmp.le.s32.totalorder 1, %s14
      %p172 = scmp.lt.s32.totalorder %s14, 9
      %p173 = pnand %p171, %p172
      %p174 = pneg %p173
      // Predicated region
      $region9: #{tpu_custom_call.1} parent=5 // pred_check
        _
      $region10: #{tpu_custom_call.1} parent=5 // pred_check_branch
        %176 = sbr.rel (%p173) target = $region12
      $region11: #{tpu_custom_call.1} parent=5 // pred_region
        %s177 = ssub.s32 %s14, 1
        // Predicated region
        $region13: #{tpu_custom_call.1} parent=11 // pred_check
          %p178 = pneg %p86
        $region14: #{tpu_custom_call.1} parent=11 // pred_check_branch
          %180 = sbr.rel (%p178) target = $region16
        $region15: #{tpu_custom_call.1} parent=11 // pred_region
          _
        $region16: #{tpu_custom_call.1} parent=11 // pred_fallthru
          _
        // Predicated region
        $region17: #{tpu_custom_call.1} parent=11 // pred_check
          %p181 = pneg %p107
        $region18: #{tpu_custom_call.1} parent=11 // pred_check_branch
          %183 = sbr.rel (%p181) target = $region20
        $region19: #{tpu_custom_call.1} parent=11 // pred_region
          _
        $region20: #{tpu_custom_call.1} parent=11 // pred_fallthru
          _
      $region12: #{tpu_custom_call.1} parent=5 // pred_fallthru
        _
      %p184 = scmp.lt.s32.totalorder %s14, 8
      // Predicated region
      $region21: #{tpu_custom_call.1} parent=5 // pred_check
        %p185 = pneg %p184
      $region22: #{tpu_custom_call.1} parent=5 // pred_check_branch
        %187 = sbr.rel (%p185) target = $region24
      $region23: #{tpu_custom_call.1} parent=5 // pred_region
        // Predicated region
        $region25: #{tpu_custom_call.1} parent=23 // pred_check
          %p188 = pneg %p59
        $region26: #{tpu_custom_call.1} parent=23 // pred_check_branch
          %190 = sbr.rel (%p188) target = $region28
        $region27: #{tpu_custom_call.1} parent=23 // pred_region
          %s191 = sand.u32 %s49, 1
          %s192 = scalar_lea.sflag [#allocation3], %s191
          %s193 = sand.u32 %s49, 1
          %s194 = smul.addr %s193, 256
          %s195 = scalar_lea.vmem [#allocation2], %s194
          %s196 = smul.u32 %s22, 2
          %s197 = sadd.s32 %s196, %s23
          %s198 = smul.u32 2, %s197
          %s199 = ssub.s32 7, %s198
          %p200 = scmp.lt.s32.totalorder %s199, 2
          %s201 = scalar_select %p200, %s199, 2
          %s202 = smul.u32 2048, %s201
          %s204 = ssub.s32 4096, %s202
          %205 = vsyncadd %s192, %s204
          %p206 = scmp.ne.s32.totalorder 0, %s202
          %s207 = smul.addr %s21, 112
          %s208 = sadd.s32 %s198, %s207
          %s209 = smul.addr %s208, 128
          %s210 = scalar_lea.hbm %s0, %s209
          %s211 = smul.u32 %s201, 8
          %s212 = smul.u32 %s211, 16
          %s213 = sshll.u32 %s195, 4
          %s214 = int_to_ptr.vmem [resolvable:$true] %s213
          %s215 = sshll.u32 %s212, 4
          %219 = dma.hbm_to_vmem [thread:$0]  (%p206), %s210, %s215, %s214, %s192, 896, 256, %s211
        $region28: #{tpu_custom_call.1} parent=23 // pred_fallthru
          _
      $region24: #{tpu_custom_call.1} parent=5 // pred_fallthru
        _
      %p220 = scmp.le.s32.totalorder 1, %s14
      %p221 = scmp.lt.s32.totalorder %s14, 9
      %p222 = pnand %p220, %p221
      %p223 = pneg %p222
      // Predicated region
      $region29: #{tpu_custom_call.1} parent=5 // pred_check
        _
      $region30: #{tpu_custom_call.1} parent=5 // pred_check_branch
        %225 = sbr.rel (%p222) target = $region32
      $region31: #{tpu_custom_call.1} parent=5 // pred_region
        %s226 = ssub.s32 %s14, 1
        %s227 = sand.u32 %s52, 1
        %s228 = scalar_lea.sflag [#allocation3], %s227
        %s229 = sand.u32 %s52, 1
        %s230 = smul.addr %s229, 256
        %s231 = scalar_lea.vmem [#allocation2], %s230
        // Predicated region
        $region33: #{tpu_custom_call.1} parent=31 // pred_check
          %p232 = pneg %p65
        $region34: #{tpu_custom_call.1} parent=31 // pred_check_branch
          %234 = sbr.rel (%p232) target = $region36
        $region35: #{tpu_custom_call.1} parent=31 // pred_region
          %235 = dma.done %s228, 4096
        $region36: #{tpu_custom_call.1} parent=31 // pred_fallthru
          _
        %s236 = sand.u32 %s52, 1
        %s237 = scalar_lea.sflag [#allocation3], %s236
        %s238 = sand.u32 %s52, 1
        %s239 = smul.addr %s238, 256
        %s240 = scalar_lea.vmem [#allocation2], %s239
        %p241 = pneg %p65
        %p242 = pneg %p62
        %p243 = pneg %p86
        %p244 = pneg %p83
        %p245 = pneg %p107
        %p246 = pneg %p104
        %p247 = pneg %p135
        %p248 = pneg %p132
        %p249 = scmp.lt.s32.totalorder %s24, 1
        %s250 = scalar_select %p249, %s24, 1
        %p251 = scmp.lt.s32.totalorder %s25, 1
        %s252 = scalar_select %p251, %s25, 1
        %s253 = smul.addr %s252, 16
        %s254 = smul.addr %s250, 32
        %s255 = sadd.s32 %s253, %s254
        %s256 = smul.addr %s255, 8
        %s257 = scalar_lea.vmem %s3, %s256
        %p258 = pneg %p163
        %p259 = pneg %p160
        %p260 = scmp.lt.s32.totalorder %s24, 1
        %s261 = scalar_select %p260, %s24, 1
        %p262 = scmp.lt.s32.totalorder %s25, 1
        %s263 = scalar_select %p262, %s25, 1
        %s264 = smul.addr %s263, 16
        %s265 = smul.addr %s261, 32
        %s266 = sadd.s32 %s264, %s265
        %s267 = smul.addr %s266, 8
        %s268 = scalar_lea.vmem %s4, %s267
        %s269 = smul.u32 %s25, 2
        %s270 = sadd.s32 %s269, %s26
        %s271 = smul.u32 2, %s270
        %s272 = ssub.s32 7, %s271
        %p273 = scmp.lt.s32.totalorder %s272, 2
        %s274 = scalar_select %p273, %s272, 2
        %s275 = smul.u32 2048, %s274
        %p276 = scmp.lt.s32.totalorder %s24, 1
        %s277 = scalar_select %p276, %s24, 1
        %p278 = scmp.lt.s32.totalorder %s25, 1
        %s279 = scalar_select %p278, %s25, 1
        %s280 = smul.addr %s279, 16
        %s281 = smul.addr %s277, 32
        %s282 = sadd.s32 %s280, %s281
        %s283 = smul.addr %s282, 8
        %s284 = scalar_lea.vmem %s3, %s283
        %p285 = scmp.lt.s32.totalorder %s24, 1
        %s286 = scalar_select %p285, %s24, 1
        %p287 = scmp.lt.s32.totalorder %s25, 1
        %s288 = scalar_select %p287, %s25, 1
        %s289 = smul.addr %s288, 16
        %s290 = smul.addr %s286, 32
        %s291 = sadd.s32 %s289, %s290
        %s292 = smul.addr %s291, 8
        %s293 = scalar_lea.vmem %s4, %s292
        %p295 = scmp.eq.s32.totalorder %s26, 0
        // Predicated region
        $region37: #{tpu_custom_call.1} parent=31 // pred_check
          %p296 = pneg %p295
        $region38: #{tpu_custom_call.1} parent=31 // pred_check_branch
          %298 = sbr.rel (%p296) target = $region40
        $region39: #{tpu_custom_call.1} parent=31 // pred_region
          %vm299 = vcmask 7168
          %300 = vst.msk [vmem:[%s284] sm:$0xff] %vm299, 0.0
          %301 = vst.msk [vmem:[%s284 + $0x8] sm:$0xff] %vm299, 0.0
          %302 = vst.msk [vmem:[%s284 + $0x10] sm:$0xff] %vm299, 0.0
          %303 = vst.msk [vmem:[%s284 + $0x18] sm:$0xff] %vm299, 0.0
          %304 = vst.msk [vmem:[%s284 + $0x20] sm:$0xff] %vm299, 0.0
          %305 = vst.msk [vmem:[%s284 + $0x28] sm:$0xff] %vm299, 0.0
          %306 = vst.msk [vmem:[%s284 + $0x30] sm:$0xff] %vm299, 0.0
          %307 = vst.msk [vmem:[%s284 + $0x38] sm:$0xff] %vm299, 0.0
          %308 = vst.msk [vmem:[%s284 + $0x40] sm:$0xff] %vm299, 0.0
          %309 = vst.msk [vmem:[%s284 + $0x48] sm:$0xff] %vm299, 0.0
          %310 = vst.msk [vmem:[%s284 + $0x50] sm:$0xff] %vm299, 0.0
          %311 = vst.msk [vmem:[%s284 + $0x58] sm:$0xff] %vm299, 0.0
          %312 = vst.msk [vmem:[%s284 + $0x60] sm:$0xff] %vm299, 0.0
          %313 = vst.msk [vmem:[%s284 + $0x68] sm:$0xff] %vm299, 0.0
          %314 = vst.msk [vmem:[%s284 + $0x70] sm:$0xff] %vm299, 0.0
          %315 = vst.msk [vmem:[%s284 + $0x78] sm:$0xff] %vm299, 0.0
          %316 = vst.msk [vmem:[%s293] sm:$0xff] %vm299, 0.0
          %317 = vst.msk [vmem:[%s293 + $0x8] sm:$0xff] %vm299, 0.0
          %318 = vst.msk [vmem:[%s293 + $0x10] sm:$0xff] %vm299, 0.0
          %319 = vst.msk [vmem:[%s293 + $0x18] sm:$0xff] %vm299, 0.0
          %320 = vst.msk [vmem:[%s293 + $0x20] sm:$0xff] %vm299, 0.0
          %321 = vst.msk [vmem:[%s293 + $0x28] sm:$0xff] %vm299, 0.0
          %322 = vst.msk [vmem:[%s293 + $0x30] sm:$0xff] %vm299, 0.0
          %323 = vst.msk [vmem:[%s293 + $0x38] sm:$0xff] %vm299, 0.0
          %324 = vst.msk [vmem:[%s293 + $0x40] sm:$0xff] %vm299, 0.0
          %325 = vst.msk [vmem:[%s293 + $0x48] sm:$0xff] %vm299, 0.0
          %326 = vst.msk [vmem:[%s293 + $0x50] sm:$0xff] %vm299, 0.0
          %327 = vst.msk [vmem:[%s293 + $0x58] sm:$0xff] %vm299, 0.0
          %328 = vst.msk [vmem:[%s293 + $0x60] sm:$0xff] %vm299, 0.0
          %329 = vst.msk [vmem:[%s293 + $0x68] sm:$0xff] %vm299, 0.0
          %330 = vst.msk [vmem:[%s293 + $0x70] sm:$0xff] %vm299, 0.0
          %331 = vst.msk [vmem:[%s293 + $0x78] sm:$0xff] %vm299, 0.0
        $region40: #{tpu_custom_call.1} parent=31 // pred_fallthru
          _
        %v332 = vld [vmem:[%s231] sm:$0xff]
        %v333 = vld [vmem:[%s231 + $0x8] sm:$0xff]
        %v334 = vld [vmem:[%s231 + $0x10] sm:$0xff]
        %v335 = vld [vmem:[%s231 + $0x18] sm:$0xff]
        %v336 = vld [vmem:[%s231 + $0x20] sm:$0xff]
        %v337 = vld [vmem:[%s231 + $0x28] sm:$0xff]
        %v338 = vld [vmem:[%s231 + $0x30] sm:$0xff]
        %v339 = vld [vmem:[%s231 + $0x38] sm:$0xff]
        %v340 = vld [vmem:[%s231 + $0x40] sm:$0xff]
        %v341 = vld [vmem:[%s231 + $0x48] sm:$0xff]
        %v342 = vld [vmem:[%s231 + $0x50] sm:$0xff]
        %v343 = vld [vmem:[%s231 + $0x58] sm:$0xff]
        %v344 = vld [vmem:[%s231 + $0x60] sm:$0xff]
        %v345 = vld [vmem:[%s231 + $0x68] sm:$0xff]
        %v346 = vld [vmem:[%s231 + $0x70] sm:$0xff]
        %v347 = vld [vmem:[%s231 + $0x78] sm:$0xff]
        %v348 = vld [vmem:[%s231 + $0x80] sm:$0xff]
        %v349 = vld [vmem:[%s231 + $0x88] sm:$0xff]
        %v350 = vld [vmem:[%s231 + $0x90] sm:$0xff]
        %v351 = vld [vmem:[%s231 + $0x98] sm:$0xff]
        %v352 = vld [vmem:[%s231 + $0xa0] sm:$0xff]
        %v353 = vld [vmem:[%s231 + $0xa8] sm:$0xff]
        %v354 = vld [vmem:[%s231 + $0xb0] sm:$0xff]
        %v355 = vld [vmem:[%s231 + $0xb8] sm:$0xff]
        %v356 = vld [vmem:[%s231 + $0xc0] sm:$0xff]
        %v357 = vld [vmem:[%s231 + $0xc8] sm:$0xff]
        %v358 = vld [vmem:[%s231 + $0xd0] sm:$0xff]
        %v359 = vld [vmem:[%s231 + $0xd8] sm:$0xff]
        %v360 = vld [vmem:[%s231 + $0xe0] sm:$0xff]
        %v361 = vld [vmem:[%s231 + $0xe8] sm:$0xff]
        %v362 = vld [vmem:[%s231 + $0xf0] sm:$0xff]
        %v363 = vld [vmem:[%s231 + $0xf8] sm:$0xff]
        %v364 = vld [vmem:[%s1] sm:$0xf]
        %v365 = vld [vmem:[%s1 + $0x4] sm:$0xf]
        %v366 = vld [vmem:[%s1 + $0x8] sm:$0xf]
        %v367 = vld [vmem:[%s1 + $0xc] sm:$0xf]
        %v368 = vld [vmem:[%s1 + $0x10] sm:$0xf]
        %v369 = vld [vmem:[%s1 + $0x14] sm:$0xf]
        %v370 = vld [vmem:[%s1 + $0x18] sm:$0xf]
        %v371 = vld [vmem:[%s1 + $0x1c] sm:$0xf]
        %v372 = vld [vmem:[%s1 + $0x20] sm:$0xf]
        %v373 = vld [vmem:[%s1 + $0x24] sm:$0xf]
        %v374 = vld [vmem:[%s1 + $0x28] sm:$0xf]
        %v375 = vld [vmem:[%s1 + $0x2c] sm:$0xf]
        %v376 = vld [vmem:[%s1 + $0x30] sm:$0xf]
        %v377 = vld [vmem:[%s1 + $0x34] sm:$0xf]
        %v378 = vld [vmem:[%s1 + $0x38] sm:$0xf]
        %v379 = vld [vmem:[%s1 + $0x3c] sm:$0xf]
        %v380 = vpack.c.bf16 %v334, %v332
        %v381 = vpack.c.bf16 %v335, %v333
        %v382 = vpack.c.bf16 %v338, %v336
        %v383 = vpack.c.bf16 %v339, %v337
        %v384 = vpack.c.bf16 %v342, %v340
        %v385 = vpack.c.bf16 %v343, %v341
        %v386 = vpack.c.bf16 %v346, %v344
        %v387 = vpack.c.bf16 %v347, %v345
        %v388 = vpack.c.bf16 %v350, %v348
        %v389 = vpack.c.bf16 %v351, %v349
        %v390 = vpack.c.bf16 %v354, %v352
        %v391 = vpack.c.bf16 %v355, %v353
        %v392 = vpack.c.bf16 %v358, %v356
        %v393 = vpack.c.bf16 %v359, %v357
        %v394 = vpack.c.bf16 %v362, %v360
        %v395 = vpack.c.bf16 %v363, %v361
        %v396 = vld [vmem:[%s2] sm:$0xff]
        %v397 = vld [vmem:[%s2 + $0x8] sm:$0xff]
        %v398 = vld [vmem:[%s2 + $0x10] sm:$0xff]
        %v399 = vld [vmem:[%s2 + $0x18] sm:$0xff]
        %v400 = vld [vmem:[%s2 + $0x20] sm:$0xff]
        %v401 = vld [vmem:[%s2 + $0x28] sm:$0xff]
        %v402 = vld [vmem:[%s2 + $0x30] sm:$0xff]
        %v403 = vld [vmem:[%s2 + $0x38] sm:$0xff]
        %v404 = vld [vmem:[%s2 + $0x40] sm:$0xff]
        %v405 = vld [vmem:[%s2 + $0x48] sm:$0xff]
        %v406 = vld [vmem:[%s2 + $0x50] sm:$0xff]
        %v407 = vld [vmem:[%s2 + $0x58] sm:$0xff]
        %v408 = vld [vmem:[%s2 + $0x60] sm:$0xff]
        %v409 = vld [vmem:[%s2 + $0x68] sm:$0xff]
        %v410 = vld [vmem:[%s2 + $0x70] sm:$0xff]
        %v411 = vld [vmem:[%s2 + $0x78] sm:$0xff]
        %413 = vset.pattern.permute.xlu0 0
        %414 = vperm.xlu0 %413, %v396
        %v415 = vpop.permute.xlu0 %414
        %418 = vset.pattern.permute.xlu0 0
        %419 = vperm.xlu0 %418, %v397
        %v420 = vpop.permute.xlu0 %419
        %423 = vset.pattern.permute.xlu0 0
        %424 = vperm.xlu0 %423, %v398
        %v425 = vpop.permute.xlu0 %424
        %428 = vset.pattern.permute.xlu0 0
        %429 = vperm.xlu0 %428, %v399
        %v430 = vpop.permute.xlu0 %429
        %433 = vset.pattern.permute.xlu0 0
        %434 = vperm.xlu0 %433, %v400
        %v435 = vpop.permute.xlu0 %434
        %438 = vset.pattern.permute.xlu0 0
        %439 = vperm.xlu0 %438, %v401
        %v440 = vpop.permute.xlu0 %439
        %443 = vset.pattern.permute.xlu0 0
        %444 = vperm.xlu0 %443, %v402
        %v445 = vpop.permute.xlu0 %444
        %448 = vset.pattern.permute.xlu0 0
        %449 = vperm.xlu0 %448, %v403
        %v450 = vpop.permute.xlu0 %449
        %453 = vset.pattern.permute.xlu0 0
        %454 = vperm.xlu0 %453, %v404
        %v455 = vpop.permute.xlu0 %454
        %458 = vset.pattern.permute.xlu0 0
        %459 = vperm.xlu0 %458, %v405
        %v460 = vpop.permute.xlu0 %459
        %463 = vset.pattern.permute.xlu0 0
        %464 = vperm.xlu0 %463, %v406
        %v465 = vpop.permute.xlu0 %464
        %468 = vset.pattern.permute.xlu0 0
        %469 = vperm.xlu0 %468, %v407
        %v470 = vpop.permute.xlu0 %469
        %473 = vset.pattern.permute.xlu0 0
        %474 = vperm.xlu0 %473, %v408
        %v475 = vpop.permute.xlu0 %474
        %478 = vset.pattern.permute.xlu0 0
        %479 = vperm.xlu0 %478, %v409
        %v480 = vpop.permute.xlu0 %479
        %483 = vset.pattern.permute.xlu0 0
        %484 = vperm.xlu0 %483, %v410
        %v485 = vpop.permute.xlu0 %484
        %488 = vset.pattern.permute.xlu0 0
        %489 = vperm.xlu0 %488, %v411
        %v490 = vpop.permute.xlu0 %489
        %v508 = vunpack.c.l.b16 %v364
        %v509 = vunpack.c.l.b16 %v365
        %v510 = vunpack.c.l.b16 %v366
        %v511 = vunpack.c.l.b16 %v367
        %v512 = vunpack.c.l.b16 %v368
        %v513 = vunpack.c.l.b16 %v369
        %v514 = vunpack.c.l.b16 %v370
        %v515 = vunpack.c.l.b16 %v371
        %v516 = vunpack.c.l.b16 %v372
        %v517 = vunpack.c.l.b16 %v373
        %v518 = vunpack.c.l.b16 %v374
        %v519 = vunpack.c.l.b16 %v375
        %v520 = vunpack.c.l.b16 %v376
        %v521 = vunpack.c.l.b16 %v377
        %v522 = vunpack.c.l.b16 %v378
        %v523 = vunpack.c.l.b16 %v379
        %v524 = vpack.c.b16 %v509, %v508
        %v525 = vpack.c.b16 %v511, %v510
        %v526 = vpack.c.b16 %v513, %v512
        %v527 = vpack.c.b16 %v515, %v514
        %v528 = vpack.c.b16 %v517, %v516
        %v529 = vpack.c.b16 %v519, %v518
        %v530 = vpack.c.b16 %v521, %v520
        %v531 = vpack.c.b16 %v523, %v522
        %540 = vmatprep.subr.bf16.mxu0 %v381
        %541 = vmatpush1.bf16.msra.mxu0 %v380
        %542 = vmatprep.subr.bf16.mxu0 %v383
        %543 = vmatpush1.bf16.msra.mxu0 %v382
        %544 = vmatprep.subr.bf16.mxu0 %v385
        %545 = vmatpush1.bf16.msra.mxu0 %v384
        %546 = vmatprep.subr.bf16.mxu0 %v387
        %547 = vmatpush1.bf16.msra.mxu0 %v386
        %548 = vmatprep.subr.bf16.mxu0 %v389
        %549 = vmatpush1.bf16.msra.mxu0 %v388
        %550 = vmatprep.subr.bf16.mxu0 %v391
        %551 = vmatpush1.bf16.msra.mxu0 %v390
        %552 = vmatprep.subr.bf16.mxu0 %v393
        %553 = vmatpush1.bf16.msra.mxu0 %v392
        %554 = vmatprep.subr.bf16.mxu0 %v395
        %555 = vmatpush1.bf16.msra.mxu0 %v394
        %556 = vmatprep.subr.bf16.mxu0 0
        %557 = vmatpush1.bf16.msra.mxu0 0
        %558 = vmatprep.subr.bf16.mxu0 0
        %559 = vmatpush1.bf16.msra.mxu0 0
        %560 = vmatprep.subr.bf16.mxu0 0
        %561 = vmatpush1.bf16.msra.mxu0 0
        %562 = vmatprep.subr.bf16.mxu0 0
        %563 = vmatpush1.bf16.msra.mxu0 0
        %564 = vmatprep.subr.bf16.mxu0 0
        %565 = vmatpush1.bf16.msra.mxu0 0
        %566 = vmatprep.subr.bf16.mxu0 0
        %567 = vmatpush1.bf16.msra.mxu0 0
        %568 = vmatprep.subr.bf16.mxu0 0
        %569 = vmatpush1.bf16.msra.mxu0 0
        %570 = vmatprep.subr.bf16.mxu0 0
        %571 = vmatpush1.bf16.msra.mxu0 0
        %572 = vmatprep.mubr.bf16.mxu0 0
        %573 = vmatmul.mubr.bf16.gmra.mrb[0].mxu0 %v524
        %v574 = vpop.f32.mrb[0].mxu0
        %v575 = vadd.f32 %v415, %v574
        %v576 = vpop.f32.mrb[0].mxu0
        %v577 = vadd.f32 %v415, %v576
        %v578 = vpop.f32.mrb[0].mxu0
        %v579 = vadd.f32 %v420, %v578
        %v580 = vpop.f32.mrb[0].mxu0
        %v581 = vadd.f32 %v420, %v580
        %582 = vmatprep.mubr.bf16.mxu0 0
        %583 = vmatmul.mubr.bf16.gmra.mrb[0].mxu0 %v525
        %v584 = vpop.f32.mrb[0].mxu0
        %v585 = vadd.f32 %v425, %v584
        %v586 = vpop.f32.mrb[0].mxu0
        %v587 = vadd.f32 %v425, %v586
        %v588 = vpop.f32.mrb[0].mxu0
        %v589 = vadd.f32 %v430, %v588
        %v590 = vpop.f32.mrb[0].mxu0
        %v591 = vadd.f32 %v430, %v590
        %592 = vmatprep.mubr.bf16.mxu0 0
        %593 = vmatmul.mubr.bf16.gmra.mrb[0].mxu0 %v526
        %v594 = vpop.f32.mrb[0].mxu0
        %v595 = vadd.f32 %v435, %v594
        %v596 = vpop.f32.mrb[0].mxu0
        %v597 = vadd.f32 %v435, %v596
        %v598 = vpop.f32.mrb[0].mxu0
        %v599 = vadd.f32 %v440, %v598
        %v600 = vpop.f32.mrb[0].mxu0
        %v601 = vadd.f32 %v440, %v600
        %602 = vmatprep.mubr.bf16.mxu0 0
        %603 = vmatmul.mubr.bf16.gmra.mrb[0].mxu0 %v527
        %v604 = vpop.f32.mrb[0].mxu0
        %v605 = vadd.f32 %v445, %v604
        %v606 = vpop.f32.mrb[0].mxu0
        %v607 = vadd.f32 %v445, %v606
        %v608 = vpop.f32.mrb[0].mxu0
        %v609 = vadd.f32 %v450, %v608
        %v610 = vpop.f32.mrb[0].mxu0
        %v611 = vadd.f32 %v450, %v610
        %612 = vmatprep.mubr.bf16.mxu0 0
        %613 = vmatmul.mubr.bf16.gmra.mrb[0].mxu0 %v528
        %v614 = vpop.f32.mrb[0].mxu0
        %v615 = vadd.f32 %v455, %v614
        %v616 = vpop.f32.mrb[0].mxu0
        %v617 = vadd.f32 %v455, %v616
        %v618 = vpop.f32.mrb[0].mxu0
        %v619 = vadd.f32 %v460, %v618
        %v620 = vpop.f32.mrb[0].mxu0
        %v621 = vadd.f32 %v460, %v620
        %622 = vmatprep.mubr.bf16.mxu0 0
        %623 = vmatmul.mubr.bf16.gmra.mrb[0].mxu0 %v529
        %v624 = vpop.f32.mrb[0].mxu0
        %v625 = vadd.f32 %v465, %v624
        %v626 = vpop.f32.mrb[0].mxu0
        %v627 = vadd.f32 %v465, %v626
        %v628 = vpop.f32.mrb[0].mxu0
        %v629 = vadd.f32 %v470, %v628
        %v630 = vpop.f32.mrb[0].mxu0
        %v631 = vadd.f32 %v470, %v630
        %632 = vmatprep.mubr.bf16.mxu0 0
        %633 = vmatmul.mubr.bf16.gmra.mrb[0].mxu0 %v530
        %v634 = vpop.f32.mrb[0].mxu0
        %v635 = vadd.f32 %v475, %v634
        %v636 = vpop.f32.mrb[0].mxu0
        %v637 = vadd.f32 %v475, %v636
        %v638 = vpop.f32.mrb[0].mxu0
        %v639 = vadd.f32 %v480, %v638
        %v640 = vpop.f32.mrb[0].mxu0
        %v641 = vadd.f32 %v480, %v640
        %642 = vmatprep.mubr.bf16.mxu0 0
        %643 = vmatmul.mubr.bf16.gmra.mrb[0].mxu0 %v531
        %v644 = vpop.f32.mrb[0].mxu0
        %v645 = vadd.f32 %v485, %v644
        %v646 = vpop.f32.mrb[0].mxu0
        %v647 = vadd.f32 %v485, %v646
        %v648 = vpop.f32.mrb[0].mxu0
        %v649 = vadd.f32 %v490, %v648
        %v650 = vpop.f32.mrb[0].mxu0
        %v651 = vadd.f32 %v490, %v650
        %652 = vdwg.mxu0
        %v653 = vmax.f32 %v575, 0.0
        %v654 = vmax.f32 %v577, 0.0
        %v655 = vmax.f32 %v579, 0.0
        %v656 = vmax.f32 %v581, 0.0
        %v657 = vmax.f32 %v585, 0.0
        %v658 = vmax.f32 %v587, 0.0
        %v659 = vmax.f32 %v589, 0.0
        %v660 = vmax.f32 %v591, 0.0
        %v661 = vmax.f32 %v595, 0.0
        %v662 = vmax.f32 %v597, 0.0
        %v663 = vmax.f32 %v599, 0.0
        %v664 = vmax.f32 %v601, 0.0
        %v665 = vmax.f32 %v605, 0.0
        %v666 = vmax.f32 %v607, 0.0
        %v667 = vmax.f32 %v609, 0.0
        %v668 = vmax.f32 %v611, 0.0
        %v669 = vmax.f32 %v615, 0.0
        %v670 = vmax.f32 %v617, 0.0
        %v671 = vmax.f32 %v619, 0.0
        %v672 = vmax.f32 %v621, 0.0
        %v673 = vmax.f32 %v625, 0.0
        %v674 = vmax.f32 %v627, 0.0
        %v675 = vmax.f32 %v629, 0.0
        %v676 = vmax.f32 %v631, 0.0
        %v677 = vmax.f32 %v635, 0.0
        %v678 = vmax.f32 %v637, 0.0
        %v679 = vmax.f32 %v639, 0.0
        %v680 = vmax.f32 %v641, 0.0
        %v681 = vmax.f32 %v645, 0.0
        %v682 = vmax.f32 %v647, 0.0
        %v683 = vmax.f32 %v649, 0.0
        %v684 = vmax.f32 %v651, 0.0
        %s685 = scalar_lea.vmem %s1, 64
        %v686 = vld [vmem:[%s685] sm:$0xf]
        %v687 = vld [vmem:[%s685 + $0x4] sm:$0xf]
        %v688 = vld [vmem:[%s685 + $0x8] sm:$0xf]
        %v689 = vld [vmem:[%s685 + $0xc] sm:$0xf]
        %v690 = vld [vmem:[%s685 + $0x10] sm:$0xf]
        %v691 = vld [vmem:[%s685 + $0x14] sm:$0xf]
        %v692 = vld [vmem:[%s685 + $0x18] sm:$0xf]
        %v693 = vld [vmem:[%s685 + $0x1c] sm:$0xf]
        %v694 = vld [vmem:[%s685 + $0x20] sm:$0xf]
        %v695 = vld [vmem:[%s685 + $0x24] sm:$0xf]
        %v696 = vld [vmem:[%s685 + $0x28] sm:$0xf]
        %v697 = vld [vmem:[%s685 + $0x2c] sm:$0xf]
        %v698 = vld [vmem:[%s685 + $0x30] sm:$0xf]
        %v699 = vld [vmem:[%s685 + $0x34] sm:$0xf]
        %v700 = vld [vmem:[%s685 + $0x38] sm:$0xf]
        %v701 = vld [vmem:[%s685 + $0x3c] sm:$0xf]
        %v702 = vpack.c.bf16 %v655, %v653
        %v703 = vpack.c.bf16 %v656, %v654
        %v704 = vpack.c.bf16 %v659, %v657
        %v705 = vpack.c.bf16 %v660, %v658
        %v706 = vpack.c.bf16 %v663, %v661
        %v707 = vpack.c.bf16 %v664, %v662
        %v708 = vpack.c.bf16 %v667, %v665
        %v709 = vpack.c.bf16 %v668, %v666
        %v710 = vpack.c.bf16 %v671, %v669
        %v711 = vpack.c.bf16 %v672, %v670
        %v712 = vpack.c.bf16 %v675, %v673
        %v713 = vpack.c.bf16 %v676, %v674
        %v714 = vpack.c.bf16 %v679, %v677
        %v715 = vpack.c.bf16 %v680, %v678
        %v716 = vpack.c.bf16 %v683, %v681
        %v717 = vpack.c.bf16 %v684, %v682
        %s718 = scalar_lea.vmem %s2, 128
        %v719 = vld [vmem:[%s718] sm:$0xff]
        %v720 = vld [vmem:[%s718 + $0x8] sm:$0xff]
        %v721 = vld [vmem:[%s718 + $0x10] sm:$0xff]
        %v722 = vld [vmem:[%s718 + $0x18] sm:$0xff]
        %v723 = vld [vmem:[%s718 + $0x20] sm:$0xff]
        %v724 = vld [vmem:[%s718 + $0x28] sm:$0xff]
        %v725 = vld [vmem:[%s718 + $0x30] sm:$0xff]
        %v726 = vld [vmem:[%s718 + $0x38] sm:$0xff]
        %v727 = vld [vmem:[%s718 + $0x40] sm:$0xff]
        %v728 = vld [vmem:[%s718 + $0x48] sm:$0xff]
        %v729 = vld [vmem:[%s718 + $0x50] sm:$0xff]
        %v730 = vld [vmem:[%s718 + $0x58] sm:$0xff]
        %v731 = vld [vmem:[%s718 + $0x60] sm:$0xff]
        %v732 = vld [vmem:[%s718 + $0x68] sm:$0xff]
        %v733 = vld [vmem:[%s718 + $0x70] sm:$0xff]
        %v734 = vld [vmem:[%s718 + $0x78] sm:$0xff]
        %736 = vset.pattern.permute.xlu0 0
        %737 = vperm.xlu0 %736, %v719
        %v738 = vpop.permute.xlu0 %737
        %741 = vset.pattern.permute.xlu0 0
        %742 = vperm.xlu0 %741, %v720
        %v743 = vpop.permute.xlu0 %742
        %746 = vset.pattern.permute.xlu0 0
        %747 = vperm.xlu0 %746, %v721
        %v748 = vpop.permute.xlu0 %747
        %751 = vset.pattern.permute.xlu0 0
        %752 = vperm.xlu0 %751, %v722
        %v753 = vpop.permute.xlu0 %752
        %756 = vset.pattern.permute.xlu0 0
        %757 = vperm.xlu0 %756, %v723
        %v758 = vpop.permute.xlu0 %757
        %761 = vset.pattern.permute.xlu0 0
        %762 = vperm.xlu0 %761, %v724
        %v763 = vpop.permute.xlu0 %762
        %766 = vset.pattern.permute.xlu0 0
        %767 = vperm.xlu0 %766, %v725
        %v768 = vpop.permute.xlu0 %767
        %771 = vset.pattern.permute.xlu0 0
        %772 = vperm.xlu0 %771, %v726
        %v773 = vpop.permute.xlu0 %772
        %776 = vset.pattern.permute.xlu0 0
        %777 = vperm.xlu0 %776, %v727
        %v778 = vpop.permute.xlu0 %777
        %781 = vset.pattern.permute.xlu0 0
        %782 = vperm.xlu0 %781, %v728
        %v783 = vpop.permute.xlu0 %782
        %786 = vset.pattern.permute.xlu0 0
        %787 = vperm.xlu0 %786, %v729
        %v788 = vpop.permute.xlu0 %787
        %791 = vset.pattern.permute.xlu0 0
        %792 = vperm.xlu0 %791, %v730
        %v793 = vpop.permute.xlu0 %792
        %796 = vset.pattern.permute.xlu0 0
        %797 = vperm.xlu0 %796, %v731
        %v798 = vpop.permute.xlu0 %797
        %801 = vset.pattern.permute.xlu0 0
        %802 = vperm.xlu0 %801, %v732
        %v803 = vpop.permute.xlu0 %802
        %806 = vset.pattern.permute.xlu0 0
        %807 = vperm.xlu0 %806, %v733
        %v808 = vpop.permute.xlu0 %807
        %811 = vset.pattern.permute.xlu0 0
        %812 = vperm.xlu0 %811, %v734
        %v813 = vpop.permute.xlu0 %812
        %v831 = vunpack.c.l.b16 %v686
        %v832 = vunpack.c.l.b16 %v687
        %v833 = vunpack.c.l.b16 %v688
        %v834 = vunpack.c.l.b16 %v689
        %v835 = vunpack.c.l.b16 %v690
        %v836 = vunpack.c.l.b16 %v691
        %v837 = vunpack.c.l.b16 %v692
        %v838 = vunpack.c.l.b16 %v693
        %v839 = vunpack.c.l.b16 %v694
        %v840 = vunpack.c.l.b16 %v695
        %v841 = vunpack.c.l.b16 %v696
        %v842 = vunpack.c.l.b16 %v697
        %v843 = vunpack.c.l.b16 %v698
        %v844 = vunpack.c.l.b16 %v699
        %v845 = vunpack.c.l.b16 %v700
        %v846 = vunpack.c.l.b16 %v701
        %v847 = vpack.c.b16 %v832, %v831
        %v848 = vpack.c.b16 %v834, %v833
        %v849 = vpack.c.b16 %v836, %v835
        %v850 = vpack.c.b16 %v838, %v837
        %v851 = vpack.c.b16 %v840, %v839
        %v852 = vpack.c.b16 %v842, %v841
        %v853 = vpack.c.b16 %v844, %v843
        %v854 = vpack.c.b16 %v846, %v845
        %863 = vmatprep.subr.bf16.mxu0 %v703
        %864 = vmatpush1.bf16.msra.mxu0 %v702
        %865 = vmatprep.subr.bf16.mxu0 %v705
        %866 = vmatpush1.bf16.msra.mxu0 %v704
        %867 = vmatprep.subr.bf16.mxu0 %v707
        %868 = vmatpush1.bf16.msra.mxu0 %v706
        %869 = vmatprep.subr.bf16.mxu0 %v709
        %870 = vmatpush1.bf16.msra.mxu0 %v708
        %871 = vmatprep.subr.bf16.mxu0 %v711
        %872 = vmatpush1.bf16.msra.mxu0 %v710
        %873 = vmatprep.subr.bf16.mxu0 %v713
        %874 = vmatpush1.bf16.msra.mxu0 %v712
        %875 = vmatprep.subr.bf16.mxu0 %v715
        %876 = vmatpush1.bf16.msra.mxu0 %v714
        %877 = vmatprep.subr.bf16.mxu0 %v717
        %878 = vmatpush1.bf16.msra.mxu0 %v716
        %879 = vmatprep.subr.bf16.mxu0 0
        %880 = vmatpush1.bf16.msra.mxu0 0
        %881 = vmatprep.subr.bf16.mxu0 0
        %882 = vmatpush1.bf16.msra.mxu0 0
        %883 = vmatprep.subr.bf16.mxu0 0
        %884 = vmatpush1.bf16.msra.mxu0 0
        %885 = vmatprep.subr.bf16.mxu0 0
        %886 = vmatpush1.bf16.msra.mxu0 0
        %887 = vmatprep.subr.bf16.mxu0 0
        %888 = vmatpush1.bf16.msra.mxu0 0
        %889 = vmatprep.subr.bf16.mxu0 0
        %890 = vmatpush1.bf16.msra.mxu0 0
        %891 = vmatprep.subr.bf16.mxu0 0
        %892 = vmatpush1.bf16.msra.mxu0 0
        %893 = vmatprep.subr.bf16.mxu0 0
        %894 = vmatpush1.bf16.msra.mxu0 0
        %895 = vmatprep.mubr.bf16.mxu0 0
        %896 = vmatmul.mubr.bf16.gmra.mrb[0].mxu0 %v847
        %v897 = vpop.f32.mrb[0].mxu0
        %v898 = vadd.f32 %v738, %v897
        %v899 = vpop.f32.mrb[0].mxu0
        %v900 = vadd.f32 %v738, %v899
        %v901 = vpop.f32.mrb[0].mxu0
        %v902 = vadd.f32 %v743, %v901
        %v903 = vpop.f32.mrb[0].mxu0
        %v904 = vadd.f32 %v743, %v903
        %905 = vmatprep.mubr.bf16.mxu0 0
        %906 = vmatmul.mubr.bf16.gmra.mrb[0].mxu0 %v848
        %v907 = vpop.f32.mrb[0].mxu0
        %v908 = vadd.f32 %v748, %v907
        %v909 = vpop.f32.mrb[0].mxu0
        %v910 = vadd.f32 %v748, %v909
        %v911 = vpop.f32.mrb[0].mxu0
        %v912 = vadd.f32 %v753, %v911
        %v913 = vpop.f32.mrb[0].mxu0
        %v914 = vadd.f32 %v753, %v913
        %915 = vmatprep.mubr.bf16.mxu0 0
        %916 = vmatmul.mubr.bf16.gmra.mrb[0].mxu0 %v849
        %v917 = vpop.f32.mrb[0].mxu0
        %v918 = vadd.f32 %v758, %v917
        %v919 = vpop.f32.mrb[0].mxu0
        %v920 = vadd.f32 %v758, %v919
        %v921 = vpop.f32.mrb[0].mxu0
        %v922 = vadd.f32 %v763, %v921
        %v923 = vpop.f32.mrb[0].mxu0
        %v924 = vadd.f32 %v763, %v923
        %925 = vmatprep.mubr.bf16.mxu0 0
        %926 = vmatmul.mubr.bf16.gmra.mrb[0].mxu0 %v850
        %v927 = vpop.f32.mrb[0].mxu0
        %v928 = vadd.f32 %v768, %v927
        %v929 = vpop.f32.mrb[0].mxu0
        %v930 = vadd.f32 %v768, %v929
        %v931 = vpop.f32.mrb[0].mxu0
        %v932 = vadd.f32 %v773, %v931
        %v933 = vpop.f32.mrb[0].mxu0
        %v934 = vadd.f32 %v773, %v933
        %935 = vmatprep.mubr.bf16.mxu0 0
        %936 = vmatmul.mubr.bf16.gmra.mrb[0].mxu0 %v851
        %v937 = vpop.f32.mrb[0].mxu0
        %v938 = vadd.f32 %v778, %v937
        %v939 = vpop.f32.mrb[0].mxu0
        %v940 = vadd.f32 %v778, %v939
        %v941 = vpop.f32.mrb[0].mxu0
        %v942 = vadd.f32 %v783, %v941
        %v943 = vpop.f32.mrb[0].mxu0
        %v944 = vadd.f32 %v783, %v943
        %945 = vmatprep.mubr.bf16.mxu0 0
        %946 = vmatmul.mubr.bf16.gmra.mrb[0].mxu0 %v852
        %v947 = vpop.f32.mrb[0].mxu0
        %v948 = vadd.f32 %v788, %v947
        %v949 = vpop.f32.mrb[0].mxu0
        %v950 = vadd.f32 %v788, %v949
        %v951 = vpop.f32.mrb[0].mxu0
        %v952 = vadd.f32 %v793, %v951
        %v953 = vpop.f32.mrb[0].mxu0
        %v954 = vadd.f32 %v793, %v953
        %955 = vmatprep.mubr.bf16.mxu0 0
        %956 = vmatmul.mubr.bf16.gmra.mrb[0].mxu0 %v853
        %v957 = vpop.f32.mrb[0].mxu0
        %v958 = vadd.f32 %v798, %v957
        %v959 = vpop.f32.mrb[0].mxu0
        %v960 = vadd.f32 %v798, %v959
        %v961 = vpop.f32.mrb[0].mxu0
        %v962 = vadd.f32 %v803, %v961
        %v963 = vpop.f32.mrb[0].mxu0
        %v964 = vadd.f32 %v803, %v963
        %965 = vmatprep.mubr.bf16.mxu0 0
        %966 = vmatmul.mubr.bf16.gmra.mrb[0].mxu0 %v854
        %v967 = vpop.f32.mrb[0].mxu0
        %v968 = vadd.f32 %v808, %v967
        %v969 = vpop.f32.mrb[0].mxu0
        %v970 = vadd.f32 %v808, %v969
        %v971 = vpop.f32.mrb[0].mxu0
        %v972 = vadd.f32 %v813, %v971
        %v973 = vpop.f32.mrb[0].mxu0
        %v974 = vadd.f32 %v813, %v973
        %975 = vdwg.mxu0
        %v976 = vmax.f32 %v898, 0.0
        %v977 = vmax.f32 %v900, 0.0
        %v978 = vmax.f32 %v902, 0.0
        %v979 = vmax.f32 %v904, 0.0
        %v980 = vmax.f32 %v908, 0.0
        %v981 = vmax.f32 %v910, 0.0
        %v982 = vmax.f32 %v912, 0.0
        %v983 = vmax.f32 %v914, 0.0
        %v984 = vmax.f32 %v918, 0.0
        %v985 = vmax.f32 %v920, 0.0
        %v986 = vmax.f32 %v922, 0.0
        %v987 = vmax.f32 %v924, 0.0
        %v988 = vmax.f32 %v928, 0.0
        %v989 = vmax.f32 %v930, 0.0
        %v990 = vmax.f32 %v932, 0.0
        %v991 = vmax.f32 %v934, 0.0
        %v992 = vmax.f32 %v938, 0.0
        %v993 = vmax.f32 %v940, 0.0
        %v994 = vmax.f32 %v942, 0.0
        %v995 = vmax.f32 %v944, 0.0
        %v996 = vmax.f32 %v948, 0.0
        %v997 = vmax.f32 %v950, 0.0
        %v998 = vmax.f32 %v952, 0.0
        %v999 = vmax.f32 %v954, 0.0
        %v1000 = vmax.f32 %v958, 0.0
        %v1001 = vmax.f32 %v960, 0.0
        %v1002 = vmax.f32 %v962, 0.0
        %v1003 = vmax.f32 %v964, 0.0
        %v1004 = vmax.f32 %v968, 0.0
        %v1005 = vmax.f32 %v970, 0.0
        %v1006 = vmax.f32 %v972, 0.0
        %v1007 = vmax.f32 %v974, 0.0
        %s1008 = scalar_lea.vmem %s1, 128
        %v1009 = vld [vmem:[%s1008] sm:$0xf]
        %v1010 = vld [vmem:[%s1008 + $0x4] sm:$0xf]
        %v1011 = vld [vmem:[%s1008 + $0x8] sm:$0xf]
        %v1012 = vld [vmem:[%s1008 + $0xc] sm:$0xf]
        %v1013 = vld [vmem:[%s1008 + $0x10] sm:$0xf]
        %v1014 = vld [vmem:[%s1008 + $0x14] sm:$0xf]
        %v1015 = vld [vmem:[%s1008 + $0x18] sm:$0xf]
        %v1016 = vld [vmem:[%s1008 + $0x1c] sm:$0xf]
        %v1017 = vld [vmem:[%s1008 + $0x20] sm:$0xf]
        %v1018 = vld [vmem:[%s1008 + $0x24] sm:$0xf]
        %v1019 = vld [vmem:[%s1008 + $0x28] sm:$0xf]
        %v1020 = vld [vmem:[%s1008 + $0x2c] sm:$0xf]
        %v1021 = vld [vmem:[%s1008 + $0x30] sm:$0xf]
        %v1022 = vld [vmem:[%s1008 + $0x34] sm:$0xf]
        %v1023 = vld [vmem:[%s1008 + $0x38] sm:$0xf]
        %v1024 = vld [vmem:[%s1008 + $0x3c] sm:$0xf]
        %v1025 = vpack.c.bf16 %v978, %v976
        %v1026 = vpack.c.bf16 %v979, %v977
        %v1027 = vpack.c.bf16 %v982, %v980
        %v1028 = vpack.c.bf16 %v983, %v981
        %v1029 = vpack.c.bf16 %v986, %v984
        %v1030 = vpack.c.bf16 %v987, %v985
        %v1031 = vpack.c.bf16 %v990, %v988
        %v1032 = vpack.c.bf16 %v991, %v989
        %v1033 = vpack.c.bf16 %v994, %v992
        %v1034 = vpack.c.bf16 %v995, %v993
        %v1035 = vpack.c.bf16 %v998, %v996
        %v1036 = vpack.c.bf16 %v999, %v997
        %v1037 = vpack.c.bf16 %v1002, %v1000
        %v1038 = vpack.c.bf16 %v1003, %v1001
        %v1039 = vpack.c.bf16 %v1006, %v1004
        %v1040 = vpack.c.bf16 %v1007, %v1005
        %s1041 = scalar_lea.vmem %s2, 256
        %v1042 = vld [vmem:[%s1041] sm:$0xff]
        %v1043 = vld [vmem:[%s1041 + $0x8] sm:$0xff]
        %v1044 = vld [vmem:[%s1041 + $0x10] sm:$0xff]
        %v1045 = vld [vmem:[%s1041 + $0x18] sm:$0xff]
        %v1046 = vld [vmem:[%s1041 + $0x20] sm:$0xff]
        %v1047 = vld [vmem:[%s1041 + $0x28] sm:$0xff]
        %v1048 = vld [vmem:[%s1041 + $0x30] sm:$0xff]
        %v1049 = vld [vmem:[%s1041 + $0x38] sm:$0xff]
        %v1050 = vld [vmem:[%s1041 + $0x40] sm:$0xff]
        %v1051 = vld [vmem:[%s1041 + $0x48] sm:$0xff]
        %v1052 = vld [vmem:[%s1041 + $0x50] sm:$0xff]
        %v1053 = vld [vmem:[%s1041 + $0x58] sm:$0xff]
        %v1054 = vld [vmem:[%s1041 + $0x60] sm:$0xff]
        %v1055 = vld [vmem:[%s1041 + $0x68] sm:$0xff]
        %v1056 = vld [vmem:[%s1041 + $0x70] sm:$0xff]
        %v1057 = vld [vmem:[%s1041 + $0x78] sm:$0xff]
        %1059 = vset.pattern.permute.xlu0 0
        %1060 = vperm.xlu0 %1059, %v1042
        %v1061 = vpop.permute.xlu0 %1060
        %1064 = vset.pattern.permute.xlu0 0
        %1065 = vperm.xlu0 %1064, %v1043
        %v1066 = vpop.permute.xlu0 %1065
        %1069 = vset.pattern.permute.xlu0 0
        %1070 = vperm.xlu0 %1069, %v1044
        %v1071 = vpop.permute.xlu0 %1070
        %1074 = vset.pattern.permute.xlu0 0
        %1075 = vperm.xlu0 %1074, %v1045
        %v1076 = vpop.permute.xlu0 %1075
        %1079 = vset.pattern.permute.xlu0 0
        %1080 = vperm.xlu0 %1079, %v1046
        %v1081 = vpop.permute.xlu0 %1080
        %1084 = vset.pattern.permute.xlu0 0
        %1085 = vperm.xlu0 %1084, %v1047
        %v1086 = vpop.permute.xlu0 %1085
        %1089 = vset.pattern.permute.xlu0 0
        %1090 = vperm.xlu0 %1089, %v1048
        %v1091 = vpop.permute.xlu0 %1090
        %1094 = vset.pattern.permute.xlu0 0
        %1095 = vperm.xlu0 %1094, %v1049
        %v1096 = vpop.permute.xlu0 %1095
        %1099 = vset.pattern.permute.xlu0 0
        %1100 = vperm.xlu0 %1099, %v1050
        %v1101 = vpop.permute.xlu0 %1100
        %1104 = vset.pattern.permute.xlu0 0
        %1105 = vperm.xlu0 %1104, %v1051
        %v1106 = vpop.permute.xlu0 %1105
        %1109 = vset.pattern.permute.xlu0 0
        %1110 = vperm.xlu0 %1109, %v1052
        %v1111 = vpop.permute.xlu0 %1110
        %1114 = vset.pattern.permute.xlu0 0
        %1115 = vperm.xlu0 %1114, %v1053
        %v1116 = vpop.permute.xlu0 %1115
        %1119 = vset.pattern.permute.xlu0 0
        %1120 = vperm.xlu0 %1119, %v1054
        %v1121 = vpop.permute.xlu0 %1120
        %1124 = vset.pattern.permute.xlu0 0
        %1125 = vperm.xlu0 %1124, %v1055
        %v1126 = vpop.permute.xlu0 %1125
        %1129 = vset.pattern.permute.xlu0 0
        %1130 = vperm.xlu0 %1129, %v1056
        %v1131 = vpop.permute.xlu0 %1130
        %1134 = vset.pattern.permute.xlu0 0
        %1135 = vperm.xlu0 %1134, %v1057
        %v1136 = vpop.permute.xlu0 %1135
        %v1154 = vunpack.c.l.b16 %v1009
        %v1155 = vunpack.c.l.b16 %v1010
        %v1156 = vunpack.c.l.b16 %v1011
        %v1157 = vunpack.c.l.b16 %v1012
        %v1158 = vunpack.c.l.b16 %v1013
        %v1159 = vunpack.c.l.b16 %v1014
        %v1160 = vunpack.c.l.b16 %v1015
        %v1161 = vunpack.c.l.b16 %v1016
        %v1162 = vunpack.c.l.b16 %v1017
        %v1163 = vunpack.c.l.b16 %v1018
        %v1164 = vunpack.c.l.b16 %v1019
        %v1165 = vunpack.c.l.b16 %v1020
        %v1166 = vunpack.c.l.b16 %v1021
        %v1167 = vunpack.c.l.b16 %v1022
        %v1168 = vunpack.c.l.b16 %v1023
        %v1169 = vunpack.c.l.b16 %v1024
        %v1170 = vpack.c.b16 %v1155, %v1154
        %v1171 = vpack.c.b16 %v1157, %v1156
        %v1172 = vpack.c.b16 %v1159, %v1158
        %v1173 = vpack.c.b16 %v1161, %v1160
        %v1174 = vpack.c.b16 %v1163, %v1162
        %v1175 = vpack.c.b16 %v1165, %v1164
        %v1176 = vpack.c.b16 %v1167, %v1166
        %v1177 = vpack.c.b16 %v1169, %v1168
        %1186 = vmatprep.subr.bf16.mxu0 %v1026
        %1187 = vmatpush1.bf16.msra.mxu0 %v1025
        %1188 = vmatprep.subr.bf16.mxu0 %v1028
        %1189 = vmatpush1.bf16.msra.mxu0 %v1027
        %1190 = vmatprep.subr.bf16.mxu0 %v1030
        %1191 = vmatpush1.bf16.msra.mxu0 %v1029
        %1192 = vmatprep.subr.bf16.mxu0 %v1032
        %1193 = vmatpush1.bf16.msra.mxu0 %v1031
        %1194 = vmatprep.subr.bf16.mxu0 %v1034
        %1195 = vmatpush1.bf16.msra.mxu0 %v1033
        %1196 = vmatprep.subr.bf16.mxu0 %v1036
        %1197 = vmatpush1.bf16.msra.mxu0 %v1035
        %1198 = vmatprep.subr.bf16.mxu0 %v1038
        %1199 = vmatpush1.bf16.msra.mxu0 %v1037
        %1200 = vmatprep.subr.bf16.mxu0 %v1040
        %1201 = vmatpush1.bf16.msra.mxu0 %v1039
        %1202 = vmatprep.subr.bf16.mxu0 0
        %1203 = vmatpush1.bf16.msra.mxu0 0
        %1204 = vmatprep.subr.bf16.mxu0 0
        %1205 = vmatpush1.bf16.msra.mxu0 0
        %1206 = vmatprep.subr.bf16.mxu0 0
        %1207 = vmatpush1.bf16.msra.mxu0 0
        %1208 = vmatprep.subr.bf16.mxu0 0
        %1209 = vmatpush1.bf16.msra.mxu0 0
        %1210 = vmatprep.subr.bf16.mxu0 0
        %1211 = vmatpush1.bf16.msra.mxu0 0
        %1212 = vmatprep.subr.bf16.mxu0 0
        %1213 = vmatpush1.bf16.msra.mxu0 0
        %1214 = vmatprep.subr.bf16.mxu0 0
        %1215 = vmatpush1.bf16.msra.mxu0 0
        %1216 = vmatprep.subr.bf16.mxu0 0
        %1217 = vmatpush1.bf16.msra.mxu0 0
        %1218 = vmatprep.mubr.bf16.mxu0 0
        %1219 = vmatmul.mubr.bf16.gmra.mrb[0].mxu0 %v1170
        %v1220 = vpop.f32.mrb[0].mxu0
        %v1221 = vadd.f32 %v1061, %v1220
        %v1222 = vpop.f32.mrb[0].mxu0
        %v1223 = vadd.f32 %v1061, %v1222
        %v1224 = vpop.f32.mrb[0].mxu0
        %v1225 = vadd.f32 %v1066, %v1224
        %v1226 = vpop.f32.mrb[0].mxu0
        %v1227 = vadd.f32 %v1066, %v1226
        %1228 = vmatprep.mubr.bf16.mxu0 0
        %1229 = vmatmul.mubr.bf16.gmra.mrb[0].mxu0 %v1171
        %v1230 = vpop.f32.mrb[0].mxu0
        %v1231 = vadd.f32 %v1071, %v1230
        %v1232 = vpop.f32.mrb[0].mxu0
        %v1233 = vadd.f32 %v1071, %v1232
        %v1234 = vpop.f32.mrb[0].mxu0
        %v1235 = vadd.f32 %v1076, %v1234
        %v1236 = vpop.f32.mrb[0].mxu0
        %v1237 = vadd.f32 %v1076, %v1236
        %1238 = vmatprep.mubr.bf16.mxu0 0
        %1239 = vmatmul.mubr.bf16.gmra.mrb[0].mxu0 %v1172
        %v1240 = vpop.f32.mrb[0].mxu0
        %v1241 = vadd.f32 %v1081, %v1240
        %v1242 = vpop.f32.mrb[0].mxu0
        %v1243 = vadd.f32 %v1081, %v1242
        %v1244 = vpop.f32.mrb[0].mxu0
        %v1245 = vadd.f32 %v1086, %v1244
        %v1246 = vpop.f32.mrb[0].mxu0
        %v1247 = vadd.f32 %v1086, %v1246
        %1248 = vmatprep.mubr.bf16.mxu0 0
        %1249 = vmatmul.mubr.bf16.gmra.mrb[0].mxu0 %v1173
        %v1250 = vpop.f32.mrb[0].mxu0
        %v1251 = vadd.f32 %v1091, %v1250
        %v1252 = vpop.f32.mrb[0].mxu0
        %v1253 = vadd.f32 %v1091, %v1252
        %v1254 = vpop.f32.mrb[0].mxu0
        %v1255 = vadd.f32 %v1096, %v1254
        %v1256 = vpop.f32.mrb[0].mxu0
        %v1257 = vadd.f32 %v1096, %v1256
        %1258 = vmatprep.mubr.bf16.mxu0 0
        %1259 = vmatmul.mubr.bf16.gmra.mrb[0].mxu0 %v1174
        %v1260 = vpop.f32.mrb[0].mxu0
        %v1261 = vadd.f32 %v1101, %v1260
        %v1262 = vpop.f32.mrb[0].mxu0
        %v1263 = vadd.f32 %v1101, %v1262
        %v1264 = vpop.f32.mrb[0].mxu0
        %v1265 = vadd.f32 %v1106, %v1264
        %v1266 = vpop.f32.mrb[0].mxu0
        %v1267 = vadd.f32 %v1106, %v1266
        %1268 = vmatprep.mubr.bf16.mxu0 0
        %1269 = vmatmul.mubr.bf16.gmra.mrb[0].mxu0 %v1175
        %v1270 = vpop.f32.mrb[0].mxu0
        %v1271 = vadd.f32 %v1111, %v1270
        %v1272 = vpop.f32.mrb[0].mxu0
        %v1273 = vadd.f32 %v1111, %v1272
        %v1274 = vpop.f32.mrb[0].mxu0
        %v1275 = vadd.f32 %v1116, %v1274
        %v1276 = vpop.f32.mrb[0].mxu0
        %v1277 = vadd.f32 %v1116, %v1276
        %1278 = vmatprep.mubr.bf16.mxu0 0
        %1279 = vmatmul.mubr.bf16.gmra.mrb[0].mxu0 %v1176
        %v1280 = vpop.f32.mrb[0].mxu0
        %v1281 = vadd.f32 %v1121, %v1280
        %v1282 = vpop.f32.mrb[0].mxu0
        %v1283 = vadd.f32 %v1121, %v1282
        %v1284 = vpop.f32.mrb[0].mxu0
        %v1285 = vadd.f32 %v1126, %v1284
        %v1286 = vpop.f32.mrb[0].mxu0
        %v1287 = vadd.f32 %v1126, %v1286
        %1288 = vmatprep.mubr.bf16.mxu0 0
        %1289 = vmatmul.mubr.bf16.gmra.mrb[0].mxu0 %v1177
        %v1290 = vpop.f32.mrb[0].mxu0
        %v1291 = vadd.f32 %v1131, %v1290
        %v1292 = vpop.f32.mrb[0].mxu0
        %v1293 = vadd.f32 %v1131, %v1292
        %v1294 = vpop.f32.mrb[0].mxu0
        %v1295 = vadd.f32 %v1136, %v1294
        %v1296 = vpop.f32.mrb[0].mxu0
        %v1297 = vadd.f32 %v1136, %v1296
        %1298 = vdwg.mxu0
        %v1299 = vmax.f32 %v1221, 0.0
        %v1300 = vmax.f32 %v1223, 0.0
        %v1301 = vmax.f32 %v1225, 0.0
        %v1302 = vmax.f32 %v1227, 0.0
        %v1303 = vmax.f32 %v1231, 0.0
        %v1304 = vmax.f32 %v1233, 0.0
        %v1305 = vmax.f32 %v1235, 0.0
        %v1306 = vmax.f32 %v1237, 0.0
        %v1307 = vmax.f32 %v1241, 0.0
        %v1308 = vmax.f32 %v1243, 0.0
        %v1309 = vmax.f32 %v1245, 0.0
        %v1310 = vmax.f32 %v1247, 0.0
        %v1311 = vmax.f32 %v1251, 0.0
        %v1312 = vmax.f32 %v1253, 0.0
        %v1313 = vmax.f32 %v1255, 0.0
        %v1314 = vmax.f32 %v1257, 0.0
        %v1315 = vmax.f32 %v1261, 0.0
        %v1316 = vmax.f32 %v1263, 0.0
        %v1317 = vmax.f32 %v1265, 0.0
        %v1318 = vmax.f32 %v1267, 0.0
        %v1319 = vmax.f32 %v1271, 0.0
        %v1320 = vmax.f32 %v1273, 0.0
        %v1321 = vmax.f32 %v1275, 0.0
        %v1322 = vmax.f32 %v1277, 0.0
        %v1323 = vmax.f32 %v1281, 0.0
        %v1324 = vmax.f32 %v1283, 0.0
        %v1325 = vmax.f32 %v1285, 0.0
        %v1326 = vmax.f32 %v1287, 0.0
        %v1327 = vmax.f32 %v1291, 0.0
        %v1328 = vmax.f32 %v1293, 0.0
        %v1329 = vmax.f32 %v1295, 0.0
        %v1330 = vmax.f32 %v1297, 0.0
        %s1331 = scalar_lea.vmem %s1, 192
        %v1332 = vld [vmem:[%s1331] sm:$0xf]
        %v1333 = vld [vmem:[%s1331 + $0x4] sm:$0xf]
        %v1334 = vld [vmem:[%s1331 + $0x8] sm:$0xf]
        %v1335 = vld [vmem:[%s1331 + $0xc] sm:$0xf]
        %v1336 = vld [vmem:[%s1331 + $0x10] sm:$0xf]
        %v1337 = vld [vmem:[%s1331 + $0x14] sm:$0xf]
        %v1338 = vld [vmem:[%s1331 + $0x18] sm:$0xf]
        %v1339 = vld [vmem:[%s1331 + $0x1c] sm:$0xf]
        %v1340 = vld [vmem:[%s1331 + $0x20] sm:$0xf]
        %v1341 = vld [vmem:[%s1331 + $0x24] sm:$0xf]
        %v1342 = vld [vmem:[%s1331 + $0x28] sm:$0xf]
        %v1343 = vld [vmem:[%s1331 + $0x2c] sm:$0xf]
        %v1344 = vld [vmem:[%s1331 + $0x30] sm:$0xf]
        %v1345 = vld [vmem:[%s1331 + $0x34] sm:$0xf]
        %v1346 = vld [vmem:[%s1331 + $0x38] sm:$0xf]
        %v1347 = vld [vmem:[%s1331 + $0x3c] sm:$0xf]
        %v1348 = vpack.c.bf16 %v1301, %v1299
        %v1349 = vpack.c.bf16 %v1302, %v1300
        %v1350 = vpack.c.bf16 %v1305, %v1303
        %v1351 = vpack.c.bf16 %v1306, %v1304
        %v1352 = vpack.c.bf16 %v1309, %v1307
        %v1353 = vpack.c.bf16 %v1310, %v1308
        %v1354 = vpack.c.bf16 %v1313, %v1311
        %v1355 = vpack.c.bf16 %v1314, %v1312
        %v1356 = vpack.c.bf16 %v1317, %v1315
        %v1357 = vpack.c.bf16 %v1318, %v1316
        %v1358 = vpack.c.bf16 %v1321, %v1319
        %v1359 = vpack.c.bf16 %v1322, %v1320
        %v1360 = vpack.c.bf16 %v1325, %v1323
        %v1361 = vpack.c.bf16 %v1326, %v1324
        %v1362 = vpack.c.bf16 %v1329, %v1327
        %v1363 = vpack.c.bf16 %v1330, %v1328
        %s1364 = scalar_lea.vmem %s2, 384
        %v1365 = vld [vmem:[%s1364] sm:$0xff]
        %v1366 = vld [vmem:[%s1364 + $0x8] sm:$0xff]
        %v1367 = vld [vmem:[%s1364 + $0x10] sm:$0xff]
        %v1368 = vld [vmem:[%s1364 + $0x18] sm:$0xff]
        %v1369 = vld [vmem:[%s1364 + $0x20] sm:$0xff]
        %v1370 = vld [vmem:[%s1364 + $0x28] sm:$0xff]
        %v1371 = vld [vmem:[%s1364 + $0x30] sm:$0xff]
        %v1372 = vld [vmem:[%s1364 + $0x38] sm:$0xff]
        %v1373 = vld [vmem:[%s1364 + $0x40] sm:$0xff]
        %v1374 = vld [vmem:[%s1364 + $0x48] sm:$0xff]
        %v1375 = vld [vmem:[%s1364 + $0x50] sm:$0xff]
        %v1376 = vld [vmem:[%s1364 + $0x58] sm:$0xff]
        %v1377 = vld [vmem:[%s1364 + $0x60] sm:$0xff]
        %v1378 = vld [vmem:[%s1364 + $0x68] sm:$0xff]
        %v1379 = vld [vmem:[%s1364 + $0x70] sm:$0xff]
        %v1380 = vld [vmem:[%s1364 + $0x78] sm:$0xff]
        %1382 = vset.pattern.permute.xlu0 0
        %1383 = vperm.xlu0 %1382, %v1365
        %v1384 = vpop.permute.xlu0 %1383
        %1387 = vset.pattern.permute.xlu0 0
        %1388 = vperm.xlu0 %1387, %v1366
        %v1389 = vpop.permute.xlu0 %1388
        %1392 = vset.pattern.permute.xlu0 0
        %1393 = vperm.xlu0 %1392, %v1367
        %v1394 = vpop.permute.xlu0 %1393
        %1397 = vset.pattern.permute.xlu0 0
        %1398 = vperm.xlu0 %1397, %v1368
        %v1399 = vpop.permute.xlu0 %1398
        %1402 = vset.pattern.permute.xlu0 0
        %1403 = vperm.xlu0 %1402, %v1369
        %v1404 = vpop.permute.xlu0 %1403
        %1407 = vset.pattern.permute.xlu0 0
        %1408 = vperm.xlu0 %1407, %v1370
        %v1409 = vpop.permute.xlu0 %1408
        %1412 = vset.pattern.permute.xlu0 0
        %1413 = vperm.xlu0 %1412, %v1371
        %v1414 = vpop.permute.xlu0 %1413
        %1417 = vset.pattern.permute.xlu0 0
        %1418 = vperm.xlu0 %1417, %v1372
        %v1419 = vpop.permute.xlu0 %1418
        %1422 = vset.pattern.permute.xlu0 0
        %1423 = vperm.xlu0 %1422, %v1373
        %v1424 = vpop.permute.xlu0 %1423
        %1427 = vset.pattern.permute.xlu0 0
        %1428 = vperm.xlu0 %1427, %v1374
        %v1429 = vpop.permute.xlu0 %1428
        %1432 = vset.pattern.permute.xlu0 0
        %1433 = vperm.xlu0 %1432, %v1375
        %v1434 = vpop.permute.xlu0 %1433
        %1437 = vset.pattern.permute.xlu0 0
        %1438 = vperm.xlu0 %1437, %v1376
        %v1439 = vpop.permute.xlu0 %1438
        %1442 = vset.pattern.permute.xlu0 0
        %1443 = vperm.xlu0 %1442, %v1377
        %v1444 = vpop.permute.xlu0 %1443
        %1447 = vset.pattern.permute.xlu0 0
        %1448 = vperm.xlu0 %1447, %v1378
        %v1449 = vpop.permute.xlu0 %1448
        %1452 = vset.pattern.permute.xlu0 0
        %1453 = vperm.xlu0 %1452, %v1379
        %v1454 = vpop.permute.xlu0 %1453
        %1457 = vset.pattern.permute.xlu0 0
        %1458 = vperm.xlu0 %1457, %v1380
        %v1459 = vpop.permute.xlu0 %1458
        %v1477 = vunpack.c.l.b16 %v1332
        %v1478 = vunpack.c.l.b16 %v1333
        %v1479 = vunpack.c.l.b16 %v1334
        %v1480 = vunpack.c.l.b16 %v1335
        %v1481 = vunpack.c.l.b16 %v1336
        %v1482 = vunpack.c.l.b16 %v1337
        %v1483 = vunpack.c.l.b16 %v1338
        %v1484 = vunpack.c.l.b16 %v1339
        %v1485 = vunpack.c.l.b16 %v1340
        %v1486 = vunpack.c.l.b16 %v1341
        %v1487 = vunpack.c.l.b16 %v1342
        %v1488 = vunpack.c.l.b16 %v1343
        %v1489 = vunpack.c.l.b16 %v1344
        %v1490 = vunpack.c.l.b16 %v1345
        %v1491 = vunpack.c.l.b16 %v1346
        %v1492 = vunpack.c.l.b16 %v1347
        %v1493 = vpack.c.b16 %v1478, %v1477
        %v1494 = vpack.c.b16 %v1480, %v1479
        %v1495 = vpack.c.b16 %v1482, %v1481
        %v1496 = vpack.c.b16 %v1484, %v1483
        %v1497 = vpack.c.b16 %v1486, %v1485
        %v1498 = vpack.c.b16 %v1488, %v1487
        %v1499 = vpack.c.b16 %v1490, %v1489
        %v1500 = vpack.c.b16 %v1492, %v1491
        %1509 = vmatprep.subr.bf16.mxu0 %v1349
        %1510 = vmatpush1.bf16.msra.mxu0 %v1348
        %1511 = vmatprep.subr.bf16.mxu0 %v1351
        %1512 = vmatpush1.bf16.msra.mxu0 %v1350
        %1513 = vmatprep.subr.bf16.mxu0 %v1353
        %1514 = vmatpush1.bf16.msra.mxu0 %v1352
        %1515 = vmatprep.subr.bf16.mxu0 %v1355
        %1516 = vmatpush1.bf16.msra.mxu0 %v1354
        %1517 = vmatprep.subr.bf16.mxu0 %v1357
        %1518 = vmatpush1.bf16.msra.mxu0 %v1356
        %1519 = vmatprep.subr.bf16.mxu0 %v1359
        %1520 = vmatpush1.bf16.msra.mxu0 %v1358
        %1521 = vmatprep.subr.bf16.mxu0 %v1361
        %1522 = vmatpush1.bf16.msra.mxu0 %v1360
        %1523 = vmatprep.subr.bf16.mxu0 %v1363
        %1524 = vmatpush1.bf16.msra.mxu0 %v1362
        %1525 = vmatprep.subr.bf16.mxu0 0
        %1526 = vmatpush1.bf16.msra.mxu0 0
        %1527 = vmatprep.subr.bf16.mxu0 0
        %1528 = vmatpush1.bf16.msra.mxu0 0
        %1529 = vmatprep.subr.bf16.mxu0 0
        %1530 = vmatpush1.bf16.msra.mxu0 0
        %1531 = vmatprep.subr.bf16.mxu0 0
        %1532 = vmatpush1.bf16.msra.mxu0 0
        %1533 = vmatprep.subr.bf16.mxu0 0
        %1534 = vmatpush1.bf16.msra.mxu0 0
        %1535 = vmatprep.subr.bf16.mxu0 0
        %1536 = vmatpush1.bf16.msra.mxu0 0
        %1537 = vmatprep.subr.bf16.mxu0 0
        %1538 = vmatpush1.bf16.msra.mxu0 0
        %1539 = vmatprep.subr.bf16.mxu0 0
        %1540 = vmatpush1.bf16.msra.mxu0 0
        %1541 = vmatprep.mubr.bf16.mxu0 0
        %1542 = vmatmul.mubr.bf16.gmra.mrb[0].mxu0 %v1493
        %v1543 = vpop.f32.mrb[0].mxu0
        %v1544 = vadd.f32 %v1384, %v1543
        %v1545 = vpop.f32.mrb[0].mxu0
        %v1546 = vadd.f32 %v1384, %v1545
        %v1547 = vpop.f32.mrb[0].mxu0
        %v1548 = vadd.f32 %v1389, %v1547
        %v1549 = vpop.f32.mrb[0].mxu0
        %v1550 = vadd.f32 %v1389, %v1549
        %1551 = vmatprep.mubr.bf16.mxu0 0
        %1552 = vmatmul.mubr.bf16.gmra.mrb[0].mxu0 %v1494
        %v1553 = vpop.f32.mrb[0].mxu0
        %v1554 = vadd.f32 %v1394, %v1553
        %v1555 = vpop.f32.mrb[0].mxu0
        %v1556 = vadd.f32 %v1394, %v1555
        %v1557 = vpop.f32.mrb[0].mxu0
        %v1558 = vadd.f32 %v1399, %v1557
        %v1559 = vpop.f32.mrb[0].mxu0
        %v1560 = vadd.f32 %v1399, %v1559
        %1561 = vmatprep.mubr.bf16.mxu0 0
        %1562 = vmatmul.mubr.bf16.gmra.mrb[0].mxu0 %v1495
        %v1563 = vpop.f32.mrb[0].mxu0
        %v1564 = vadd.f32 %v1404, %v1563
        %v1565 = vpop.f32.mrb[0].mxu0
        %v1566 = vadd.f32 %v1404, %v1565
        %v1567 = vpop.f32.mrb[0].mxu0
        %v1568 = vadd.f32 %v1409, %v1567
        %v1569 = vpop.f32.mrb[0].mxu0
        %v1570 = vadd.f32 %v1409, %v1569
        %1571 = vmatprep.mubr.bf16.mxu0 0
        %1572 = vmatmul.mubr.bf16.gmra.mrb[0].mxu0 %v1496
        %v1573 = vpop.f32.mrb[0].mxu0
        %v1574 = vadd.f32 %v1414, %v1573
        %v1575 = vpop.f32.mrb[0].mxu0
        %v1576 = vadd.f32 %v1414, %v1575
        %v1577 = vpop.f32.mrb[0].mxu0
        %v1578 = vadd.f32 %v1419, %v1577
        %v1579 = vpop.f32.mrb[0].mxu0
        %v1580 = vadd.f32 %v1419, %v1579
        %1581 = vmatprep.mubr.bf16.mxu0 0
        %1582 = vmatmul.mubr.bf16.gmra.mrb[0].mxu0 %v1497
        %v1583 = vpop.f32.mrb[0].mxu0
        %v1584 = vadd.f32 %v1424, %v1583
        %v1585 = vpop.f32.mrb[0].mxu0
        %v1586 = vadd.f32 %v1424, %v1585
        %v1587 = vpop.f32.mrb[0].mxu0
        %v1588 = vadd.f32 %v1429, %v1587
        %v1589 = vpop.f32.mrb[0].mxu0
        %v1590 = vadd.f32 %v1429, %v1589
        %1591 = vmatprep.mubr.bf16.mxu0 0
        %1592 = vmatmul.mubr.bf16.gmra.mrb[0].mxu0 %v1498
        %v1593 = vpop.f32.mrb[0].mxu0
        %v1594 = vadd.f32 %v1434, %v1593
        %v1595 = vpop.f32.mrb[0].mxu0
        %v1596 = vadd.f32 %v1434, %v1595
        %v1597 = vpop.f32.mrb[0].mxu0
        %v1598 = vadd.f32 %v1439, %v1597
        %v1599 = vpop.f32.mrb[0].mxu0
        %v1600 = vadd.f32 %v1439, %v1599
        %1601 = vmatprep.mubr.bf16.mxu0 0
        %1602 = vmatmul.mubr.bf16.gmra.mrb[0].mxu0 %v1499
        %v1603 = vpop.f32.mrb[0].mxu0
        %v1604 = vadd.f32 %v1444, %v1603
        %v1605 = vpop.f32.mrb[0].mxu0
        %v1606 = vadd.f32 %v1444, %v1605
        %v1607 = vpop.f32.mrb[0].mxu0
        %v1608 = vadd.f32 %v1449, %v1607
        %v1609 = vpop.f32.mrb[0].mxu0
        %v1610 = vadd.f32 %v1449, %v1609
        %1611 = vmatprep.mubr.bf16.mxu0 0
        %1612 = vmatmul.mubr.bf16.gmra.mrb[0].mxu0 %v1500
        %v1613 = vpop.f32.mrb[0].mxu0
        %v1614 = vadd.f32 %v1454, %v1613
        %v1615 = vpop.f32.mrb[0].mxu0
        %v1616 = vadd.f32 %v1454, %v1615
        %v1617 = vpop.f32.mrb[0].mxu0
        %v1618 = vadd.f32 %v1459, %v1617
        %v1619 = vpop.f32.mrb[0].mxu0
        %v1620 = vadd.f32 %v1459, %v1619
        %1621 = vdwg.mxu0
        %v1622 = vmax.f32 %v1544, 0.0
        %v1623 = vmax.f32 %v1546, 0.0
        %v1624 = vmax.f32 %v1548, 0.0
        %v1625 = vmax.f32 %v1550, 0.0
        %v1626 = vmax.f32 %v1554, 0.0
        %v1627 = vmax.f32 %v1556, 0.0
        %v1628 = vmax.f32 %v1558, 0.0
        %v1629 = vmax.f32 %v1560, 0.0
        %v1630 = vmax.f32 %v1564, 0.0
        %v1631 = vmax.f32 %v1566, 0.0
        %v1632 = vmax.f32 %v1568, 0.0
        %v1633 = vmax.f32 %v1570, 0.0
        %v1634 = vmax.f32 %v1574, 0.0
        %v1635 = vmax.f32 %v1576, 0.0
        %v1636 = vmax.f32 %v1578, 0.0
        %v1637 = vmax.f32 %v1580, 0.0
        %v1638 = vmax.f32 %v1584, 0.0
        %v1639 = vmax.f32 %v1586, 0.0
        %v1640 = vmax.f32 %v1588, 0.0
        %v1641 = vmax.f32 %v1590, 0.0
        %v1642 = vmax.f32 %v1594, 0.0
        %v1643 = vmax.f32 %v1596, 0.0
        %v1644 = vmax.f32 %v1598, 0.0
        %v1645 = vmax.f32 %v1600, 0.0
        %v1646 = vmax.f32 %v1604, 0.0
        %v1647 = vmax.f32 %v1606, 0.0
        %v1648 = vmax.f32 %v1608, 0.0
        %v1649 = vmax.f32 %v1610, 0.0
        %v1650 = vmax.f32 %v1614, 0.0
        %v1651 = vmax.f32 %v1616, 0.0
        %v1652 = vmax.f32 %v1618, 0.0
        %v1653 = vmax.f32 %v1620, 0.0
        %s1654 = scalar_lea.vmem %s1, 256
        %v1655 = vld [vmem:[%s1654] sm:$0xf]
        %v1656 = vld [vmem:[%s1654 + $0x4] sm:$0xf]
        %v1657 = vld [vmem:[%s1654 + $0x8] sm:$0xf]
        %v1658 = vld [vmem:[%s1654 + $0xc] sm:$0xf]
        %v1659 = vld [vmem:[%s1654 + $0x10] sm:$0xf]
        %v1660 = vld [vmem:[%s1654 + $0x14] sm:$0xf]
        %v1661 = vld [vmem:[%s1654 + $0x18] sm:$0xf]
        %v1662 = vld [vmem:[%s1654 + $0x1c] sm:$0xf]
        %v1663 = vld [vmem:[%s1654 + $0x20] sm:$0xf]
        %v1664 = vld [vmem:[%s1654 + $0x24] sm:$0xf]
        %v1665 = vld [vmem:[%s1654 + $0x28] sm:$0xf]
        %v1666 = vld [vmem:[%s1654 + $0x2c] sm:$0xf]
        %v1667 = vld [vmem:[%s1654 + $0x30] sm:$0xf]
        %v1668 = vld [vmem:[%s1654 + $0x34] sm:$0xf]
        %v1669 = vld [vmem:[%s1654 + $0x38] sm:$0xf]
        %v1670 = vld [vmem:[%s1654 + $0x3c] sm:$0xf]
        %v1671 = vpack.c.bf16 %v1624, %v1622
        %v1672 = vpack.c.bf16 %v1625, %v1623
        %v1673 = vpack.c.bf16 %v1628, %v1626
        %v1674 = vpack.c.bf16 %v1629, %v1627
        %v1675 = vpack.c.bf16 %v1632, %v1630
        %v1676 = vpack.c.bf16 %v1633, %v1631
        %v1677 = vpack.c.bf16 %v1636, %v1634
        %v1678 = vpack.c.bf16 %v1637, %v1635
        %v1679 = vpack.c.bf16 %v1640, %v1638
        %v1680 = vpack.c.bf16 %v1641, %v1639
        %v1681 = vpack.c.bf16 %v1644, %v1642
        %v1682 = vpack.c.bf16 %v1645, %v1643
        %v1683 = vpack.c.bf16 %v1648, %v1646
        %v1684 = vpack.c.bf16 %v1649, %v1647
        %v1685 = vpack.c.bf16 %v1652, %v1650
        %v1686 = vpack.c.bf16 %v1653, %v1651
        %s1687 = scalar_lea.vmem %s2, 512
        %v1688 = vld [vmem:[%s1687] sm:$0xff]
        %v1689 = vld [vmem:[%s1687 + $0x8] sm:$0xff]
        %v1690 = vld [vmem:[%s1687 + $0x10] sm:$0xff]
        %v1691 = vld [vmem:[%s1687 + $0x18] sm:$0xff]
        %v1692 = vld [vmem:[%s1687 + $0x20] sm:$0xff]
        %v1693 = vld [vmem:[%s1687 + $0x28] sm:$0xff]
        %v1694 = vld [vmem:[%s1687 + $0x30] sm:$0xff]
        %v1695 = vld [vmem:[%s1687 + $0x38] sm:$0xff]
        %v1696 = vld [vmem:[%s1687 + $0x40] sm:$0xff]
        %v1697 = vld [vmem:[%s1687 + $0x48] sm:$0xff]
        %v1698 = vld [vmem:[%s1687 + $0x50] sm:$0xff]
        %v1699 = vld [vmem:[%s1687 + $0x58] sm:$0xff]
        %v1700 = vld [vmem:[%s1687 + $0x60] sm:$0xff]
        %v1701 = vld [vmem:[%s1687 + $0x68] sm:$0xff]
        %v1702 = vld [vmem:[%s1687 + $0x70] sm:$0xff]
        %v1703 = vld [vmem:[%s1687 + $0x78] sm:$0xff]
        %1705 = vset.pattern.permute.xlu0 0
        %1706 = vperm.xlu0 %1705, %v1688
        %v1707 = vpop.permute.xlu0 %1706
        %1710 = vset.pattern.permute.xlu0 0
        %1711 = vperm.xlu0 %1710, %v1689
        %v1712 = vpop.permute.xlu0 %1711
        %1715 = vset.pattern.permute.xlu0 0
        %1716 = vperm.xlu0 %1715, %v1690
        %v1717 = vpop.permute.xlu0 %1716
        %1720 = vset.pattern.permute.xlu0 0
        %1721 = vperm.xlu0 %1720, %v1691
        %v1722 = vpop.permute.xlu0 %1721
        %1725 = vset.pattern.permute.xlu0 0
        %1726 = vperm.xlu0 %1725, %v1692
        %v1727 = vpop.permute.xlu0 %1726
        %1730 = vset.pattern.permute.xlu0 0
        %1731 = vperm.xlu0 %1730, %v1693
        %v1732 = vpop.permute.xlu0 %1731
        %1735 = vset.pattern.permute.xlu0 0
        %1736 = vperm.xlu0 %1735, %v1694
        %v1737 = vpop.permute.xlu0 %1736
        %1740 = vset.pattern.permute.xlu0 0
        %1741 = vperm.xlu0 %1740, %v1695
        %v1742 = vpop.permute.xlu0 %1741
        %1745 = vset.pattern.permute.xlu0 0
        %1746 = vperm.xlu0 %1745, %v1696
        %v1747 = vpop.permute.xlu0 %1746
        %1750 = vset.pattern.permute.xlu0 0
        %1751 = vperm.xlu0 %1750, %v1697
        %v1752 = vpop.permute.xlu0 %1751
        %1755 = vset.pattern.permute.xlu0 0
        %1756 = vperm.xlu0 %1755, %v1698
        %v1757 = vpop.permute.xlu0 %1756
        %1760 = vset.pattern.permute.xlu0 0
        %1761 = vperm.xlu0 %1760, %v1699
        %v1762 = vpop.permute.xlu0 %1761
        %1765 = vset.pattern.permute.xlu0 0
        %1766 = vperm.xlu0 %1765, %v1700
        %v1767 = vpop.permute.xlu0 %1766
        %1770 = vset.pattern.permute.xlu0 0
        %1771 = vperm.xlu0 %1770, %v1701
        %v1772 = vpop.permute.xlu0 %1771
        %1775 = vset.pattern.permute.xlu0 0
        %1776 = vperm.xlu0 %1775, %v1702
        %v1777 = vpop.permute.xlu0 %1776
        %1780 = vset.pattern.permute.xlu0 0
        %1781 = vperm.xlu0 %1780, %v1703
        %v1782 = vpop.permute.xlu0 %1781
        %v1800 = vunpack.c.l.b16 %v1655
        %v1801 = vunpack.c.l.b16 %v1656
        %v1802 = vunpack.c.l.b16 %v1657
        %v1803 = vunpack.c.l.b16 %v1658
        %v1804 = vunpack.c.l.b16 %v1659
        %v1805 = vunpack.c.l.b16 %v1660
        %v1806 = vunpack.c.l.b16 %v1661
        %v1807 = vunpack.c.l.b16 %v1662
        %v1808 = vunpack.c.l.b16 %v1663
        %v1809 = vunpack.c.l.b16 %v1664
        %v1810 = vunpack.c.l.b16 %v1665
        %v1811 = vunpack.c.l.b16 %v1666
        %v1812 = vunpack.c.l.b16 %v1667
        %v1813 = vunpack.c.l.b16 %v1668
        %v1814 = vunpack.c.l.b16 %v1669
        %v1815 = vunpack.c.l.b16 %v1670
        %v1816 = vpack.c.b16 %v1801, %v1800
        %v1817 = vpack.c.b16 %v1803, %v1802
        %v1818 = vpack.c.b16 %v1805, %v1804
        %v1819 = vpack.c.b16 %v1807, %v1806
        %v1820 = vpack.c.b16 %v1809, %v1808
        %v1821 = vpack.c.b16 %v1811, %v1810
        %v1822 = vpack.c.b16 %v1813, %v1812
        %v1823 = vpack.c.b16 %v1815, %v1814
        %1832 = vmatprep.subr.bf16.mxu0 %v1672
        %1833 = vmatpush1.bf16.msra.mxu0 %v1671
        %1834 = vmatprep.subr.bf16.mxu0 %v1674
        %1835 = vmatpush1.bf16.msra.mxu0 %v1673
        %1836 = vmatprep.subr.bf16.mxu0 %v1676
        %1837 = vmatpush1.bf16.msra.mxu0 %v1675
        %1838 = vmatprep.subr.bf16.mxu0 %v1678
        %1839 = vmatpush1.bf16.msra.mxu0 %v1677
        %1840 = vmatprep.subr.bf16.mxu0 %v1680
        %1841 = vmatpush1.bf16.msra.mxu0 %v1679
        %1842 = vmatprep.subr.bf16.mxu0 %v1682
        %1843 = vmatpush1.bf16.msra.mxu0 %v1681
        %1844 = vmatprep.subr.bf16.mxu0 %v1684
        %1845 = vmatpush1.bf16.msra.mxu0 %v1683
        %1846 = vmatprep.subr.bf16.mxu0 %v1686
        %1847 = vmatpush1.bf16.msra.mxu0 %v1685
        %1848 = vmatprep.subr.bf16.mxu0 0
        %1849 = vmatpush1.bf16.msra.mxu0 0
        %1850 = vmatprep.subr.bf16.mxu0 0
        %1851 = vmatpush1.bf16.msra.mxu0 0
        %1852 = vmatprep.subr.bf16.mxu0 0
        %1853 = vmatpush1.bf16.msra.mxu0 0
        %1854 = vmatprep.subr.bf16.mxu0 0
        %1855 = vmatpush1.bf16.msra.mxu0 0
        %1856 = vmatprep.subr.bf16.mxu0 0
        %1857 = vmatpush1.bf16.msra.mxu0 0
        %1858 = vmatprep.subr.bf16.mxu0 0
        %1859 = vmatpush1.bf16.msra.mxu0 0
        %1860 = vmatprep.subr.bf16.mxu0 0
        %1861 = vmatpush1.bf16.msra.mxu0 0
        %1862 = vmatprep.subr.bf16.mxu0 0
        %1863 = vmatpush1.bf16.msra.mxu0 0
        %1864 = vmatprep.mubr.bf16.mxu0 0
        %1865 = vmatmul.mubr.bf16.gmra.mrb[0].mxu0 %v1816
        %v1866 = vpop.f32.mrb[0].mxu0
        %v1867 = vadd.f32 %v1707, %v1866
        %v1868 = vpop.f32.mrb[0].mxu0
        %v1869 = vadd.f32 %v1707, %v1868
        %v1870 = vpop.f32.mrb[0].mxu0
        %v1871 = vadd.f32 %v1712, %v1870
        %v1872 = vpop.f32.mrb[0].mxu0
        %v1873 = vadd.f32 %v1712, %v1872
        %1874 = vmatprep.mubr.bf16.mxu0 0
        %1875 = vmatmul.mubr.bf16.gmra.mrb[0].mxu0 %v1817
        %v1876 = vpop.f32.mrb[0].mxu0
        %v1877 = vadd.f32 %v1717, %v1876
        %v1878 = vpop.f32.mrb[0].mxu0
        %v1879 = vadd.f32 %v1717, %v1878
        %v1880 = vpop.f32.mrb[0].mxu0
        %v1881 = vadd.f32 %v1722, %v1880
        %v1882 = vpop.f32.mrb[0].mxu0
        %v1883 = vadd.f32 %v1722, %v1882
        %1884 = vmatprep.mubr.bf16.mxu0 0
        %1885 = vmatmul.mubr.bf16.gmra.mrb[0].mxu0 %v1818
        %v1886 = vpop.f32.mrb[0].mxu0
        %v1887 = vadd.f32 %v1727, %v1886
        %v1888 = vpop.f32.mrb[0].mxu0
        %v1889 = vadd.f32 %v1727, %v1888
        %v1890 = vpop.f32.mrb[0].mxu0
        %v1891 = vadd.f32 %v1732, %v1890
        %v1892 = vpop.f32.mrb[0].mxu0
        %v1893 = vadd.f32 %v1732, %v1892
        %1894 = vmatprep.mubr.bf16.mxu0 0
        %1895 = vmatmul.mubr.bf16.gmra.mrb[0].mxu0 %v1819
        %v1896 = vpop.f32.mrb[0].mxu0
        %v1897 = vadd.f32 %v1737, %v1896
        %v1898 = vpop.f32.mrb[0].mxu0
        %v1899 = vadd.f32 %v1737, %v1898
        %v1900 = vpop.f32.mrb[0].mxu0
        %v1901 = vadd.f32 %v1742, %v1900
        %v1902 = vpop.f32.mrb[0].mxu0
        %v1903 = vadd.f32 %v1742, %v1902
        %1904 = vmatprep.mubr.bf16.mxu0 0
        %1905 = vmatmul.mubr.bf16.gmra.mrb[0].mxu0 %v1820
        %v1906 = vpop.f32.mrb[0].mxu0
        %v1907 = vadd.f32 %v1747, %v1906
        %v1908 = vpop.f32.mrb[0].mxu0
        %v1909 = vadd.f32 %v1747, %v1908
        %v1910 = vpop.f32.mrb[0].mxu0
        %v1911 = vadd.f32 %v1752, %v1910
        %v1912 = vpop.f32.mrb[0].mxu0
        %v1913 = vadd.f32 %v1752, %v1912
        %1914 = vmatprep.mubr.bf16.mxu0 0
        %1915 = vmatmul.mubr.bf16.gmra.mrb[0].mxu0 %v1821
        %v1916 = vpop.f32.mrb[0].mxu0
        %v1917 = vadd.f32 %v1757, %v1916
        %v1918 = vpop.f32.mrb[0].mxu0
        %v1919 = vadd.f32 %v1757, %v1918
        %v1920 = vpop.f32.mrb[0].mxu0
        %v1921 = vadd.f32 %v1762, %v1920
        %v1922 = vpop.f32.mrb[0].mxu0
        %v1923 = vadd.f32 %v1762, %v1922
        %1924 = vmatprep.mubr.bf16.mxu0 0
        %1925 = vmatmul.mubr.bf16.gmra.mrb[0].mxu0 %v1822
        %v1926 = vpop.f32.mrb[0].mxu0
        %v1927 = vadd.f32 %v1767, %v1926
        %v1928 = vpop.f32.mrb[0].mxu0
        %v1929 = vadd.f32 %v1767, %v1928
        %v1930 = vpop.f32.mrb[0].mxu0
        %v1931 = vadd.f32 %v1772, %v1930
        %v1932 = vpop.f32.mrb[0].mxu0
        %v1933 = vadd.f32 %v1772, %v1932
        %1934 = vmatprep.mubr.bf16.mxu0 0
        %1935 = vmatmul.mubr.bf16.gmra.mrb[0].mxu0 %v1823
        %v1936 = vpop.f32.mrb[0].mxu0
        %v1937 = vadd.f32 %v1777, %v1936
        %v1938 = vpop.f32.mrb[0].mxu0
        %v1939 = vadd.f32 %v1777, %v1938
        %v1940 = vpop.f32.mrb[0].mxu0
        %v1941 = vadd.f32 %v1782, %v1940
        %v1942 = vpop.f32.mrb[0].mxu0
        %v1943 = vadd.f32 %v1782, %v1942
        %1944 = vdwg.mxu0
        %v1945 = vmax.f32 %v1867, 0.0
        %v1946 = vmax.f32 %v1869, 0.0
        %v1947 = vmax.f32 %v1871, 0.0
        %v1948 = vmax.f32 %v1873, 0.0
        %v1949 = vmax.f32 %v1877, 0.0
        %v1950 = vmax.f32 %v1879, 0.0
        %v1951 = vmax.f32 %v1881, 0.0
        %v1952 = vmax.f32 %v1883, 0.0
        %v1953 = vmax.f32 %v1887, 0.0
        %v1954 = vmax.f32 %v1889, 0.0
        %v1955 = vmax.f32 %v1891, 0.0
        %v1956 = vmax.f32 %v1893, 0.0
        %v1957 = vmax.f32 %v1897, 0.0
        %v1958 = vmax.f32 %v1899, 0.0
        %v1959 = vmax.f32 %v1901, 0.0
        %v1960 = vmax.f32 %v1903, 0.0
        %v1961 = vmax.f32 %v1907, 0.0
        %v1962 = vmax.f32 %v1909, 0.0
        %v1963 = vmax.f32 %v1911, 0.0
        %v1964 = vmax.f32 %v1913, 0.0
        %v1965 = vmax.f32 %v1917, 0.0
        %v1966 = vmax.f32 %v1919, 0.0
        %v1967 = vmax.f32 %v1921, 0.0
        %v1968 = vmax.f32 %v1923, 0.0
        %v1969 = vmax.f32 %v1927, 0.0
        %v1970 = vmax.f32 %v1929, 0.0
        %v1971 = vmax.f32 %v1931, 0.0
        %v1972 = vmax.f32 %v1933, 0.0
        %v1973 = vmax.f32 %v1937, 0.0
        %v1974 = vmax.f32 %v1939, 0.0
        %v1975 = vmax.f32 %v1941, 0.0
        %v1976 = vmax.f32 %v1943, 0.0
        %s1977 = scalar_lea.vmem %s1, 320
        %v1978 = vld [vmem:[%s1977] sm:$0xf]
        %v1979 = vld [vmem:[%s1977 + $0x4] sm:$0xf]
        %v1980 = vld [vmem:[%s1977 + $0x8] sm:$0xf]
        %v1981 = vld [vmem:[%s1977 + $0xc] sm:$0xf]
        %v1982 = vld [vmem:[%s1977 + $0x10] sm:$0xf]
        %v1983 = vld [vmem:[%s1977 + $0x14] sm:$0xf]
        %v1984 = vld [vmem:[%s1977 + $0x18] sm:$0xf]
        %v1985 = vld [vmem:[%s1977 + $0x1c] sm:$0xf]
        %v1986 = vld [vmem:[%s1977 + $0x20] sm:$0xf]
        %v1987 = vld [vmem:[%s1977 + $0x24] sm:$0xf]
        %v1988 = vld [vmem:[%s1977 + $0x28] sm:$0xf]
        %v1989 = vld [vmem:[%s1977 + $0x2c] sm:$0xf]
        %v1990 = vld [vmem:[%s1977 + $0x30] sm:$0xf]
        %v1991 = vld [vmem:[%s1977 + $0x34] sm:$0xf]
        %v1992 = vld [vmem:[%s1977 + $0x38] sm:$0xf]
        %v1993 = vld [vmem:[%s1977 + $0x3c] sm:$0xf]
        %v1994 = vpack.c.bf16 %v1947, %v1945
        %v1995 = vpack.c.bf16 %v1948, %v1946
        %v1996 = vpack.c.bf16 %v1951, %v1949
        %v1997 = vpack.c.bf16 %v1952, %v1950
        %v1998 = vpack.c.bf16 %v1955, %v1953
        %v1999 = vpack.c.bf16 %v1956, %v1954
        %v2000 = vpack.c.bf16 %v1959, %v1957
        %v2001 = vpack.c.bf16 %v1960, %v1958
        %v2002 = vpack.c.bf16 %v1963, %v1961
        %v2003 = vpack.c.bf16 %v1964, %v1962
        %v2004 = vpack.c.bf16 %v1967, %v1965
        %v2005 = vpack.c.bf16 %v1968, %v1966
        %v2006 = vpack.c.bf16 %v1971, %v1969
        %v2007 = vpack.c.bf16 %v1972, %v1970
        %v2008 = vpack.c.bf16 %v1975, %v1973
        %v2009 = vpack.c.bf16 %v1976, %v1974
        %s2010 = scalar_lea.vmem %s2, 640
        %v2011 = vld [vmem:[%s2010] sm:$0xff]
        %v2012 = vld [vmem:[%s2010 + $0x8] sm:$0xff]
        %v2013 = vld [vmem:[%s2010 + $0x10] sm:$0xff]
        %v2014 = vld [vmem:[%s2010 + $0x18] sm:$0xff]
        %v2015 = vld [vmem:[%s2010 + $0x20] sm:$0xff]
        %v2016 = vld [vmem:[%s2010 + $0x28] sm:$0xff]
        %v2017 = vld [vmem:[%s2010 + $0x30] sm:$0xff]
        %v2018 = vld [vmem:[%s2010 + $0x38] sm:$0xff]
        %v2019 = vld [vmem:[%s2010 + $0x40] sm:$0xff]
        %v2020 = vld [vmem:[%s2010 + $0x48] sm:$0xff]
        %v2021 = vld [vmem:[%s2010 + $0x50] sm:$0xff]
        %v2022 = vld [vmem:[%s2010 + $0x58] sm:$0xff]
        %v2023 = vld [vmem:[%s2010 + $0x60] sm:$0xff]
        %v2024 = vld [vmem:[%s2010 + $0x68] sm:$0xff]
        %v2025 = vld [vmem:[%s2010 + $0x70] sm:$0xff]
        %v2026 = vld [vmem:[%s2010 + $0x78] sm:$0xff]
        %2028 = vset.pattern.permute.xlu0 0
        %2029 = vperm.xlu0 %2028, %v2011
        %v2030 = vpop.permute.xlu0 %2029
        %2033 = vset.pattern.permute.xlu0 0
        %2034 = vperm.xlu0 %2033, %v2012
        %v2035 = vpop.permute.xlu0 %2034
        %2038 = vset.pattern.permute.xlu0 0
        %2039 = vperm.xlu0 %2038, %v2013
        %v2040 = vpop.permute.xlu0 %2039
        %2043 = vset.pattern.permute.xlu0 0
        %2044 = vperm.xlu0 %2043, %v2014
        %v2045 = vpop.permute.xlu0 %2044
        %2048 = vset.pattern.permute.xlu0 0
        %2049 = vperm.xlu0 %2048, %v2015
        %v2050 = vpop.permute.xlu0 %2049
        %2053 = vset.pattern.permute.xlu0 0
        %2054 = vperm.xlu0 %2053, %v2016
        %v2055 = vpop.permute.xlu0 %2054
        %2058 = vset.pattern.permute.xlu0 0
        %2059 = vperm.xlu0 %2058, %v2017
        %v2060 = vpop.permute.xlu0 %2059
        %2063 = vset.pattern.permute.xlu0 0
        %2064 = vperm.xlu0 %2063, %v2018
        %v2065 = vpop.permute.xlu0 %2064
        %2068 = vset.pattern.permute.xlu0 0
        %2069 = vperm.xlu0 %2068, %v2019
        %v2070 = vpop.permute.xlu0 %2069
        %2073 = vset.pattern.permute.xlu0 0
        %2074 = vperm.xlu0 %2073, %v2020
        %v2075 = vpop.permute.xlu0 %2074
        %2078 = vset.pattern.permute.xlu0 0
        %2079 = vperm.xlu0 %2078, %v2021
        %v2080 = vpop.permute.xlu0 %2079
        %2083 = vset.pattern.permute.xlu0 0
        %2084 = vperm.xlu0 %2083, %v2022
        %v2085 = vpop.permute.xlu0 %2084
        %2088 = vset.pattern.permute.xlu0 0
        %2089 = vperm.xlu0 %2088, %v2023
        %v2090 = vpop.permute.xlu0 %2089
        %2093 = vset.pattern.permute.xlu0 0
        %2094 = vperm.xlu0 %2093, %v2024
        %v2095 = vpop.permute.xlu0 %2094
        %2098 = vset.pattern.permute.xlu0 0
        %2099 = vperm.xlu0 %2098, %v2025
        %v2100 = vpop.permute.xlu0 %2099
        %2103 = vset.pattern.permute.xlu0 0
        %2104 = vperm.xlu0 %2103, %v2026
        %v2105 = vpop.permute.xlu0 %2104
        %v2123 = vunpack.c.l.b16 %v1978
        %v2124 = vunpack.c.l.b16 %v1979
        %v2125 = vunpack.c.l.b16 %v1980
        %v2126 = vunpack.c.l.b16 %v1981
        %v2127 = vunpack.c.l.b16 %v1982
        %v2128 = vunpack.c.l.b16 %v1983
        %v2129 = vunpack.c.l.b16 %v1984
        %v2130 = vunpack.c.l.b16 %v1985
        %v2131 = vunpack.c.l.b16 %v1986
        %v2132 = vunpack.c.l.b16 %v1987
        %v2133 = vunpack.c.l.b16 %v1988
        %v2134 = vunpack.c.l.b16 %v1989
        %v2135 = vunpack.c.l.b16 %v1990
        %v2136 = vunpack.c.l.b16 %v1991
        %v2137 = vunpack.c.l.b16 %v1992
        %v2138 = vunpack.c.l.b16 %v1993
        %v2139 = vpack.c.b16 %v2124, %v2123
        %v2140 = vpack.c.b16 %v2126, %v2125
        %v2141 = vpack.c.b16 %v2128, %v2127
        %v2142 = vpack.c.b16 %v2130, %v2129
        %v2143 = vpack.c.b16 %v2132, %v2131
        %v2144 = vpack.c.b16 %v2134, %v2133
        %v2145 = vpack.c.b16 %v2136, %v2135
        %v2146 = vpack.c.b16 %v2138, %v2137
        %2155 = vmatprep.subr.bf16.mxu0 %v1995
        %2156 = vmatpush1.bf16.msra.mxu0 %v1994
        %2157 = vmatprep.subr.bf16.mxu0 %v1997
        %2158 = vmatpush1.bf16.msra.mxu0 %v1996
        %2159 = vmatprep.subr.bf16.mxu0 %v1999
        %2160 = vmatpush1.bf16.msra.mxu0 %v1998
        %2161 = vmatprep.subr.bf16.mxu0 %v2001
        %2162 = vmatpush1.bf16.msra.mxu0 %v2000
        %2163 = vmatprep.subr.bf16.mxu0 %v2003
        %2164 = vmatpush1.bf16.msra.mxu0 %v2002
        %2165 = vmatprep.subr.bf16.mxu0 %v2005
        %2166 = vmatpush1.bf16.msra.mxu0 %v2004
        %2167 = vmatprep.subr.bf16.mxu0 %v2007
        %2168 = vmatpush1.bf16.msra.mxu0 %v2006
        %2169 = vmatprep.subr.bf16.mxu0 %v2009
        %2170 = vmatpush1.bf16.msra.mxu0 %v2008
        %2171 = vmatprep.subr.bf16.mxu0 0
        %2172 = vmatpush1.bf16.msra.mxu0 0
        %2173 = vmatprep.subr.bf16.mxu0 0
        %2174 = vmatpush1.bf16.msra.mxu0 0
        %2175 = vmatprep.subr.bf16.mxu0 0
        %2176 = vmatpush1.bf16.msra.mxu0 0
        %2177 = vmatprep.subr.bf16.mxu0 0
        %2178 = vmatpush1.bf16.msra.mxu0 0
        %2179 = vmatprep.subr.bf16.mxu0 0
        %2180 = vmatpush1.bf16.msra.mxu0 0
        %2181 = vmatprep.subr.bf16.mxu0 0
        %2182 = vmatpush1.bf16.msra.mxu0 0
        %2183 = vmatprep.subr.bf16.mxu0 0
        %2184 = vmatpush1.bf16.msra.mxu0 0
        %2185 = vmatprep.subr.bf16.mxu0 0
        %2186 = vmatpush1.bf16.msra.mxu0 0
        %2187 = vmatprep.mubr.bf16.mxu0 0
        %2188 = vmatmul.mubr.bf16.gmra.mrb[0].mxu0 %v2139
        %v2189 = vpop.f32.mrb[0].mxu0
        %v2190 = vadd.f32 %v2030, %v2189
        %v2191 = vpop.f32.mrb[0].mxu0
        %v2192 = vadd.f32 %v2030, %v2191
        %v2193 = vpop.f32.mrb[0].mxu0
        %v2194 = vadd.f32 %v2035, %v2193
        %v2195 = vpop.f32.mrb[0].mxu0
        %v2196 = vadd.f32 %v2035, %v2195
        %2197 = vmatprep.mubr.bf16.mxu0 0
        %2198 = vmatmul.mubr.bf16.gmra.mrb[0].mxu0 %v2140
        %v2199 = vpop.f32.mrb[0].mxu0
        %v2200 = vadd.f32 %v2040, %v2199
        %v2201 = vpop.f32.mrb[0].mxu0
        %v2202 = vadd.f32 %v2040, %v2201
        %v2203 = vpop.f32.mrb[0].mxu0
        %v2204 = vadd.f32 %v2045, %v2203
        %v2205 = vpop.f32.mrb[0].mxu0
        %v2206 = vadd.f32 %v2045, %v2205
        %2207 = vmatprep.mubr.bf16.mxu0 0
        %2208 = vmatmul.mubr.bf16.gmra.mrb[0].mxu0 %v2141
        %v2209 = vpop.f32.mrb[0].mxu0
        %v2210 = vadd.f32 %v2050, %v2209
        %v2211 = vpop.f32.mrb[0].mxu0
        %v2212 = vadd.f32 %v2050, %v2211
        %v2213 = vpop.f32.mrb[0].mxu0
        %v2214 = vadd.f32 %v2055, %v2213
        %v2215 = vpop.f32.mrb[0].mxu0
        %v2216 = vadd.f32 %v2055, %v2215
        %2217 = vmatprep.mubr.bf16.mxu0 0
        %2218 = vmatmul.mubr.bf16.gmra.mrb[0].mxu0 %v2142
        %v2219 = vpop.f32.mrb[0].mxu0
        %v2220 = vadd.f32 %v2060, %v2219
        %v2221 = vpop.f32.mrb[0].mxu0
        %v2222 = vadd.f32 %v2060, %v2221
        %v2223 = vpop.f32.mrb[0].mxu0
        %v2224 = vadd.f32 %v2065, %v2223
        %v2225 = vpop.f32.mrb[0].mxu0
        %v2226 = vadd.f32 %v2065, %v2225
        %2227 = vmatprep.mubr.bf16.mxu0 0
        %2228 = vmatmul.mubr.bf16.gmra.mrb[0].mxu0 %v2143
        %v2229 = vpop.f32.mrb[0].mxu0
        %v2230 = vadd.f32 %v2070, %v2229
        %v2231 = vpop.f32.mrb[0].mxu0
        %v2232 = vadd.f32 %v2070, %v2231
        %v2233 = vpop.f32.mrb[0].mxu0
        %v2234 = vadd.f32 %v2075, %v2233
        %v2235 = vpop.f32.mrb[0].mxu0
        %v2236 = vadd.f32 %v2075, %v2235
        %2237 = vmatprep.mubr.bf16.mxu0 0
        %2238 = vmatmul.mubr.bf16.gmra.mrb[0].mxu0 %v2144
        %v2239 = vpop.f32.mrb[0].mxu0
        %v2240 = vadd.f32 %v2080, %v2239
        %v2241 = vpop.f32.mrb[0].mxu0
        %v2242 = vadd.f32 %v2080, %v2241
        %v2243 = vpop.f32.mrb[0].mxu0
        %v2244 = vadd.f32 %v2085, %v2243
        %v2245 = vpop.f32.mrb[0].mxu0
        %v2246 = vadd.f32 %v2085, %v2245
        %2247 = vmatprep.mubr.bf16.mxu0 0
        %2248 = vmatmul.mubr.bf16.gmra.mrb[0].mxu0 %v2145
        %v2249 = vpop.f32.mrb[0].mxu0
        %v2250 = vadd.f32 %v2090, %v2249
        %v2251 = vpop.f32.mrb[0].mxu0
        %v2252 = vadd.f32 %v2090, %v2251
        %v2253 = vpop.f32.mrb[0].mxu0
        %v2254 = vadd.f32 %v2095, %v2253
        %v2255 = vpop.f32.mrb[0].mxu0
        %v2256 = vadd.f32 %v2095, %v2255
        %2257 = vmatprep.mubr.bf16.mxu0 0
        %2258 = vmatmul.mubr.bf16.gmra.mrb[0].mxu0 %v2146
        %v2259 = vpop.f32.mrb[0].mxu0
        %v2260 = vadd.f32 %v2100, %v2259
        %v2261 = vpop.f32.mrb[0].mxu0
        %v2262 = vadd.f32 %v2100, %v2261
        %v2263 = vpop.f32.mrb[0].mxu0
        %v2264 = vadd.f32 %v2105, %v2263
        %v2265 = vpop.f32.mrb[0].mxu0
        %v2266 = vadd.f32 %v2105, %v2265
        %2267 = vdwg.mxu0
        %v2268 = vmax.f32 %v2190, 0.0
        %v2269 = vmax.f32 %v2192, 0.0
        %v2270 = vmax.f32 %v2194, 0.0
        %v2271 = vmax.f32 %v2196, 0.0
        %v2272 = vmax.f32 %v2200, 0.0
        %v2273 = vmax.f32 %v2202, 0.0
        %v2274 = vmax.f32 %v2204, 0.0
        %v2275 = vmax.f32 %v2206, 0.0
        %v2276 = vmax.f32 %v2210, 0.0
        %v2277 = vmax.f32 %v2212, 0.0
        %v2278 = vmax.f32 %v2214, 0.0
        %v2279 = vmax.f32 %v2216, 0.0
        %v2280 = vmax.f32 %v2220, 0.0
        %v2281 = vmax.f32 %v2222, 0.0
        %v2282 = vmax.f32 %v2224, 0.0
        %v2283 = vmax.f32 %v2226, 0.0
        %v2284 = vmax.f32 %v2230, 0.0
        %v2285 = vmax.f32 %v2232, 0.0
        %v2286 = vmax.f32 %v2234, 0.0
        %v2287 = vmax.f32 %v2236, 0.0
        %v2288 = vmax.f32 %v2240, 0.0
        %v2289 = vmax.f32 %v2242, 0.0
        %v2290 = vmax.f32 %v2244, 0.0
        %v2291 = vmax.f32 %v2246, 0.0
        %v2292 = vmax.f32 %v2250, 0.0
        %v2293 = vmax.f32 %v2252, 0.0
        %v2294 = vmax.f32 %v2254, 0.0
        %v2295 = vmax.f32 %v2256, 0.0
        %v2296 = vmax.f32 %v2260, 0.0
        %v2297 = vmax.f32 %v2262, 0.0
        %v2298 = vmax.f32 %v2264, 0.0
        %v2299 = vmax.f32 %v2266, 0.0
        %s2300 = scalar_lea.vmem %s1, 384
        %v2301 = vld [vmem:[%s2300] sm:$0xf]
        %v2302 = vld [vmem:[%s2300 + $0x4] sm:$0xf]
        %v2303 = vld [vmem:[%s2300 + $0x8] sm:$0xf]
        %v2304 = vld [vmem:[%s2300 + $0xc] sm:$0xf]
        %v2305 = vld [vmem:[%s2300 + $0x10] sm:$0xf]
        %v2306 = vld [vmem:[%s2300 + $0x14] sm:$0xf]
        %v2307 = vld [vmem:[%s2300 + $0x18] sm:$0xf]
        %v2308 = vld [vmem:[%s2300 + $0x1c] sm:$0xf]
        %v2309 = vld [vmem:[%s2300 + $0x20] sm:$0xf]
        %v2310 = vld [vmem:[%s2300 + $0x24] sm:$0xf]
        %v2311 = vld [vmem:[%s2300 + $0x28] sm:$0xf]
        %v2312 = vld [vmem:[%s2300 + $0x2c] sm:$0xf]
        %v2313 = vld [vmem:[%s2300 + $0x30] sm:$0xf]
        %v2314 = vld [vmem:[%s2300 + $0x34] sm:$0xf]
        %v2315 = vld [vmem:[%s2300 + $0x38] sm:$0xf]
        %v2316 = vld [vmem:[%s2300 + $0x3c] sm:$0xf]
        %v2317 = vpack.c.bf16 %v2270, %v2268
        %v2318 = vpack.c.bf16 %v2271, %v2269
        %v2319 = vpack.c.bf16 %v2274, %v2272
        %v2320 = vpack.c.bf16 %v2275, %v2273
        %v2321 = vpack.c.bf16 %v2278, %v2276
        %v2322 = vpack.c.bf16 %v2279, %v2277
        %v2323 = vpack.c.bf16 %v2282, %v2280
        %v2324 = vpack.c.bf16 %v2283, %v2281
        %v2325 = vpack.c.bf16 %v2286, %v2284
        %v2326 = vpack.c.bf16 %v2287, %v2285
        %v2327 = vpack.c.bf16 %v2290, %v2288
        %v2328 = vpack.c.bf16 %v2291, %v2289
        %v2329 = vpack.c.bf16 %v2294, %v2292
        %v2330 = vpack.c.bf16 %v2295, %v2293
        %v2331 = vpack.c.bf16 %v2298, %v2296
        %v2332 = vpack.c.bf16 %v2299, %v2297
        %s2333 = scalar_lea.vmem %s2, 768
        %v2334 = vld [vmem:[%s2333] sm:$0xff]
        %v2335 = vld [vmem:[%s2333 + $0x8] sm:$0xff]
        %v2336 = vld [vmem:[%s2333 + $0x10] sm:$0xff]
        %v2337 = vld [vmem:[%s2333 + $0x18] sm:$0xff]
        %v2338 = vld [vmem:[%s2333 + $0x20] sm:$0xff]
        %v2339 = vld [vmem:[%s2333 + $0x28] sm:$0xff]
        %v2340 = vld [vmem:[%s2333 + $0x30] sm:$0xff]
        %v2341 = vld [vmem:[%s2333 + $0x38] sm:$0xff]
        %v2342 = vld [vmem:[%s2333 + $0x40] sm:$0xff]
        %v2343 = vld [vmem:[%s2333 + $0x48] sm:$0xff]
        %v2344 = vld [vmem:[%s2333 + $0x50] sm:$0xff]
        %v2345 = vld [vmem:[%s2333 + $0x58] sm:$0xff]
        %v2346 = vld [vmem:[%s2333 + $0x60] sm:$0xff]
        %v2347 = vld [vmem:[%s2333 + $0x68] sm:$0xff]
        %v2348 = vld [vmem:[%s2333 + $0x70] sm:$0xff]
        %v2349 = vld [vmem:[%s2333 + $0x78] sm:$0xff]
        %2351 = vset.pattern.permute.xlu0 0
        %2352 = vperm.xlu0 %2351, %v2334
        %v2353 = vpop.permute.xlu0 %2352
        %2356 = vset.pattern.permute.xlu0 0
        %2357 = vperm.xlu0 %2356, %v2335
        %v2358 = vpop.permute.xlu0 %2357
        %2361 = vset.pattern.permute.xlu0 0
        %2362 = vperm.xlu0 %2361, %v2336
        %v2363 = vpop.permute.xlu0 %2362
        %2366 = vset.pattern.permute.xlu0 0
        %2367 = vperm.xlu0 %2366, %v2337
        %v2368 = vpop.permute.xlu0 %2367
        %2371 = vset.pattern.permute.xlu0 0
        %2372 = vperm.xlu0 %2371, %v2338
        %v2373 = vpop.permute.xlu0 %2372
        %2376 = vset.pattern.permute.xlu0 0
        %2377 = vperm.xlu0 %2376, %v2339
        %v2378 = vpop.permute.xlu0 %2377
        %2381 = vset.pattern.permute.xlu0 0
        %2382 = vperm.xlu0 %2381, %v2340
        %v2383 = vpop.permute.xlu0 %2382
        %2386 = vset.pattern.permute.xlu0 0
        %2387 = vperm.xlu0 %2386, %v2341
        %v2388 = vpop.permute.xlu0 %2387
        %2391 = vset.pattern.permute.xlu0 0
        %2392 = vperm.xlu0 %2391, %v2342
        %v2393 = vpop.permute.xlu0 %2392
        %2396 = vset.pattern.permute.xlu0 0
        %2397 = vperm.xlu0 %2396, %v2343
        %v2398 = vpop.permute.xlu0 %2397
        %2401 = vset.pattern.permute.xlu0 0
        %2402 = vperm.xlu0 %2401, %v2344
        %v2403 = vpop.permute.xlu0 %2402
        %2406 = vset.pattern.permute.xlu0 0
        %2407 = vperm.xlu0 %2406, %v2345
        %v2408 = vpop.permute.xlu0 %2407
        %2411 = vset.pattern.permute.xlu0 0
        %2412 = vperm.xlu0 %2411, %v2346
        %v2413 = vpop.permute.xlu0 %2412
        %2416 = vset.pattern.permute.xlu0 0
        %2417 = vperm.xlu0 %2416, %v2347
        %v2418 = vpop.permute.xlu0 %2417
        %2421 = vset.pattern.permute.xlu0 0
        %2422 = vperm.xlu0 %2421, %v2348
        %v2423 = vpop.permute.xlu0 %2422
        %2426 = vset.pattern.permute.xlu0 0
        %2427 = vperm.xlu0 %2426, %v2349
        %v2428 = vpop.permute.xlu0 %2427
        %v2446 = vunpack.c.l.b16 %v2301
        %v2447 = vunpack.c.l.b16 %v2302
        %v2448 = vunpack.c.l.b16 %v2303
        %v2449 = vunpack.c.l.b16 %v2304
        %v2450 = vunpack.c.l.b16 %v2305
        %v2451 = vunpack.c.l.b16 %v2306
        %v2452 = vunpack.c.l.b16 %v2307
        %v2453 = vunpack.c.l.b16 %v2308
        %v2454 = vunpack.c.l.b16 %v2309
        %v2455 = vunpack.c.l.b16 %v2310
        %v2456 = vunpack.c.l.b16 %v2311
        %v2457 = vunpack.c.l.b16 %v2312
        %v2458 = vunpack.c.l.b16 %v2313
        %v2459 = vunpack.c.l.b16 %v2314
        %v2460 = vunpack.c.l.b16 %v2315
        %v2461 = vunpack.c.l.b16 %v2316
        %v2462 = vpack.c.b16 %v2447, %v2446
        %v2463 = vpack.c.b16 %v2449, %v2448
        %v2464 = vpack.c.b16 %v2451, %v2450
        %v2465 = vpack.c.b16 %v2453, %v2452
        %v2466 = vpack.c.b16 %v2455, %v2454
        %v2467 = vpack.c.b16 %v2457, %v2456
        %v2468 = vpack.c.b16 %v2459, %v2458
        %v2469 = vpack.c.b16 %v2461, %v2460
        %2478 = vmatprep.subr.bf16.mxu0 %v2318
        %2479 = vmatpush1.bf16.msra.mxu0 %v2317
        %2480 = vmatprep.subr.bf16.mxu0 %v2320
        %2481 = vmatpush1.bf16.msra.mxu0 %v2319
        %2482 = vmatprep.subr.bf16.mxu0 %v2322
        %2483 = vmatpush1.bf16.msra.mxu0 %v2321
        %2484 = vmatprep.subr.bf16.mxu0 %v2324
        %2485 = vmatpush1.bf16.msra.mxu0 %v2323
        %2486 = vmatprep.subr.bf16.mxu0 %v2326
        %2487 = vmatpush1.bf16.msra.mxu0 %v2325
        %2488 = vmatprep.subr.bf16.mxu0 %v2328
        %2489 = vmatpush1.bf16.msra.mxu0 %v2327
        %2490 = vmatprep.subr.bf16.mxu0 %v2330
        %2491 = vmatpush1.bf16.msra.mxu0 %v2329
        %2492 = vmatprep.subr.bf16.mxu0 %v2332
        %2493 = vmatpush1.bf16.msra.mxu0 %v2331
        %2494 = vmatprep.subr.bf16.mxu0 0
        %2495 = vmatpush1.bf16.msra.mxu0 0
        %2496 = vmatprep.subr.bf16.mxu0 0
        %2497 = vmatpush1.bf16.msra.mxu0 0
        %2498 = vmatprep.subr.bf16.mxu0 0
        %2499 = vmatpush1.bf16.msra.mxu0 0
        %2500 = vmatprep.subr.bf16.mxu0 0
        %2501 = vmatpush1.bf16.msra.mxu0 0
        %2502 = vmatprep.subr.bf16.mxu0 0
        %2503 = vmatpush1.bf16.msra.mxu0 0
        %2504 = vmatprep.subr.bf16.mxu0 0
        %2505 = vmatpush1.bf16.msra.mxu0 0
        %2506 = vmatprep.subr.bf16.mxu0 0
        %2507 = vmatpush1.bf16.msra.mxu0 0
        %2508 = vmatprep.subr.bf16.mxu0 0
        %2509 = vmatpush1.bf16.msra.mxu0 0
        %2510 = vmatprep.mubr.bf16.mxu0 0
        %2511 = vmatmul.mubr.bf16.gmra.mrb[0].mxu0 %v2462
        %v2512 = vpop.f32.mrb[0].mxu0
        %v2513 = vadd.f32 %v2353, %v2512
        %v2514 = vpop.f32.mrb[0].mxu0
        %v2515 = vadd.f32 %v2353, %v2514
        %v2516 = vpop.f32.mrb[0].mxu0
        %v2517 = vadd.f32 %v2358, %v2516
        %v2518 = vpop.f32.mrb[0].mxu0
        %v2519 = vadd.f32 %v2358, %v2518
        %2520 = vmatprep.mubr.bf16.mxu0 0
        %2521 = vmatmul.mubr.bf16.gmra.mrb[0].mxu0 %v2463
        %v2522 = vpop.f32.mrb[0].mxu0
        %v2523 = vadd.f32 %v2363, %v2522
        %v2524 = vpop.f32.mrb[0].mxu0
        %v2525 = vadd.f32 %v2363, %v2524
        %v2526 = vpop.f32.mrb[0].mxu0
        %v2527 = vadd.f32 %v2368, %v2526
        %v2528 = vpop.f32.mrb[0].mxu0
        %v2529 = vadd.f32 %v2368, %v2528
        %2530 = vmatprep.mubr.bf16.mxu0 0
        %2531 = vmatmul.mubr.bf16.gmra.mrb[0].mxu0 %v2464
        %v2532 = vpop.f32.mrb[0].mxu0
        %v2533 = vadd.f32 %v2373, %v2532
        %v2534 = vpop.f32.mrb[0].mxu0
        %v2535 = vadd.f32 %v2373, %v2534
        %v2536 = vpop.f32.mrb[0].mxu0
        %v2537 = vadd.f32 %v2378, %v2536
        %v2538 = vpop.f32.mrb[0].mxu0
        %v2539 = vadd.f32 %v2378, %v2538
        %2540 = vmatprep.mubr.bf16.mxu0 0
        %2541 = vmatmul.mubr.bf16.gmra.mrb[0].mxu0 %v2465
        %v2542 = vpop.f32.mrb[0].mxu0
        %v2543 = vadd.f32 %v2383, %v2542
        %v2544 = vpop.f32.mrb[0].mxu0
        %v2545 = vadd.f32 %v2383, %v2544
        %v2546 = vpop.f32.mrb[0].mxu0
        %v2547 = vadd.f32 %v2388, %v2546
        %v2548 = vpop.f32.mrb[0].mxu0
        %v2549 = vadd.f32 %v2388, %v2548
        %2550 = vmatprep.mubr.bf16.mxu0 0
        %2551 = vmatmul.mubr.bf16.gmra.mrb[0].mxu0 %v2466
        %v2552 = vpop.f32.mrb[0].mxu0
        %v2553 = vadd.f32 %v2393, %v2552
        %v2554 = vpop.f32.mrb[0].mxu0
        %v2555 = vadd.f32 %v2393, %v2554
        %v2556 = vpop.f32.mrb[0].mxu0
        %v2557 = vadd.f32 %v2398, %v2556
        %v2558 = vpop.f32.mrb[0].mxu0
        %v2559 = vadd.f32 %v2398, %v2558
        %2560 = vmatprep.mubr.bf16.mxu0 0
        %2561 = vmatmul.mubr.bf16.gmra.mrb[0].mxu0 %v2467
        %v2562 = vpop.f32.mrb[0].mxu0
        %v2563 = vadd.f32 %v2403, %v2562
        %v2564 = vpop.f32.mrb[0].mxu0
        %v2565 = vadd.f32 %v2403, %v2564
        %v2566 = vpop.f32.mrb[0].mxu0
        %v2567 = vadd.f32 %v2408, %v2566
        %v2568 = vpop.f32.mrb[0].mxu0
        %v2569 = vadd.f32 %v2408, %v2568
        %2570 = vmatprep.mubr.bf16.mxu0 0
        %2571 = vmatmul.mubr.bf16.gmra.mrb[0].mxu0 %v2468
        %v2572 = vpop.f32.mrb[0].mxu0
        %v2573 = vadd.f32 %v2413, %v2572
        %v2574 = vpop.f32.mrb[0].mxu0
        %v2575 = vadd.f32 %v2413, %v2574
        %v2576 = vpop.f32.mrb[0].mxu0
        %v2577 = vadd.f32 %v2418, %v2576
        %v2578 = vpop.f32.mrb[0].mxu0
        %v2579 = vadd.f32 %v2418, %v2578
        %2580 = vmatprep.mubr.bf16.mxu0 0
        %2581 = vmatmul.mubr.bf16.gmra.mrb[0].mxu0 %v2469
        %v2582 = vpop.f32.mrb[0].mxu0
        %v2583 = vadd.f32 %v2423, %v2582
        %v2584 = vpop.f32.mrb[0].mxu0
        %v2585 = vadd.f32 %v2423, %v2584
        %v2586 = vpop.f32.mrb[0].mxu0
        %v2587 = vadd.f32 %v2428, %v2586
        %v2588 = vpop.f32.mrb[0].mxu0
        %v2589 = vadd.f32 %v2428, %v2588
        %2590 = vdwg.mxu0
        %v2591 = vxor.u32 %v2513, 2147483648
        %v2592 = vxor.u32 %v2515, 2147483648
        %v2593 = vxor.u32 %v2517, 2147483648
        %v2594 = vxor.u32 %v2519, 2147483648
        %v2595 = vxor.u32 %v2523, 2147483648
        %v2596 = vxor.u32 %v2525, 2147483648
        %v2597 = vxor.u32 %v2527, 2147483648
        %v2598 = vxor.u32 %v2529, 2147483648
        %v2599 = vxor.u32 %v2533, 2147483648
        %v2600 = vxor.u32 %v2535, 2147483648
        %v2601 = vxor.u32 %v2537, 2147483648
        %v2602 = vxor.u32 %v2539, 2147483648
        %v2603 = vxor.u32 %v2543, 2147483648
        %v2604 = vxor.u32 %v2545, 2147483648
        %v2605 = vxor.u32 %v2547, 2147483648
        %v2606 = vxor.u32 %v2549, 2147483648
        %v2607 = vxor.u32 %v2553, 2147483648
        %v2608 = vxor.u32 %v2555, 2147483648
        %v2609 = vxor.u32 %v2557, 2147483648
        %v2610 = vxor.u32 %v2559, 2147483648
        %v2611 = vxor.u32 %v2563, 2147483648
        %v2612 = vxor.u32 %v2565, 2147483648
        %v2613 = vxor.u32 %v2567, 2147483648
        %v2614 = vxor.u32 %v2569, 2147483648
        %v2615 = vxor.u32 %v2573, 2147483648
        %v2616 = vxor.u32 %v2575, 2147483648
        %v2617 = vxor.u32 %v2577, 2147483648
        %v2618 = vxor.u32 %v2579, 2147483648
        %v2619 = vxor.u32 %v2583, 2147483648
        %v2620 = vxor.u32 %v2585, 2147483648
        %v2621 = vxor.u32 %v2587, 2147483648
        %v2622 = vxor.u32 %v2589, 2147483648
        %v2623 = vmul.f32 %v2591, 1.442695
        %v2624 = vpow.pop %v2623
        %v2625 = vmul.f32 %v2592, 1.442695
        %v2626 = vpow.pop %v2625
        %v2627 = vmul.f32 %v2593, 1.442695
        %v2628 = vpow.pop %v2627
        %v2629 = vmul.f32 %v2594, 1.442695
        %v2630 = vpow.pop %v2629
        %v2631 = vmul.f32 %v2595, 1.442695
        %v2632 = vpow.pop %v2631
        %v2633 = vmul.f32 %v2596, 1.442695
        %v2634 = vpow.pop %v2633
        %v2635 = vmul.f32 %v2597, 1.442695
        %v2636 = vpow.pop %v2635
        %v2637 = vmul.f32 %v2598, 1.442695
        %v2638 = vpow.pop %v2637
        %v2639 = vmul.f32 %v2599, 1.442695
        %v2640 = vpow.pop %v2639
        %v2641 = vmul.f32 %v2600, 1.442695
        %v2642 = vpow.pop %v2641
        %v2643 = vmul.f32 %v2601, 1.442695
        %v2644 = vpow.pop %v2643
        %v2645 = vmul.f32 %v2602, 1.442695
        %v2646 = vpow.pop %v2645
        %v2647 = vmul.f32 %v2603, 1.442695
        %v2648 = vpow.pop %v2647
        %v2649 = vmul.f32 %v2604, 1.442695
        %v2650 = vpow.pop %v2649
        %v2651 = vmul.f32 %v2605, 1.442695
        %v2652 = vpow.pop %v2651
        %v2653 = vmul.f32 %v2606, 1.442695
        %v2654 = vpow.pop %v2653
        %v2655 = vmul.f32 %v2607, 1.442695
        %v2656 = vpow.pop %v2655
        %v2657 = vmul.f32 %v2608, 1.442695
        %v2658 = vpow.pop %v2657
        %v2659 = vmul.f32 %v2609, 1.442695
        %v2660 = vpow.pop %v2659
        %v2661 = vmul.f32 %v2610, 1.442695
        %v2662 = vpow.pop %v2661
        %v2663 = vmul.f32 %v2611, 1.442695
        %v2664 = vpow.pop %v2663
        %v2665 = vmul.f32 %v2612, 1.442695
        %v2666 = vpow.pop %v2665
        %v2667 = vmul.f32 %v2613, 1.442695
        %v2668 = vpow.pop %v2667
        %v2669 = vmul.f32 %v2614, 1.442695
        %v2670 = vpow.pop %v2669
        %v2671 = vmul.f32 %v2615, 1.442695
        %v2672 = vpow.pop %v2671
        %v2673 = vmul.f32 %v2616, 1.442695
        %v2674 = vpow.pop %v2673
        %v2675 = vmul.f32 %v2617, 1.442695
        %v2676 = vpow.pop %v2675
        %v2677 = vmul.f32 %v2618, 1.442695
        %v2678 = vpow.pop %v2677
        %v2679 = vmul.f32 %v2619, 1.442695
        %v2680 = vpow.pop %v2679
        %v2681 = vmul.f32 %v2620, 1.442695
        %v2682 = vpow.pop %v2681
        %v2683 = vmul.f32 %v2621, 1.442695
        %v2684 = vpow.pop %v2683
        %v2685 = vmul.f32 %v2622, 1.442695
        %v2686 = vpow.pop %v2685
        %v2687 = vadd.f32 %v2624, 1.0
        %v2688 = vadd.f32 %v2626, 1.0
        %v2689 = vadd.f32 %v2628, 1.0
        %v2690 = vadd.f32 %v2630, 1.0
        %v2691 = vadd.f32 %v2632, 1.0
        %v2692 = vadd.f32 %v2634, 1.0
        %v2693 = vadd.f32 %v2636, 1.0
        %v2694 = vadd.f32 %v2638, 1.0
        %v2695 = vadd.f32 %v2640, 1.0
        %v2696 = vadd.f32 %v2642, 1.0
        %v2697 = vadd.f32 %v2644, 1.0
        %v2698 = vadd.f32 %v2646, 1.0
        %v2699 = vadd.f32 %v2648, 1.0
        %v2700 = vadd.f32 %v2650, 1.0
        %v2701 = vadd.f32 %v2652, 1.0
        %v2702 = vadd.f32 %v2654, 1.0
        %v2703 = vadd.f32 %v2656, 1.0
        %v2704 = vadd.f32 %v2658, 1.0
        %v2705 = vadd.f32 %v2660, 1.0
        %v2706 = vadd.f32 %v2662, 1.0
        %v2707 = vadd.f32 %v2664, 1.0
        %v2708 = vadd.f32 %v2666, 1.0
        %v2709 = vadd.f32 %v2668, 1.0
        %v2710 = vadd.f32 %v2670, 1.0
        %v2711 = vadd.f32 %v2672, 1.0
        %v2712 = vadd.f32 %v2674, 1.0
        %v2713 = vadd.f32 %v2676, 1.0
        %v2714 = vadd.f32 %v2678, 1.0
        %v2715 = vadd.f32 %v2680, 1.0
        %v2716 = vadd.f32 %v2682, 1.0
        %v2717 = vadd.f32 %v2684, 1.0
        %v2718 = vadd.f32 %v2686, 1.0
        %v2719 = vrcp.pop %v2687
        %v2720 = vmul.f32 1.0, %v2719
        %v2721 = vrcp.pop %v2688
        %v2722 = vmul.f32 1.0, %v2721
        %v2723 = vrcp.pop %v2689
        %v2724 = vmul.f32 1.0, %v2723
        %v2725 = vrcp.pop %v2690
        %v2726 = vmul.f32 1.0, %v2725
        %v2727 = vrcp.pop %v2691
        %v2728 = vmul.f32 1.0, %v2727
        %v2729 = vrcp.pop %v2692
        %v2730 = vmul.f32 1.0, %v2729
        %v2731 = vrcp.pop %v2693
        %v2732 = vmul.f32 1.0, %v2731
        %v2733 = vrcp.pop %v2694
        %v2734 = vmul.f32 1.0, %v2733
        %v2735 = vrcp.pop %v2695
        %v2736 = vmul.f32 1.0, %v2735
        %v2737 = vrcp.pop %v2696
        %v2738 = vmul.f32 1.0, %v2737
        %v2739 = vrcp.pop %v2697
        %v2740 = vmul.f32 1.0, %v2739
        %v2741 = vrcp.pop %v2698
        %v2742 = vmul.f32 1.0, %v2741
        %v2743 = vrcp.pop %v2699
        %v2744 = vmul.f32 1.0, %v2743
        %v2745 = vrcp.pop %v2700
        %v2746 = vmul.f32 1.0, %v2745
        %v2747 = vrcp.pop %v2701
        %v2748 = vmul.f32 1.0, %v2747
        %v2749 = vrcp.pop %v2702
        %v2750 = vmul.f32 1.0, %v2749
        %v2751 = vrcp.pop %v2703
        %v2752 = vmul.f32 1.0, %v2751
        %v2753 = vrcp.pop %v2704
        %v2754 = vmul.f32 1.0, %v2753
        %v2755 = vrcp.pop %v2705
        %v2756 = vmul.f32 1.0, %v2755
        %v2757 = vrcp.pop %v2706
        %v2758 = vmul.f32 1.0, %v2757
        %v2759 = vrcp.pop %v2707
        %v2760 = vmul.f32 1.0, %v2759
        %v2761 = vrcp.pop %v2708
        %v2762 = vmul.f32 1.0, %v2761
        %v2763 = vrcp.pop %v2709
        %v2764 = vmul.f32 1.0, %v2763
        %v2765 = vrcp.pop %v2710
        %v2766 = vmul.f32 1.0, %v2765
        %v2767 = vrcp.pop %v2711
        %v2768 = vmul.f32 1.0, %v2767
        %v2769 = vrcp.pop %v2712
        %v2770 = vmul.f32 1.0, %v2769
        %v2771 = vrcp.pop %v2713
        %v2772 = vmul.f32 1.0, %v2771
        %v2773 = vrcp.pop %v2714
        %v2774 = vmul.f32 1.0, %v2773
        %v2775 = vrcp.pop %v2715
        %v2776 = vmul.f32 1.0, %v2775
        %v2777 = vrcp.pop %v2716
        %v2778 = vmul.f32 1.0, %v2777
        %v2779 = vrcp.pop %v2717
        %v2780 = vmul.f32 1.0, %v2779
        %v2781 = vrcp.pop %v2718
        %v2782 = vmul.f32 1.0, %v2781
        %v2783 = vmul.f32 %v2720, %v1299
        %v2784 = vmul.f32 %v2722, %v1300
        %v2785 = vmul.f32 %v2724, %v1301
        %v2786 = vmul.f32 %v2726, %v1302
        %v2787 = vmul.f32 %v2728, %v1303
        %v2788 = vmul.f32 %v2730, %v1304
        %v2789 = vmul.f32 %v2732, %v1305
        %v2790 = vmul.f32 %v2734, %v1306
        %v2791 = vmul.f32 %v2736, %v1307
        %v2792 = vmul.f32 %v2738, %v1308
        %v2793 = vmul.f32 %v2740, %v1309
        %v2794 = vmul.f32 %v2742, %v1310
        %v2795 = vmul.f32 %v2744, %v1311
        %v2796 = vmul.f32 %v2746, %v1312
        %v2797 = vmul.f32 %v2748, %v1313
        %v2798 = vmul.f32 %v2750, %v1314
        %v2799 = vmul.f32 %v2752, %v1315
        %v2800 = vmul.f32 %v2754, %v1316
        %v2801 = vmul.f32 %v2756, %v1317
        %v2802 = vmul.f32 %v2758, %v1318
        %v2803 = vmul.f32 %v2760, %v1319
        %v2804 = vmul.f32 %v2762, %v1320
        %v2805 = vmul.f32 %v2764, %v1321
        %v2806 = vmul.f32 %v2766, %v1322
        %v2807 = vmul.f32 %v2768, %v1323
        %v2808 = vmul.f32 %v2770, %v1324
        %v2809 = vmul.f32 %v2772, %v1325
        %v2810 = vmul.f32 %v2774, %v1326
        %v2811 = vmul.f32 %v2776, %v1327
        %v2812 = vmul.f32 %v2778, %v1328
        %v2813 = vmul.f32 %v2780, %v1329
        %v2814 = vmul.f32 %v2782, %v1330
        %s2815 = smul.u32 %s25, 2
        %s2816 = sadd.s32 %s2815, %s26
        %s2817 = smul.u32 %s2816, 256
        %v2818 = vlaneseq
        %v2819 = vand.u32 %v2818, 127
        %v2820 = vadd.s32 %v2819, 128
        %v2821 = vstv %s2817
        %v2822 = vadd.s32 %v2821, %v2819
        %v2823 = vadd.s32 %v2821, %v2820
        %vm2824 = vcmp.lt.s32.totalorder %v2822, 896
        %vm2825 = vcmp.lt.s32.totalorder %v2823, 896
        %v2826 = vsel %vm2824, 1, 0
        %v2827 = vsel %vm2825, 1, 0
        %vm2828 = vcmp.eq.s32.totalorder %v2826, 1
        %vm2829 = vcmp.eq.s32.totalorder %v2827, 1
        %v2830 = vsel %vm2828, %v2783, 0.0
        %v2831 = vsel %vm2829, %v2784, 0.0
        %v2832 = vsel %vm2828, %v2785, 0.0
        %v2833 = vsel %vm2829, %v2786, 0.0
        %v2834 = vsel %vm2828, %v2787, 0.0
        %v2835 = vsel %vm2829, %v2788, 0.0
        %v2836 = vsel %vm2828, %v2789, 0.0
        %v2837 = vsel %vm2829, %v2790, 0.0
        %v2838 = vsel %vm2828, %v2791, 0.0
        %v2839 = vsel %vm2829, %v2792, 0.0
        %v2840 = vsel %vm2828, %v2793, 0.0
        %v2841 = vsel %vm2829, %v2794, 0.0
        %v2842 = vsel %vm2828, %v2795, 0.0
        %v2843 = vsel %vm2829, %v2796, 0.0
        %v2844 = vsel %vm2828, %v2797, 0.0
        %v2845 = vsel %vm2829, %v2798, 0.0
        %v2846 = vsel %vm2828, %v2799, 0.0
        %v2847 = vsel %vm2829, %v2800, 0.0
        %v2848 = vsel %vm2828, %v2801, 0.0
        %v2849 = vsel %vm2829, %v2802, 0.0
        %v2850 = vsel %vm2828, %v2803, 0.0
        %v2851 = vsel %vm2829, %v2804, 0.0
        %v2852 = vsel %vm2828, %v2805, 0.0
        %v2853 = vsel %vm2829, %v2806, 0.0
        %v2854 = vsel %vm2828, %v2807, 0.0
        %v2855 = vsel %vm2829, %v2808, 0.0
        %v2856 = vsel %vm2828, %v2809, 0.0
        %v2857 = vsel %vm2829, %v2810, 0.0
        %v2858 = vsel %vm2828, %v2811, 0.0
        %v2859 = vsel %vm2829, %v2812, 0.0
        %v2860 = vsel %vm2828, %v2813, 0.0
        %v2861 = vsel %vm2829, %v2814, 0.0
        %v2862 = vsel %vm2828, %v2720, 0.0
        %v2863 = vsel %vm2829, %v2722, 0.0
        %v2864 = vsel %vm2828, %v2724, 0.0
        %v2865 = vsel %vm2829, %v2726, 0.0
        %v2866 = vsel %vm2828, %v2728, 0.0
        %v2867 = vsel %vm2829, %v2730, 0.0
        %v2868 = vsel %vm2828, %v2732, 0.0
        %v2869 = vsel %vm2829, %v2734, 0.0
        %v2870 = vsel %vm2828, %v2736, 0.0
        %v2871 = vsel %vm2829, %v2738, 0.0
        %v2872 = vsel %vm2828, %v2740, 0.0
        %v2873 = vsel %vm2829, %v2742, 0.0
        %v2874 = vsel %vm2828, %v2744, 0.0
        %v2875 = vsel %vm2829, %v2746, 0.0
        %v2876 = vsel %vm2828, %v2748, 0.0
        %v2877 = vsel %vm2829, %v2750, 0.0
        %v2878 = vsel %vm2828, %v2752, 0.0
        %v2879 = vsel %vm2829, %v2754, 0.0
        %v2880 = vsel %vm2828, %v2756, 0.0
        %v2881 = vsel %vm2829, %v2758, 0.0
        %v2882 = vsel %vm2828, %v2760, 0.0
        %v2883 = vsel %vm2829, %v2762, 0.0
        %v2884 = vsel %vm2828, %v2764, 0.0
        %v2885 = vsel %vm2829, %v2766, 0.0
        %v2886 = vsel %vm2828, %v2768, 0.0
        %v2887 = vsel %vm2829, %v2770, 0.0
        %v2888 = vsel %vm2828, %v2772, 0.0
        %v2889 = vsel %vm2829, %v2774, 0.0
        %v2890 = vsel %vm2828, %v2776, 0.0
        %v2891 = vsel %vm2829, %v2778, 0.0
        %v2892 = vsel %vm2828, %v2780, 0.0
        %v2893 = vsel %vm2829, %v2782, 0.0
        %v2894 = vld [vmem:[%s284] sm:$0xff]
        %v2895 = vld [vmem:[%s284 + $0x8] sm:$0xff]
        %v2896 = vld [vmem:[%s284 + $0x10] sm:$0xff]
        %v2897 = vld [vmem:[%s284 + $0x18] sm:$0xff]
        %v2898 = vld [vmem:[%s284 + $0x20] sm:$0xff]
        %v2899 = vld [vmem:[%s284 + $0x28] sm:$0xff]
        %v2900 = vld [vmem:[%s284 + $0x30] sm:$0xff]
        %v2901 = vld [vmem:[%s284 + $0x38] sm:$0xff]
        %v2902 = vld [vmem:[%s284 + $0x40] sm:$0xff]
        %v2903 = vld [vmem:[%s284 + $0x48] sm:$0xff]
        %v2904 = vld [vmem:[%s284 + $0x50] sm:$0xff]
        %v2905 = vld [vmem:[%s284 + $0x58] sm:$0xff]
        %v2906 = vld [vmem:[%s284 + $0x60] sm:$0xff]
        %v2907 = vld [vmem:[%s284 + $0x68] sm:$0xff]
        %v2908 = vld [vmem:[%s284 + $0x70] sm:$0xff]
        %v2909 = vld [vmem:[%s284 + $0x78] sm:$0xff]
        %v2910 = vadd.f32 %v2830, %v2831
        %2911 = vadd.xlane.f32.xlu0 %v2910
        %v2912 = vpop.xlane.xlu0 %2911
        %v2913 = vadd.f32 %v2832, %v2833
        %2914 = vadd.xlane.f32.xlu0 %v2913
        %v2915 = vpop.xlane.xlu0 %2914
        %v2916 = vadd.f32 %v2834, %v2835
        %2917 = vadd.xlane.f32.xlu0 %v2916
        %v2918 = vpop.xlane.xlu0 %2917
        %v2919 = vadd.f32 %v2836, %v2837
        %2920 = vadd.xlane.f32.xlu0 %v2919
        %v2921 = vpop.xlane.xlu0 %2920
        %v2922 = vadd.f32 %v2838, %v2839
        %2923 = vadd.xlane.f32.xlu0 %v2922
        %v2924 = vpop.xlane.xlu0 %2923
        %v2925 = vadd.f32 %v2840, %v2841
        %2926 = vadd.xlane.f32.xlu0 %v2925
        %v2927 = vpop.xlane.xlu0 %2926
        %v2928 = vadd.f32 %v2842, %v2843
        %2929 = vadd.xlane.f32.xlu0 %v2928
        %v2930 = vpop.xlane.xlu0 %2929
        %v2931 = vadd.f32 %v2844, %v2845
        %2932 = vadd.xlane.f32.xlu0 %v2931
        %v2933 = vpop.xlane.xlu0 %2932
        %v2934 = vadd.f32 %v2846, %v2847
        %2935 = vadd.xlane.f32.xlu0 %v2934
        %v2936 = vpop.xlane.xlu0 %2935
        %v2937 = vadd.f32 %v2848, %v2849
        %2938 = vadd.xlane.f32.xlu0 %v2937
        %v2939 = vpop.xlane.xlu0 %2938
        %v2940 = vadd.f32 %v2850, %v2851
        %2941 = vadd.xlane.f32.xlu0 %v2940
        %v2942 = vpop.xlane.xlu0 %2941
        %v2943 = vadd.f32 %v2852, %v2853
        %2944 = vadd.xlane.f32.xlu0 %v2943
        %v2945 = vpop.xlane.xlu0 %2944
        %v2946 = vadd.f32 %v2854, %v2855
        %2947 = vadd.xlane.f32.xlu0 %v2946
        %v2948 = vpop.xlane.xlu0 %2947
        %v2949 = vadd.f32 %v2856, %v2857
        %2950 = vadd.xlane.f32.xlu0 %v2949
        %v2951 = vpop.xlane.xlu0 %2950
        %v2952 = vadd.f32 %v2858, %v2859
        %2953 = vadd.xlane.f32.xlu0 %v2952
        %v2954 = vpop.xlane.xlu0 %2953
        %v2955 = vadd.f32 %v2860, %v2861
        %2956 = vadd.xlane.f32.xlu0 %v2955
        %v2957 = vpop.xlane.xlu0 %2956
        %v2958 = vadd.f32 %v2894, %v2912
        %v2959 = vadd.f32 %v2895, %v2915
        %v2960 = vadd.f32 %v2896, %v2918
        %v2961 = vadd.f32 %v2897, %v2921
        %v2962 = vadd.f32 %v2898, %v2924
        %v2963 = vadd.f32 %v2899, %v2927
        %v2964 = vadd.f32 %v2900, %v2930
        %v2965 = vadd.f32 %v2901, %v2933
        %v2966 = vadd.f32 %v2902, %v2936
        %v2967 = vadd.f32 %v2903, %v2939
        %v2968 = vadd.f32 %v2904, %v2942
        %v2969 = vadd.f32 %v2905, %v2945
        %v2970 = vadd.f32 %v2906, %v2948
        %v2971 = vadd.f32 %v2907, %v2951
        %v2972 = vadd.f32 %v2908, %v2954
        %v2973 = vadd.f32 %v2909, %v2957
        %vm2974 = vcmask 7168
        %2975 = vst.msk [vmem:[%s284] sm:$0xff] %vm2974, %v2958
        %2976 = vst.msk [vmem:[%s284 + $0x8] sm:$0xff] %vm2974, %v2959
        %2977 = vst.msk [vmem:[%s284 + $0x10] sm:$0xff] %vm2974, %v2960
        %2978 = vst.msk [vmem:[%s284 + $0x18] sm:$0xff] %vm2974, %v2961
        %2979 = vst.msk [vmem:[%s284 + $0x20] sm:$0xff] %vm2974, %v2962
        %2980 = vst.msk [vmem:[%s284 + $0x28] sm:$0xff] %vm2974, %v2963
        %2981 = vst.msk [vmem:[%s284 + $0x30] sm:$0xff] %vm2974, %v2964
        %2982 = vst.msk [vmem:[%s284 + $0x38] sm:$0xff] %vm2974, %v2965
        %2983 = vst.msk [vmem:[%s284 + $0x40] sm:$0xff] %vm2974, %v2966
        %2984 = vst.msk [vmem:[%s284 + $0x48] sm:$0xff] %vm2974, %v2967
        %2985 = vst.msk [vmem:[%s284 + $0x50] sm:$0xff] %vm2974, %v2968
        %2986 = vst.msk [vmem:[%s284 + $0x58] sm:$0xff] %vm2974, %v2969
        %2987 = vst.msk [vmem:[%s284 + $0x60] sm:$0xff] %vm2974, %v2970
        %2988 = vst.msk [vmem:[%s284 + $0x68] sm:$0xff] %vm2974, %v2971
        %2989 = vst.msk [vmem:[%s284 + $0x70] sm:$0xff] %vm2974, %v2972
        %2990 = vst.msk [vmem:[%s284 + $0x78] sm:$0xff] %vm2974, %v2973
        %v2991 = vld [vmem:[%s293] sm:$0xff]
        %v2992 = vld [vmem:[%s293 + $0x8] sm:$0xff]
        %v2993 = vld [vmem:[%s293 + $0x10] sm:$0xff]
        %v2994 = vld [vmem:[%s293 + $0x18] sm:$0xff]
        %v2995 = vld [vmem:[%s293 + $0x20] sm:$0xff]
        %v2996 = vld [vmem:[%s293 + $0x28] sm:$0xff]
        %v2997 = vld [vmem:[%s293 + $0x30] sm:$0xff]
        %v2998 = vld [vmem:[%s293 + $0x38] sm:$0xff]
        %v2999 = vld [vmem:[%s293 + $0x40] sm:$0xff]
        %v3000 = vld [vmem:[%s293 + $0x48] sm:$0xff]
        %v3001 = vld [vmem:[%s293 + $0x50] sm:$0xff]
        %v3002 = vld [vmem:[%s293 + $0x58] sm:$0xff]
        %v3003 = vld [vmem:[%s293 + $0x60] sm:$0xff]
        %v3004 = vld [vmem:[%s293 + $0x68] sm:$0xff]
        %v3005 = vld [vmem:[%s293 + $0x70] sm:$0xff]
        %v3006 = vld [vmem:[%s293 + $0x78] sm:$0xff]
        %v3007 = vadd.f32 %v2862, %v2863
        %3008 = vadd.xlane.f32.xlu0 %v3007
        %v3009 = vpop.xlane.xlu0 %3008
        %v3010 = vadd.f32 %v2864, %v2865
        %3011 = vadd.xlane.f32.xlu0 %v3010
        %v3012 = vpop.xlane.xlu0 %3011
        %v3013 = vadd.f32 %v2866, %v2867
        %3014 = vadd.xlane.f32.xlu0 %v3013
        %v3015 = vpop.xlane.xlu0 %3014
        %v3016 = vadd.f32 %v2868, %v2869
        %3017 = vadd.xlane.f32.xlu0 %v3016
        %v3018 = vpop.xlane.xlu0 %3017
        %v3019 = vadd.f32 %v2870, %v2871
        %3020 = vadd.xlane.f32.xlu0 %v3019
        %v3021 = vpop.xlane.xlu0 %3020
        %v3022 = vadd.f32 %v2872, %v2873
        %3023 = vadd.xlane.f32.xlu0 %v3022
        %v3024 = vpop.xlane.xlu0 %3023
        %v3025 = vadd.f32 %v2874, %v2875
        %3026 = vadd.xlane.f32.xlu0 %v3025
        %v3027 = vpop.xlane.xlu0 %3026
        %v3028 = vadd.f32 %v2876, %v2877
        %3029 = vadd.xlane.f32.xlu0 %v3028
        %v3030 = vpop.xlane.xlu0 %3029
        %v3031 = vadd.f32 %v2878, %v2879
        %3032 = vadd.xlane.f32.xlu0 %v3031
        %v3033 = vpop.xlane.xlu0 %3032
        %v3034 = vadd.f32 %v2880, %v2881
        %3035 = vadd.xlane.f32.xlu0 %v3034
        %v3036 = vpop.xlane.xlu0 %3035
        %v3037 = vadd.f32 %v2882, %v2883
        %3038 = vadd.xlane.f32.xlu0 %v3037
        %v3039 = vpop.xlane.xlu0 %3038
        %v3040 = vadd.f32 %v2884, %v2885
        %3041 = vadd.xlane.f32.xlu0 %v3040
        %v3042 = vpop.xlane.xlu0 %3041
        %v3043 = vadd.f32 %v2886, %v2887
        %3044 = vadd.xlane.f32.xlu0 %v3043
        %v3045 = vpop.xlane.xlu0 %3044
        %v3046 = vadd.f32 %v2888, %v2889
        %3047 = vadd.xlane.f32.xlu0 %v3046
        %v3048 = vpop.xlane.xlu0 %3047
        %v3049 = vadd.f32 %v2890, %v2891
        %3050 = vadd.xlane.f32.xlu0 %v3049
        %v3051 = vpop.xlane.xlu0 %3050
        %v3052 = vadd.f32 %v2892, %v2893
        %3053 = vadd.xlane.f32.xlu0 %v3052
        %v3054 = vpop.xlane.xlu0 %3053
        %v3055 = vadd.f32 %v2991, %v3009
        %v3056 = vadd.f32 %v2992, %v3012
        %v3057 = vadd.f32 %v2993, %v3015
        %v3058 = vadd.f32 %v2994, %v3018
        %v3059 = vadd.f32 %v2995, %v3021
        %v3060 = vadd.f32 %v2996, %v3024
        %v3061 = vadd.f32 %v2997, %v3027
        %v3062 = vadd.f32 %v2998, %v3030
        %v3063 = vadd.f32 %v2999, %v3033
        %v3064 = vadd.f32 %v3000, %v3036
        %v3065 = vadd.f32 %v3001, %v3039
        %v3066 = vadd.f32 %v3002, %v3042
        %v3067 = vadd.f32 %v3003, %v3045
        %v3068 = vadd.f32 %v3004, %v3048
        %v3069 = vadd.f32 %v3005, %v3051
        %v3070 = vadd.f32 %v3006, %v3054
        %3071 = vst.msk [vmem:[%s293] sm:$0xff] %vm2974, %v3055
        %3072 = vst.msk [vmem:[%s293 + $0x8] sm:$0xff] %vm2974, %v3056
        %3073 = vst.msk [vmem:[%s293 + $0x10] sm:$0xff] %vm2974, %v3057
        %3074 = vst.msk [vmem:[%s293 + $0x18] sm:$0xff] %vm2974, %v3058
        %3075 = vst.msk [vmem:[%s293 + $0x20] sm:$0xff] %vm2974, %v3059
        %3076 = vst.msk [vmem:[%s293 + $0x28] sm:$0xff] %vm2974, %v3060
        %3077 = vst.msk [vmem:[%s293 + $0x30] sm:$0xff] %vm2974, %v3061
        %3078 = vst.msk [vmem:[%s293 + $0x38] sm:$0xff] %vm2974, %v3062
        %3079 = vst.msk [vmem:[%s293 + $0x40] sm:$0xff] %vm2974, %v3063
        %3080 = vst.msk [vmem:[%s293 + $0x48] sm:$0xff] %vm2974, %v3064
        %3081 = vst.msk [vmem:[%s293 + $0x50] sm:$0xff] %vm2974, %v3065
        %3082 = vst.msk [vmem:[%s293 + $0x58] sm:$0xff] %vm2974, %v3066
        %3083 = vst.msk [vmem:[%s293 + $0x60] sm:$0xff] %vm2974, %v3067
        %3084 = vst.msk [vmem:[%s293 + $0x68] sm:$0xff] %vm2974, %v3068
        %3085 = vst.msk [vmem:[%s293 + $0x70] sm:$0xff] %vm2974, %v3069
        %3086 = vst.msk [vmem:[%s293 + $0x78] sm:$0xff] %vm2974, %v3070
        %p3087 = scmp.lt.s32.totalorder %s24, 1
        %s3088 = scalar_select %p3087, %s24, 1
        %p3089 = scmp.lt.s32.totalorder %s25, 1
        %s3090 = scalar_select %p3089, %s25, 1
        %s3091 = smul.addr %s3090, 16
        %s3092 = smul.addr %s3088, 32
        %s3093 = sadd.s32 %s3091, %s3092
        %s3094 = smul.addr %s3093, 8
        %s3095 = scalar_lea.vmem %s3, %s3094
        %p3096 = scmp.lt.s32.totalorder %s24, 1
        %s3097 = scalar_select %p3096, %s24, 1
        %p3098 = scmp.lt.s32.totalorder %s25, 1
        %s3099 = scalar_select %p3098, %s25, 1
        %s3100 = smul.addr %s3099, 16
        %s3101 = smul.addr %s3097, 32
        %s3102 = sadd.s32 %s3100, %s3101
        %s3103 = smul.addr %s3102, 8
        %s3104 = scalar_lea.vmem %s4, %s3103
        // Predicated region
        $region41: #{tpu_custom_call.1} parent=31 // pred_check
          %p3105 = pneg %p132
        $region42: #{tpu_custom_call.1} parent=31 // pred_check_branch
          %3107 = sbr.rel (%p3105) target = $region44
        $region43: #{tpu_custom_call.1} parent=31 // pred_region
          _
        $region44: #{tpu_custom_call.1} parent=31 // pred_fallthru
          _
        // Predicated region
        $region45: #{tpu_custom_call.1} parent=31 // pred_check
          %p3108 = pneg %p160
        $region46: #{tpu_custom_call.1} parent=31 // pred_check_branch
          %3110 = sbr.rel (%p3108) target = $region48
        $region47: #{tpu_custom_call.1} parent=31 // pred_region
          _
        $region48: #{tpu_custom_call.1} parent=31 // pred_fallthru
          _
      $region32: #{tpu_custom_call.1} parent=5 // pred_fallthru
        _
      %p3111 = scmp.le.s32.totalorder 2, %s14
      // Predicated region
      $region49: #{tpu_custom_call.1} parent=5 // pred_check
        %p3112 = pneg %p3111
      $region50: #{tpu_custom_call.1} parent=5 // pred_check_branch
        %3114 = sbr.rel (%p3112) target = $region52
      $region51: #{tpu_custom_call.1} parent=5 // pred_region
        %s3115 = ssub.s32 %s14, 2
        // Predicated region
        $region53: #{tpu_custom_call.1} parent=51 // pred_check
          %p3116 = pneg %p138
        $region54: #{tpu_custom_call.1} parent=51 // pred_check_branch
          %3118 = sbr.rel (%p3116) target = $region56
        $region55: #{tpu_custom_call.1} parent=51 // pred_region
          %p3119 = scmp.lt.s32.totalorder %s27, 1
          %s3120 = scalar_select %p3119, %s27, 1
          %p3121 = scmp.lt.s32.totalorder %s28, 1
          %s3122 = scalar_select %p3121, %s28, 1
          %s3123 = smul.addr %s3122, 16
          %s3124 = smul.addr %s3120, 32
          %s3125 = sadd.s32 %s3123, %s3124
          %s3126 = smul.addr %s3125, 8
          %s3127 = scalar_lea.vmem %s3, %s3126
        $region56: #{tpu_custom_call.1} parent=51 // pred_fallthru
          _
        // Predicated region
        $region57: #{tpu_custom_call.1} parent=51 // pred_check
          %p3128 = pneg %p166
        $region58: #{tpu_custom_call.1} parent=51 // pred_check_branch
          %3130 = sbr.rel (%p3128) target = $region60
        $region59: #{tpu_custom_call.1} parent=51 // pred_region
          %p3131 = scmp.lt.s32.totalorder %s27, 1
          %s3132 = scalar_select %p3131, %s27, 1
          %p3133 = scmp.lt.s32.totalorder %s28, 1
          %s3134 = scalar_select %p3133, %s28, 1
          %s3135 = smul.addr %s3134, 16
          %s3136 = smul.addr %s3132, 32
          %s3137 = sadd.s32 %s3135, %s3136
          %s3138 = smul.addr %s3137, 8
          %s3139 = scalar_lea.vmem %s4, %s3138
        $region60: #{tpu_custom_call.1} parent=51 // pred_fallthru
          _
      $region52: #{tpu_custom_call.1} parent=5 // pred_fallthru
        _
    $region6: #{tpu_custom_call.1} parent=1 // loop_footer
      %s18 = sadd.s32 1, %s14
    $region7: #{tpu_custom_call.1} parent=1 // loop_footer_branch
      %13 = sbr.rel target = $region3
    $region8: #{tpu_custom_call.1} parent=1 // loop_exit
      _
    %3140 = vsyncpa [#allocation3], 1
    %s3141 = scalar_lea.sflag [#allocation3], 1
    %3142 = vsyncpa %s3141, 1

</llo_original>
